<compile_context>
chip_gen: v7x
topology: tpu7x:2x2x1
jax: 0.10.0
libtpu: 0.0.40
codegen_flags: <defaults>
</compile_context>

<pallas_src>
from math import sqrt

import jax
import jax.numpy as jnp
from jax.experimental import pallas as pl
from jax.experimental.pallas import tpu as pltpu


# ---------------------------------------------------------------------------
# Kernel
# ---------------------------------------------------------------------------

def _causal_conv(x2, w_ref, b_ref, dilation, bm):
    """x2: (L*bm, Cin) f32 value, rows ordered time-major / batch-minor.
    w_ref: (k, Cin, Cout) ref.  b_ref: (1, Cout) ref.

    Equivalent to PyTorch Conv1d(stride=1, dilation=d, padding=(k-1)*d)
    followed by Chomp1d((k-1)*d).
    """
    rows, cin = x2.shape
    k = w_ref.shape[0]
    cout = w_ref.shape[2]
    acc = jnp.zeros((rows, cout), jnp.float32)
    for j in range(k):
        # time shift s = (k-1-j)*d  ->  row shift s*bm (batch is the minor axis,
        # so this shift is exact per batch element, no cross-batch leakage).
        s_rows = (k - 1 - j) * dilation * bm
        if s_rows == 0:
            shifted = x2
        elif s_rows >= rows:
            shifted = jnp.zeros_like(x2)
        else:
            shifted = jnp.concatenate(
                [jnp.zeros((s_rows, cin), x2.dtype), x2[: rows - s_rows]],
                axis=0)
        acc = acc + jnp.dot(shifted, w_ref[j],
                            preferred_element_type=jnp.float32)
    return acc + b_ref[...]


def _make_tcn_kernel(level_meta):
    """level_meta: tuple of (dilation, has_downsample) per TemporalBlock."""

    def kernel(x_ref, *refs):
        o_ref = refs[-1]
        w_refs = refs[:-1]
        L, bm, c_in = x_ref.shape
        rows = L * bm
        # (L, bm, C) -> (L*bm, C): no-op relayout since bm % 8 == 0.
        x = x_ref[...].astype(jnp.float32).reshape(rows, c_in)

        idx = 0
        for dilation, has_ds in level_meta:
            w1, b1, w2, b2 = w_refs[idx:idx + 4]
            idx += 4
            if has_ds:                                # 1x1 Conv1d downsample
                wd, bd = w_refs[idx:idx + 2]
                idx += 2
                res = jnp.dot(x, wd[...],
                              preferred_element_type=jnp.float32) + bd[...]
            else:                                     # identity residual
                res = x
            h = _causal_conv(x, w1, b1, dilation, bm)
            h = jnp.maximum(h, 0.0)                   # ReLU (Dropout = id, eval)
            h = _causal_conv(h, w2, b2, dilation, bm)
            h = jnp.maximum(h, 0.0)                   # ReLU (Dropout = id, eval)
            x = jnp.maximum(h + res, 0.0)             # residual add + final ReLU

        c_last = x.shape[-1]
        o_ref[...] = x.reshape(L, bm, c_last).astype(o_ref.dtype)

    return kernel


# ---------------------------------------------------------------------------
# Wrapper
# ---------------------------------------------------------------------------

def tcn_forward(x_ncl, params, *, bm=None):
    """Forward pass of TemporalConvNet.

    x_ncl:  (B, C_in, L)  -- same layout as the PyTorch module.
    params: list (one per level) of dicts with keys:
        'dilation' int, 'w1' (k,Cin,Cout), 'b1' (1,Cout),
        'w2' (k,Cout,Cout), 'b2' (1,Cout) and, when Cin != Cout,
        'wd' (Cin,Cout), 'bd' (1,Cout).
    Returns (B, C_out_last, L).
    """
    B, c_in, L = x_ncl.shape
    c_last = params[-1]['w2'].shape[-1]

    x = jnp.transpose(x_ncl, (2, 0, 1))               # (L, B, C): channels->lanes

    # Pad batch so the batch tile is a multiple of 8 (sublane-aligned reshapes
    # inside the kernel) and pick a large tile: whole batch when B <= 128.
    Bp = ((B + 7) // 8) * 8
    if Bp > 128:
        Bp = ((Bp + 127) // 128) * 128
    if bm is None:
        bm = Bp if Bp <= 128 else 128
    assert Bp % bm == 0 and bm % 8 == 0
    if Bp != B:
        x = jnp.concatenate(
            [x, jnp.zeros((L, Bp - B, c_in), x.dtype)], axis=1)
    grid = (Bp // bm,)

    level_meta = []
    flat_params = []
    in_specs = [pl.BlockSpec((L, bm, c_in), lambda i: (0, i, 0))]

    def full_spec(arr):
        nd = arr.ndim
        return pl.BlockSpec(arr.shape, lambda i: (0,) * nd)

    for p in params:
        level_meta.append((int(p['dilation']), 'wd' in p))
        for name in ('w1', 'b1', 'w2', 'b2'):
            flat_params.append(p[name])
            in_specs.append(full_spec(p[name]))
        if 'wd' in p:
            for name in ('wd', 'bd'):
                flat_params.append(p[name])
                in_specs.append(full_spec(p[name]))

    out = pl.pallas_call(
        _make_tcn_kernel(tuple(level_meta)),
        out_shape=jax.ShapeDtypeStruct((L, Bp, c_last), x.dtype),
        grid_spec=pltpu.PrefetchScalarGridSpec(
            num_scalar_prefetch=0,
            grid=grid,
            in_specs=in_specs,
            out_specs=pl.BlockSpec((L, bm, c_last), lambda i: (0, i, 0)),
        ),
        compiler_params=pltpu.CompilerParams(
            dimension_semantics=("parallel",)),
    )(x, *flat_params)

    out = jnp.transpose(out, (1, 2, 0))               # (Bp, C_out, L)
    return out[:B]


# ---------------------------------------------------------------------------
# Parameter construction (mirrors TemporalConvNet / TemporalBlock init)
# ---------------------------------------------------------------------------

def init_tcn_params(key, num_inputs, num_channels, kernel_size):
    """Conv weights: xavier_uniform with weight_norm folded (w = g*v/||v||,
    g initialised to ||v|| -> identity right after init).  Biases: nn.Conv1d
    default uniform(+-1/sqrt(fan_in)).  Downsample 1x1 conv: xavier weight."""

    def xavier(k_, shape):                        # shape = (C_out, C_in, ksz)
        c_out, c_in, ksz = shape
        bound = sqrt(6.0 / (c_in * ksz + c_out * ksz))
        return jax.random.uniform(k_, shape, jnp.float32, -bound, bound)

    def conv_bias(k_, c_in, ksz, c_out):
        bound = 1.0 / sqrt(c_in * ksz)
        return jax.random.uniform(k_, (1, c_out), jnp.float32, -bound, bound)

    def weight_norm_fold(v):                      # exact identity at init
        norm = jnp.sqrt(jnp.sum(v * v, axis=(1, 2), keepdims=True))
        return norm * v / norm                    # g := ||v||

    params = []
    for i, c_out in enumerate(num_channels):
        dilation = 2 ** i
        c_in = num_inputs if i == 0 else num_channels[i - 1]
        key, k1, k2, k3, k4, k5, k6 = jax.random.split(key, 7)
        w1 = weight_norm_fold(xavier(k1, (c_out, c_in, kernel_size)))
        w2 = weight_norm_fold(xavier(k3, (c_out, c_out, kernel_size)))
        p = {
            'dilation': dilation,
            'w1': jnp.transpose(w1, (2, 1, 0)),   # (k, Cin, Cout) for the kernel
            'b1': conv_bias(k2, c_in, kernel_size, c_out),
            'w2': jnp.transpose(w2, (2, 1, 0)),   # (k, Cout, Cout)
            'b2': conv_bias(k4, c_out, kernel_size, c_out),
            'w1_oik': w1, 'w2_oik': w2,           # original layout for reference
        }
        if c_in != c_out:
            wd = xavier(k5, (c_out, c_in, 1))     # 1x1 downsample (no weight_norm)
            p['wd'] = jnp.transpose(wd, (2, 1, 0))[0]   # (Cin, Cout)
            p['bd'] = conv_bias(k6, c_in, 1, c_out)
            p['wd_oik'] = wd
        params.append(p)
    return params


# ---------------------------------------------------------------------------
# Pure-JAX reference (lax.conv_general_dilated) for correctness
# ---------------------------------------------------------------------------

def tcn_reference(x_ncl, params, kernel_size):
    def conv(inp, w_oik, bias, dilation, left_pad):
        out = jax.lax.conv_general_dilated(
            inp, w_oik, window_strides=(1,), padding=[(left_pad, 0)],
            rhs_dilation=(dilation,), dimension_numbers=('NCW', 'OIW', 'NCW'),
            precision=jax.lax.Precision.HIGHEST)
        return out + jnp.reshape(bias, (1, -1, 1))

    h = x_ncl
    for p in params:
        d = int(p['dilation'])
        pad = (kernel_size - 1) * d        # Conv1d padding; Chomp1d removes it
        out = jnp.maximum(conv(h, p['w1_oik'], p['b1'], d, pad), 0.0)
        out = jnp.maximum(conv(out, p['w2_oik'], p['b2'], d, pad), 0.0)
        res = conv(h, p['wd_oik'], p['bd'], 1, 0) if 'wd_oik' in p else h
        h = jnp.maximum(out + res, 0.0)
    return h


if __name__ == "__main__":
    # Small shapes consistent with the module: batch=4, num_inputs=8 channels,
    # num_channels=(16, 16, 16) -> dilations 1, 2, 4, kernel_size=2, seq len 32.
    B, C_IN, L = 4, 8, 32
    NUM_CHANNELS = (16, 16, 16)
    KERNEL_SIZE = 2

    key = jax.random.PRNGKey(0)
    key, kx = jax.random.split(key)
    x = jax.random.normal(kx, (B, C_IN, L), jnp.float32)

    params = init_tcn_params(key, C_IN, NUM_CHANNELS, KERNEL_SIZE)

    out = tcn_forward(x, params)
    out = jax.block_until_ready(out)

    ref = tcn_reference(x, params, KERNEL_SIZE)
    assert out.shape == (B, NUM_CHANNELS[-1], L)
    assert jnp.allclose(out, ref, atol=1e-3, rtol=1e-3), "mismatch vs reference"

    print("KERNEL_OK")
</pallas_src>

<mosaic_0001>
module attributes {stable_mosaic.version = 11 : i64} {
  func.func @kernel(%arg0: i32, %arg1: memref<32x8x8xf32, #tpu.memory_space<vmem>>, %arg2: memref<2x8x16xf32, #tpu.memory_space<vmem>>, %arg3: memref<1x16xf32, #tpu.memory_space<vmem>>, %arg4: memref<2x16x16xf32, #tpu.memory_space<vmem>>, %arg5: memref<1x16xf32, #tpu.memory_space<vmem>>, %arg6: memref<8x16xf32, #tpu.memory_space<vmem>>, %arg7: memref<1x16xf32, #tpu.memory_space<vmem>>, %arg8: memref<2x16x16xf32, #tpu.memory_space<vmem>>, %arg9: memref<1x16xf32, #tpu.memory_space<vmem>>, %arg10: memref<2x16x16xf32, #tpu.memory_space<vmem>>, %arg11: memref<1x16xf32, #tpu.memory_space<vmem>>, %arg12: memref<2x16x16xf32, #tpu.memory_space<vmem>>, %arg13: memref<1x16xf32, #tpu.memory_space<vmem>>, %arg14: memref<2x16x16xf32, #tpu.memory_space<vmem>>, %arg15: memref<1x16xf32, #tpu.memory_space<vmem>>, %arg16: memref<32x8x16xf32, #tpu.memory_space<vmem>>) attributes {dimension_semantics = [#tpu.dimension_semantics<parallel>], iteration_bounds = array<i64: 1>, scalar_prefetch = 0 : i64, scratch_operands = 0 : i64, tpu.core_type = #tpu.core_type<tc>, window_params = [{transform_indices = @transform_0, window_bounds = array<i64: 32, 8, 8>}, {pipeline_mode = #tpu.pipeline_mode<synchronous>, transform_indices = @transform_1, window_bounds = array<i64: 2, 8, 16>}, {pipeline_mode = #tpu.pipeline_mode<synchronous>, transform_indices = @transform_2, window_bounds = array<i64: 1, 16>}, {pipeline_mode = #tpu.pipeline_mode<synchronous>, transform_indices = @transform_3, window_bounds = array<i64: 2, 16, 16>}, {pipeline_mode = #tpu.pipeline_mode<synchronous>, transform_indices = @transform_4, window_bounds = array<i64: 1, 16>}, {pipeline_mode = #tpu.pipeline_mode<synchronous>, transform_indices = @transform_5, window_bounds = array<i64: 8, 16>}, {pipeline_mode = #tpu.pipeline_mode<synchronous>, transform_indices = @transform_6, window_bounds = array<i64: 1, 16>}, {pipeline_mode = #tpu.pipeline_mode<synchronous>, transform_indices = @transform_7, window_bounds = array<i64: 2, 16, 16>}, {pipeline_mode = #tpu.pipeline_mode<synchronous>, transform_indices = @transform_8, window_bounds = array<i64: 1, 16>}, {pipeline_mode = #tpu.pipeline_mode<synchronous>, transform_indices = @transform_9, window_bounds = array<i64: 2, 16, 16>}, {pipeline_mode = #tpu.pipeline_mode<synchronous>, transform_indices = @transform_10, window_bounds = array<i64: 1, 16>}, {pipeline_mode = #tpu.pipeline_mode<synchronous>, transform_indices = @transform_11, window_bounds = array<i64: 2, 16, 16>}, {pipeline_mode = #tpu.pipeline_mode<synchronous>, transform_indices = @transform_12, window_bounds = array<i64: 1, 16>}, {pipeline_mode = #tpu.pipeline_mode<synchronous>, transform_indices = @transform_13, window_bounds = array<i64: 2, 16, 16>}, {pipeline_mode = #tpu.pipeline_mode<synchronous>, transform_indices = @transform_14, window_bounds = array<i64: 1, 16>}, {transform_indices = @transform_15, window_bounds = array<i64: 32, 8, 16>}]} {
    %c0 = arith.constant 0 : index
    %c0_0 = arith.constant 0 : index
    %c0_1 = arith.constant 0 : index
    %0 = vector.load %arg1[%c0, %c0_0, %c0_1] : memref<32x8x8xf32, #tpu.memory_space<vmem>>, vector<32x8x8xf32>
    %1 = vector.shape_cast %0 : vector<32x8x8xf32> to vector<256x8xf32>
    %c0_2 = arith.constant 0 : index
    %c0_3 = arith.constant 0 : index
    %2 = vector.load %arg6[%c0_2, %c0_3] : memref<8x16xf32, #tpu.memory_space<vmem>>, vector<8x16xf32>
    %cst = arith.constant dense<0.000000e+00> : vector<256x16xf32>
    %3 = tpu.matmul %1, %2, %cst {dimension_numbers = #tpu.dot_dimension_numbers<[1], [0], [0], [1], [0, 0, 1, 1], [], []>} : vector<256x8xf32>, vector<8x16xf32>, vector<256x16xf32> -> vector<256x16xf32>
    %c0_4 = arith.constant 0 : index
    %c0_5 = arith.constant 0 : index
    %4 = vector.load %arg7[%c0_4, %c0_5] : memref<1x16xf32, #tpu.memory_space<vmem>>, vector<1x16xf32>
    %5 = vector.broadcast %4 : vector<1x16xf32> to vector<256x16xf32>
    %6 = arith.addf %3, %5 : vector<256x16xf32>
    %cst_6 = arith.constant 0.000000e+00 : f32
    %7 = vector.broadcast %cst_6 : f32 to vector<256x16xf32>
    %cst_7 = arith.constant 0.000000e+00 : f32
    %8 = vector.broadcast %cst_7 : f32 to vector<8x8xf32>
    %9 = vector.extract_strided_slice %1 {offsets = [0, 0], sizes = [248, 8], strides = [1, 1]} : vector<256x8xf32> to vector<248x8xf32>
    %10 = tpu.concatenate %8, %9 in 0 : vector<8x8xf32>, vector<248x8xf32> -> vector<256x8xf32>
    %c0_8 = arith.constant 0 : index
    %c0_9 = arith.constant 0 : index
    %c0_10 = arith.constant 0 : index
    %11 = vector.load %arg2[%c0_8, %c0_9, %c0_10] : memref<2x8x16xf32, #tpu.memory_space<vmem>>, vector<1x8x16xf32>
    %12 = vector.shape_cast %11 : vector<1x8x16xf32> to vector<8x16xf32>
    %cst_11 = arith.constant dense<0.000000e+00> : vector<256x16xf32>
    %13 = tpu.matmul %10, %12, %cst_11 {dimension_numbers = #tpu.dot_dimension_numbers<[1], [0], [0], [1], [0, 0, 1, 1], [], []>} : vector<256x8xf32>, vector<8x16xf32>, vector<256x16xf32> -> vector<256x16xf32>
    %14 = arith.addf %7, %13 : vector<256x16xf32>
    %c1 = arith.constant 1 : index
    %c0_12 = arith.constant 0 : index
    %c0_13 = arith.constant 0 : index
    %15 = vector.load %arg2[%c1, %c0_12, %c0_13] : memref<2x8x16xf32, #tpu.memory_space<vmem>>, vector<1x8x16xf32>
    %16 = vector.shape_cast %15 : vector<1x8x16xf32> to vector<8x16xf32>
    %cst_14 = arith.constant dense<0.000000e+00> : vector<256x16xf32>
    %17 = tpu.matmul %1, %16, %cst_14 {dimension_numbers = #tpu.dot_dimension_numbers<[1], [0], [0], [1], [0, 0, 1, 1], [], []>} : vector<256x8xf32>, vector<8x16xf32>, vector<256x16xf32> -> vector<256x16xf32>
    %18 = arith.addf %14, %17 : vector<256x16xf32>
    %c0_15 = arith.constant 0 : index
    %c0_16 = arith.constant 0 : index
    %19 = vector.load %arg3[%c0_15, %c0_16] : memref<1x16xf32, #tpu.memory_space<vmem>>, vector<1x16xf32>
    %20 = vector.broadcast %19 : vector<1x16xf32> to vector<256x16xf32>
    %21 = arith.addf %18, %20 : vector<256x16xf32>
    %cst_17 = arith.constant 0.000000e+00 : f32
    %22 = vector.broadcast %cst_17 : f32 to vector<256x16xf32>
    %23 = arith.maximumf %21, %22 : vector<256x16xf32>
    %cst_18 = arith.constant 0.000000e+00 : f32
    %24 = vector.broadcast %cst_18 : f32 to vector<256x16xf32>
    %cst_19 = arith.constant 0.000000e+00 : f32
    %25 = vector.broadcast %cst_19 : f32 to vector<8x16xf32>
    %26 = vector.extract_strided_slice %23 {offsets = [0, 0], sizes = [248, 16], strides = [1, 1]} : vector<256x16xf32> to vector<248x16xf32>
    %27 = tpu.concatenate %25, %26 in 0 : vector<8x16xf32>, vector<248x16xf32> -> vector<256x16xf32>
    %c0_20 = arith.constant 0 : index
    %c0_21 = arith.constant 0 : index
    %c0_22 = arith.constant 0 : index
    %28 = vector.load %arg4[%c0_20, %c0_21, %c0_22] : memref<2x16x16xf32, #tpu.memory_space<vmem>>, vector<1x16x16xf32>
    %29 = vector.shape_cast %28 : vector<1x16x16xf32> to vector<16x16xf32>
    %cst_23 = arith.constant dense<0.000000e+00> : vector<256x16xf32>
    %30 = tpu.matmul %27, %29, %cst_23 {dimension_numbers = #tpu.dot_dimension_numbers<[1], [0], [0], [1], [0, 0, 1, 1], [], []>} : vector<256x16xf32>, vector<16x16xf32>, vector<256x16xf32> -> vector<256x16xf32>
    %31 = arith.addf %24, %30 : vector<256x16xf32>
    %c1_24 = arith.constant 1 : index
    %c0_25 = arith.constant 0 : index
    %c0_26 = arith.constant 0 : index
    %32 = vector.load %arg4[%c1_24, %c0_25, %c0_26] : memref<2x16x16xf32, #tpu.memory_space<vmem>>, vector<1x16x16xf32>
    %33 = vector.shape_cast %32 : vector<1x16x16xf32> to vector<16x16xf32>
    %cst_27 = arith.constant dense<0.000000e+00> : vector<256x16xf32>
    %34 = tpu.matmul %23, %33, %cst_27 {dimension_numbers = #tpu.dot_dimension_numbers<[1], [0], [0], [1], [0, 0, 1, 1], [], []>} : vector<256x16xf32>, vector<16x16xf32>, vector<256x16xf32> -> vector<256x16xf32>
    %35 = arith.addf %31, %34 : vector<256x16xf32>
    %c0_28 = arith.constant 0 : index
    %c0_29 = arith.constant 0 : index
    %36 = vector.load %arg5[%c0_28, %c0_29] : memref<1x16xf32, #tpu.memory_space<vmem>>, vector<1x16xf32>
    %37 = vector.broadcast %36 : vector<1x16xf32> to vector<256x16xf32>
    %38 = arith.addf %35, %37 : vector<256x16xf32>
    %cst_30 = arith.constant 0.000000e+00 : f32
    %39 = vector.broadcast %cst_30 : f32 to vector<256x16xf32>
    %40 = arith.maximumf %38, %39 : vector<256x16xf32>
    %41 = arith.addf %40, %6 : vector<256x16xf32>
    %cst_31 = arith.constant 0.000000e+00 : f32
    %42 = vector.broadcast %cst_31 : f32 to vector<256x16xf32>
    %43 = arith.maximumf %41, %42 : vector<256x16xf32>
    %cst_32 = arith.constant 0.000000e+00 : f32
    %44 = vector.broadcast %cst_32 : f32 to vector<256x16xf32>
    %cst_33 = arith.constant 0.000000e+00 : f32
    %45 = vector.broadcast %cst_33 : f32 to vector<16x16xf32>
    %46 = vector.extract_strided_slice %43 {offsets = [0, 0], sizes = [240, 16], strides = [1, 1]} : vector<256x16xf32> to vector<240x16xf32>
    %47 = tpu.concatenate %45, %46 in 0 : vector<16x16xf32>, vector<240x16xf32> -> vector<256x16xf32>
    %c0_34 = arith.constant 0 : index
    %c0_35 = arith.constant 0 : index
    %c0_36 = arith.constant 0 : index
    %48 = vector.load %arg8[%c0_34, %c0_35, %c0_36] : memref<2x16x16xf32, #tpu.memory_space<vmem>>, vector<1x16x16xf32>
    %49 = vector.shape_cast %48 : vector<1x16x16xf32> to vector<16x16xf32>
    %cst_37 = arith.constant dense<0.000000e+00> : vector<256x16xf32>
    %50 = tpu.matmul %47, %49, %cst_37 {dimension_numbers = #tpu.dot_dimension_numbers<[1], [0], [0], [1], [0, 0, 1, 1], [], []>} : vector<256x16xf32>, vector<16x16xf32>, vector<256x16xf32> -> vector<256x16xf32>
    %51 = arith.addf %44, %50 : vector<256x16xf32>
    %c1_38 = arith.constant 1 : index
    %c0_39 = arith.constant 0 : index
    %c0_40 = arith.constant 0 : index
    %52 = vector.load %arg8[%c1_38, %c0_39, %c0_40] : memref<2x16x16xf32, #tpu.memory_space<vmem>>, vector<1x16x16xf32>
    %53 = vector.shape_cast %52 : vector<1x16x16xf32> to vector<16x16xf32>
    %cst_41 = arith.constant dense<0.000000e+00> : vector<256x16xf32>
    %54 = tpu.matmul %43, %53, %cst_41 {dimension_numbers = #tpu.dot_dimension_numbers<[1], [0], [0], [1], [0, 0, 1, 1], [], []>} : vector<256x16xf32>, vector<16x16xf32>, vector<256x16xf32> -> vector<256x16xf32>
    %55 = arith.addf %51, %54 : vector<256x16xf32>
    %c0_42 = arith.constant 0 : index
    %c0_43 = arith.constant 0 : index
    %56 = vector.load %arg9[%c0_42, %c0_43] : memref<1x16xf32, #tpu.memory_space<vmem>>, vector<1x16xf32>
    %57 = vector.broadcast %56 : vector<1x16xf32> to vector<256x16xf32>
    %58 = arith.addf %55, %57 : vector<256x16xf32>
    %cst_44 = arith.constant 0.000000e+00 : f32
    %59 = vector.broadcast %cst_44 : f32 to vector<256x16xf32>
    %60 = arith.maximumf %58, %59 : vector<256x16xf32>
    %cst_45 = arith.constant 0.000000e+00 : f32
    %61 = vector.broadcast %cst_45 : f32 to vector<256x16xf32>
    %cst_46 = arith.constant 0.000000e+00 : f32
    %62 = vector.broadcast %cst_46 : f32 to vector<16x16xf32>
    %63 = vector.extract_strided_slice %60 {offsets = [0, 0], sizes = [240, 16], strides = [1, 1]} : vector<256x16xf32> to vector<240x16xf32>
    %64 = tpu.concatenate %62, %63 in 0 : vector<16x16xf32>, vector<240x16xf32> -> vector<256x16xf32>
    %c0_47 = arith.constant 0 : index
    %c0_48 = arith.constant 0 : index
    %c0_49 = arith.constant 0 : index
    %65 = vector.load %arg10[%c0_47, %c0_48, %c0_49] : memref<2x16x16xf32, #tpu.memory_space<vmem>>, vector<1x16x16xf32>
    %66 = vector.shape_cast %65 : vector<1x16x16xf32> to vector<16x16xf32>
    %cst_50 = arith.constant dense<0.000000e+00> : vector<256x16xf32>
    %67 = tpu.matmul %64, %66, %cst_50 {dimension_numbers = #tpu.dot_dimension_numbers<[1], [0], [0], [1], [0, 0, 1, 1], [], []>} : vector<256x16xf32>, vector<16x16xf32>, vector<256x16xf32> -> vector<256x16xf32>
    %68 = arith.addf %61, %67 : vector<256x16xf32>
    %c1_51 = arith.constant 1 : index
    %c0_52 = arith.constant 0 : index
    %c0_53 = arith.constant 0 : index
    %69 = vector.load %arg10[%c1_51, %c0_52, %c0_53] : memref<2x16x16xf32, #tpu.memory_space<vmem>>, vector<1x16x16xf32>
    %70 = vector.shape_cast %69 : vector<1x16x16xf32> to vector<16x16xf32>
    %cst_54 = arith.constant dense<0.000000e+00> : vector<256x16xf32>
    %71 = tpu.matmul %60, %70, %cst_54 {dimension_numbers = #tpu.dot_dimension_numbers<[1], [0], [0], [1], [0, 0, 1, 1], [], []>} : vector<256x16xf32>, vector<16x16xf32>, vector<256x16xf32> -> vector<256x16xf32>
    %72 = arith.addf %68, %71 : vector<256x16xf32>
    %c0_55 = arith.constant 0 : index
    %c0_56 = arith.constant 0 : index
    %73 = vector.load %arg11[%c0_55, %c0_56] : memref<1x16xf32, #tpu.memory_space<vmem>>, vector<1x16xf32>
    %74 = vector.broadcast %73 : vector<1x16xf32> to vector<256x16xf32>
    %75 = arith.addf %72, %74 : vector<256x16xf32>
    %cst_57 = arith.constant 0.000000e+00 : f32
    %76 = vector.broadcast %cst_57 : f32 to vector<256x16xf32>
    %77 = arith.maximumf %75, %76 : vector<256x16xf32>
    %78 = arith.addf %77, %43 : vector<256x16xf32>
    %cst_58 = arith.constant 0.000000e+00 : f32
    %79 = vector.broadcast %cst_58 : f32 to vector<256x16xf32>
    %80 = arith.maximumf %78, %79 : vector<256x16xf32>
    %cst_59 = arith.constant 0.000000e+00 : f32
    %81 = vector.broadcast %cst_59 : f32 to vector<256x16xf32>
    %cst_60 = arith.constant 0.000000e+00 : f32
    %82 = vector.broadcast %cst_60 : f32 to vector<32x16xf32>
    %83 = vector.extract_strided_slice %80 {offsets = [0, 0], sizes = [224, 16], strides = [1, 1]} : vector<256x16xf32> to vector<224x16xf32>
    %84 = tpu.concatenate %82, %83 in 0 : vector<32x16xf32>, vector<224x16xf32> -> vector<256x16xf32>
    %c0_61 = arith.constant 0 : index
    %c0_62 = arith.constant 0 : index
    %c0_63 = arith.constant 0 : index
    %85 = vector.load %arg12[%c0_61, %c0_62, %c0_63] : memref<2x16x16xf32, #tpu.memory_space<vmem>>, vector<1x16x16xf32>
    %86 = vector.shape_cast %85 : vector<1x16x16xf32> to vector<16x16xf32>
    %cst_64 = arith.constant dense<0.000000e+00> : vector<256x16xf32>
    %87 = tpu.matmul %84, %86, %cst_64 {dimension_numbers = #tpu.dot_dimension_numbers<[1], [0], [0], [1], [0, 0, 1, 1], [], []>} : vector<256x16xf32>, vector<16x16xf32>, vector<256x16xf32> -> vector<256x16xf32>
    %88 = arith.addf %81, %87 : vector<256x16xf32>
    %c1_65 = arith.constant 1 : index
    %c0_66 = arith.constant 0 : index
    %c0_67 = arith.constant 0 : index
    %89 = vector.load %arg12[%c1_65, %c0_66, %c0_67] : memref<2x16x16xf32, #tpu.memory_space<vmem>>, vector<1x16x16xf32>
    %90 = vector.shape_cast %89 : vector<1x16x16xf32> to vector<16x16xf32>
    %cst_68 = arith.constant dense<0.000000e+00> : vector<256x16xf32>
    %91 = tpu.matmul %80, %90, %cst_68 {dimension_numbers = #tpu.dot_dimension_numbers<[1], [0], [0], [1], [0, 0, 1, 1], [], []>} : vector<256x16xf32>, vector<16x16xf32>, vector<256x16xf32> -> vector<256x16xf32>
    %92 = arith.addf %88, %91 : vector<256x16xf32>
    %c0_69 = arith.constant 0 : index
    %c0_70 = arith.constant 0 : index
    %93 = vector.load %arg13[%c0_69, %c0_70] : memref<1x16xf32, #tpu.memory_space<vmem>>, vector<1x16xf32>
    %94 = vector.broadcast %93 : vector<1x16xf32> to vector<256x16xf32>
    %95 = arith.addf %92, %94 : vector<256x16xf32>
    %cst_71 = arith.constant 0.000000e+00 : f32
    %96 = vector.broadcast %cst_71 : f32 to vector<256x16xf32>
    %97 = arith.maximumf %95, %96 : vector<256x16xf32>
    %cst_72 = arith.constant 0.000000e+00 : f32
    %98 = vector.broadcast %cst_72 : f32 to vector<256x16xf32>
    %cst_73 = arith.constant 0.000000e+00 : f32
    %99 = vector.broadcast %cst_73 : f32 to vector<32x16xf32>
    %100 = vector.extract_strided_slice %97 {offsets = [0, 0], sizes = [224, 16], strides = [1, 1]} : vector<256x16xf32> to vector<224x16xf32>
    %101 = tpu.concatenate %99, %100 in 0 : vector<32x16xf32>, vector<224x16xf32> -> vector<256x16xf32>
    %c0_74 = arith.constant 0 : index
    %c0_75 = arith.constant 0 : index
    %c0_76 = arith.constant 0 : index
    %102 = vector.load %arg14[%c0_74, %c0_75, %c0_76] : memref<2x16x16xf32, #tpu.memory_space<vmem>>, vector<1x16x16xf32>
    %103 = vector.shape_cast %102 : vector<1x16x16xf32> to vector<16x16xf32>
    %cst_77 = arith.constant dense<0.000000e+00> : vector<256x16xf32>
    %104 = tpu.matmul %101, %103, %cst_77 {dimension_numbers = #tpu.dot_dimension_numbers<[1], [0], [0], [1], [0, 0, 1, 1], [], []>} : vector<256x16xf32>, vector<16x16xf32>, vector<256x16xf32> -> vector<256x16xf32>
    %105 = arith.addf %98, %104 : vector<256x16xf32>
    %c1_78 = arith.constant 1 : index
    %c0_79 = arith.constant 0 : index
    %c0_80 = arith.constant 0 : index
    %106 = vector.load %arg14[%c1_78, %c0_79, %c0_80] : memref<2x16x16xf32, #tpu.memory_space<vmem>>, vector<1x16x16xf32>
    %107 = vector.shape_cast %106 : vector<1x16x16xf32> to vector<16x16xf32>
    %cst_81 = arith.constant dense<0.000000e+00> : vector<256x16xf32>
    %108 = tpu.matmul %97, %107, %cst_81 {dimension_numbers = #tpu.dot_dimension_numbers<[1], [0], [0], [1], [0, 0, 1, 1], [], []>} : vector<256x16xf32>, vector<16x16xf32>, vector<256x16xf32> -> vector<256x16xf32>
    %109 = arith.addf %105, %108 : vector<256x16xf32>
    %c0_82 = arith.constant 0 : index
    %c0_83 = arith.constant 0 : index
    %110 = vector.load %arg15[%c0_82, %c0_83] : memref<1x16xf32, #tpu.memory_space<vmem>>, vector<1x16xf32>
    %111 = vector.broadcast %110 : vector<1x16xf32> to vector<256x16xf32>
    %112 = arith.addf %109, %111 : vector<256x16xf32>
    %cst_84 = arith.constant 0.000000e+00 : f32
    %113 = vector.broadcast %cst_84 : f32 to vector<256x16xf32>
    %114 = arith.maximumf %112, %113 : vector<256x16xf32>
    %115 = arith.addf %114, %80 : vector<256x16xf32>
    %cst_85 = arith.constant 0.000000e+00 : f32
    %116 = vector.broadcast %cst_85 : f32 to vector<256x16xf32>
    %117 = arith.maximumf %115, %116 : vector<256x16xf32>
    %118 = vector.shape_cast %117 : vector<256x16xf32> to vector<32x8x16xf32>
    %c0_86 = arith.constant 0 : index
    %c0_87 = arith.constant 0 : index
    %c0_88 = arith.constant 0 : index
    %119 = vector.load %arg16[%c0_86, %c0_87, %c0_88] : memref<32x8x16xf32, #tpu.memory_space<vmem>>, vector<32x8x16xf32>
    tpu.vector_store %arg16[%c0_86, %c0_87, %c0_88], %118 {strides = array<i32>} : memref<32x8x16xf32, #tpu.memory_space<vmem>>, vector<32x8x16xf32>,
    return
  }
  func.func @transform_0(%arg0: i32) -> (i32, i32, i32) {
    %c0_i32 = arith.constant 0 : i32
    %c0_i32_0 = arith.constant 0 : i32
    %c0_i32_1 = arith.constant 0 : i32
    return %c0_i32, %arg0, %c0_i32_0 : i32, i32, i32
  }
  func.func @transform_1(%arg0: i32) -> (i32, i32, i32) {
    %c0_i32 = arith.constant 0 : i32
    %c0_i32_0 = arith.constant 0 : i32
    %c0_i32_1 = arith.constant 0 : i32
    %c0_i32_2 = arith.constant 0 : i32
    return %c0_i32, %c0_i32_0, %c0_i32_1 : i32, i32, i32
  }
  func.func @transform_2(%arg0: i32) -> (i32, i32) {
    %c0_i32 = arith.constant 0 : i32
    %c0_i32_0 = arith.constant 0 : i32
    %c0_i32_1 = arith.constant 0 : i32
    return %c0_i32, %c0_i32_0 : i32, i32
  }
  func.func @transform_3(%arg0: i32) -> (i32, i32, i32) {
    %c0_i32 = arith.constant 0 : i32
    %c0_i32_0 = arith.constant 0 : i32
    %c0_i32_1 = arith.constant 0 : i32
    %c0_i32_2 = arith.constant 0 : i32
    return %c0_i32, %c0_i32_0, %c0_i32_1 : i32, i32, i32
  }
  func.func @transform_4(%arg0: i32) -> (i32, i32) {
    %c0_i32 = arith.constant 0 : i32
    %c0_i32_0 = arith.constant 0 : i32
    %c0_i32_1 = arith.constant 0 : i32
    return %c0_i32, %c0_i32_0 : i32, i32
  }
  func.func @transform_5(%arg0: i32) -> (i32, i32) {
    %c0_i32 = arith.constant 0 : i32
    %c0_i32_0 = arith.constant 0 : i32
    %c0_i32_1 = arith.constant 0 : i32
    return %c0_i32, %c0_i32_0 : i32, i32
  }
  func.func @transform_6(%arg0: i32) -> (i32, i32) {
    %c0_i32 = arith.constant 0 : i32
    %c0_i32_0 = arith.constant 0 : i32
    %c0_i32_1 = arith.constant 0 : i32
    return %c0_i32, %c0_i32_0 : i32, i32
  }
  func.func @transform_7(%arg0: i32) -> (i32, i32, i32) {
    %c0_i32 = arith.constant 0 : i32
    %c0_i32_0 = arith.constant 0 : i32
    %c0_i32_1 = arith.constant 0 : i32
    %c0_i32_2 = arith.constant 0 : i32
    return %c0_i32, %c0_i32_0, %c0_i32_1 : i32, i32, i32
  }
  func.func @transform_8(%arg0: i32) -> (i32, i32) {
    %c0_i32 = arith.constant 0 : i32
    %c0_i32_0 = arith.constant 0 : i32
    %c0_i32_1 = arith.constant 0 : i32
    return %c0_i32, %c0_i32_0 : i32, i32
  }
  func.func @transform_9(%arg0: i32) -> (i32, i32, i32) {
    %c0_i32 = arith.constant 0 : i32
    %c0_i32_0 = arith.constant 0 : i32
    %c0_i32_1 = arith.constant 0 : i32
    %c0_i32_2 = arith.constant 0 : i32
    return %c0_i32, %c0_i32_0, %c0_i32_1 : i32, i32, i32
  }
  func.func @transform_10(%arg0: i32) -> (i32, i32) {
    %c0_i32 = arith.constant 0 : i32
    %c0_i32_0 = arith.constant 0 : i32
    %c0_i32_1 = arith.constant 0 : i32
    return %c0_i32, %c0_i32_0 : i32, i32
  }
  func.func @transform_11(%arg0: i32) -> (i32, i32, i32) {
    %c0_i32 = arith.constant 0 : i32
    %c0_i32_0 = arith.constant 0 : i32
    %c0_i32_1 = arith.constant 0 : i32
    %c0_i32_2 = arith.constant 0 : i32
    return %c0_i32, %c0_i32_0, %c0_i32_1 : i32, i32, i32
  }
  func.func @transform_12(%arg0: i32) -> (i32, i32) {
    %c0_i32 = arith.constant 0 : i32
    %c0_i32_0 = arith.constant 0 : i32
    %c0_i32_1 = arith.constant 0 : i32
    return %c0_i32, %c0_i32_0 : i32, i32
  }
  func.func @transform_13(%arg0: i32) -> (i32, i32, i32) {
    %c0_i32 = arith.constant 0 : i32
    %c0_i32_0 = arith.constant 0 : i32
    %c0_i32_1 = arith.constant 0 : i32
    %c0_i32_2 = arith.constant 0 : i32
    return %c0_i32, %c0_i32_0, %c0_i32_1 : i32, i32, i32
  }
  func.func @transform_14(%arg0: i32) -> (i32, i32) {
    %c0_i32 = arith.constant 0 : i32
    %c0_i32_0 = arith.constant 0 : i32
    %c0_i32_1 = arith.constant 0 : i32
    return %c0_i32, %c0_i32_0 : i32, i32
  }
  func.func @transform_15(%arg0: i32) -> (i32, i32, i32) {
    %c0_i32 = arith.constant 0 : i32
    %c0_i32_0 = arith.constant 0 : i32
    %c0_i32_1 = arith.constant 0 : i32
    return %c0_i32, %arg0, %c0_i32_0 : i32, i32, i32
  }
}

</mosaic_0001>

<llo_original>
// kernel: tpu_custom_call.1
$region0: #{tpu_custom_call.1}
  #allocation0 [shape = 'u32[]', space=smem, size = 0x4, offset = 0x4, fixed_abs, tag = 'smem constant byte address 0x4 - core index']
  #allocation1 [shape = 'u32[144,128]{1,0:T(1,128)}', space=vmem, size = 0x12000, scoped, tag = 'internal scratch']
  %s0 = inlined_call_operand.vmem [shape: f32[32,8,8], index: 0, kind: input, shape index: {}]
  %s1 = inlined_call_operand.vmem [shape: f32[2,8,16], index: 1, kind: input, shape index: {}]
  %s2 = inlined_call_operand.vmem [shape: f32[1,16], index: 2, kind: input, shape index: {}]
  %s3 = inlined_call_operand.vmem [shape: f32[2,16,16], index: 3, kind: input, shape index: {}]
  %s4 = inlined_call_operand.vmem [shape: f32[1,16], index: 4, kind: input, shape index: {}]
  %s5 = inlined_call_operand.vmem [shape: f32[8,16], index: 5, kind: input, shape index: {}]
  %s6 = inlined_call_operand.vmem [shape: f32[1,16], index: 6, kind: input, shape index: {}]
  %s7 = inlined_call_operand.vmem [shape: f32[2,16,16], index: 7, kind: input, shape index: {}]
  %s8 = inlined_call_operand.vmem [shape: f32[1,16], index: 8, kind: input, shape index: {}]
  %s9 = inlined_call_operand.vmem [shape: f32[2,16,16], index: 9, kind: input, shape index: {}]
  %s10 = inlined_call_operand.vmem [shape: f32[1,16], index: 10, kind: input, shape index: {}]
  %s11 = inlined_call_operand.vmem [shape: f32[2,16,16], index: 11, kind: input, shape index: {}]
  %s12 = inlined_call_operand.vmem [shape: f32[1,16], index: 12, kind: input, shape index: {}]
  %s13 = inlined_call_operand.vmem [shape: f32[2,16,16], index: 13, kind: input, shape index: {}]
  %s14 = inlined_call_operand.vmem [shape: f32[1,16], index: 14, kind: input, shape index: {}]
  %s15 = inlined_call_operand.vmem [shape: f32[32,8,16], index: 15, kind: output, shape index: {}]
  %s16 = sld [smem:[#allocation0]]
  $region70: #{tpu_custom_call.1} parent=0
    _
  %s18 = ssub.s32 1, %s16
  %s19 = scalar_select 0, %s18, %s16
  // Predicated region
  $region2: #{tpu_custom_call.1} parent=0 // pred_check
    _
  $region3: #{tpu_custom_call.1} parent=0 // pred_check_branch
    %21 = sbr.rel (0) target = $region5
  $region4: #{tpu_custom_call.1} parent=0 // pred_region
    _
  $region5: #{tpu_custom_call.1} parent=0 // pred_fallthru
    _
  // Predicated region
  $region6: #{tpu_custom_call.1} parent=0 // pred_check
    _
  $region7: #{tpu_custom_call.1} parent=0 // pred_check_branch
    %23 = sbr.rel (0) target = $region9
  $region8: #{tpu_custom_call.1} parent=0 // pred_region
    _
  $region9: #{tpu_custom_call.1} parent=0 // pred_fallthru
    _
  // Predicated region
  $region10: #{tpu_custom_call.1} parent=0 // pred_check
    _
  $region11: #{tpu_custom_call.1} parent=0 // pred_check_branch
    %25 = sbr.rel (0) target = $region13
  $region12: #{tpu_custom_call.1} parent=0 // pred_region
    _
  $region13: #{tpu_custom_call.1} parent=0 // pred_fallthru
    _
  // Predicated region
  $region14: #{tpu_custom_call.1} parent=0 // pred_check
    _
  $region15: #{tpu_custom_call.1} parent=0 // pred_check_branch
    %27 = sbr.rel (0) target = $region17
  $region16: #{tpu_custom_call.1} parent=0 // pred_region
    _
  $region17: #{tpu_custom_call.1} parent=0 // pred_fallthru
    _
  // Predicated region
  $region18: #{tpu_custom_call.1} parent=0 // pred_check
    _
  $region19: #{tpu_custom_call.1} parent=0 // pred_check_branch
    %29 = sbr.rel (0) target = $region21
  $region20: #{tpu_custom_call.1} parent=0 // pred_region
    _
  $region21: #{tpu_custom_call.1} parent=0 // pred_fallthru
    _
  // Predicated region
  $region22: #{tpu_custom_call.1} parent=0 // pred_check
    _
  $region23: #{tpu_custom_call.1} parent=0 // pred_check_branch
    %31 = sbr.rel (0) target = $region25
  $region24: #{tpu_custom_call.1} parent=0 // pred_region
    _
  $region25: #{tpu_custom_call.1} parent=0 // pred_fallthru
    _
  // Predicated region
  $region26: #{tpu_custom_call.1} parent=0 // pred_check
    _
  $region27: #{tpu_custom_call.1} parent=0 // pred_check_branch
    %33 = sbr.rel (0) target = $region29
  $region28: #{tpu_custom_call.1} parent=0 // pred_region
    _
  $region29: #{tpu_custom_call.1} parent=0 // pred_fallthru
    _
  // Predicated region
  $region30: #{tpu_custom_call.1} parent=0 // pred_check
    _
  $region31: #{tpu_custom_call.1} parent=0 // pred_check_branch
    %35 = sbr.rel (0) target = $region33
  $region32: #{tpu_custom_call.1} parent=0 // pred_region
    _
  $region33: #{tpu_custom_call.1} parent=0 // pred_fallthru
    _
  // Predicated region
  $region34: #{tpu_custom_call.1} parent=0 // pred_check
    _
  $region35: #{tpu_custom_call.1} parent=0 // pred_check_branch
    %37 = sbr.rel (0) target = $region37
  $region36: #{tpu_custom_call.1} parent=0 // pred_region
    _
  $region37: #{tpu_custom_call.1} parent=0 // pred_fallthru
    _
  // Predicated region
  $region38: #{tpu_custom_call.1} parent=0 // pred_check
    _
  $region39: #{tpu_custom_call.1} parent=0 // pred_check_branch
    %39 = sbr.rel (0) target = $region41
  $region40: #{tpu_custom_call.1} parent=0 // pred_region
    _
  $region41: #{tpu_custom_call.1} parent=0 // pred_fallthru
    _
  // Predicated region
  $region42: #{tpu_custom_call.1} parent=0 // pred_check
    _
  $region43: #{tpu_custom_call.1} parent=0 // pred_check_branch
    %41 = sbr.rel (0) target = $region45
  $region44: #{tpu_custom_call.1} parent=0 // pred_region
    _
  $region45: #{tpu_custom_call.1} parent=0 // pred_fallthru
    _
  // Predicated region
  $region46: #{tpu_custom_call.1} parent=0 // pred_check
    _
  $region47: #{tpu_custom_call.1} parent=0 // pred_check_branch
    %43 = sbr.rel (0) target = $region49
  $region48: #{tpu_custom_call.1} parent=0 // pred_region
    _
  $region49: #{tpu_custom_call.1} parent=0 // pred_fallthru
    _
  // Predicated region
  $region50: #{tpu_custom_call.1} parent=0 // pred_check
    _
  $region51: #{tpu_custom_call.1} parent=0 // pred_check_branch
    %45 = sbr.rel (0) target = $region53
  $region52: #{tpu_custom_call.1} parent=0 // pred_region
    _
  $region53: #{tpu_custom_call.1} parent=0 // pred_fallthru
    _
  // Predicated region
  $region54: #{tpu_custom_call.1} parent=0 // pred_check
    _
  $region55: #{tpu_custom_call.1} parent=0 // pred_check_branch
    %47 = sbr.rel (0) target = $region57
  $region56: #{tpu_custom_call.1} parent=0 // pred_region
    _
  $region57: #{tpu_custom_call.1} parent=0 // pred_fallthru
    _
  // Predicated region
  $region58: #{tpu_custom_call.1} parent=0 // pred_check
    _
  $region59: #{tpu_custom_call.1} parent=0 // pred_check_branch
    %49 = sbr.rel (0) target = $region61
  $region60: #{tpu_custom_call.1} parent=0 // pred_region
    _
  $region61: #{tpu_custom_call.1} parent=0 // pred_fallthru
    _
  %v50 = vld [vmem:[%s0] sm:$0xff]
  %v51 = vld [vmem:[%s0 + $0x8] sm:$0xff]
  %v52 = vld [vmem:[%s0 + $0x10] sm:$0xff]
  %v53 = vld [vmem:[%s0 + $0x18] sm:$0xff]
  %v54 = vld [vmem:[%s0 + $0x20] sm:$0xff]
  %v55 = vld [vmem:[%s0 + $0x28] sm:$0xff]
  %v56 = vld [vmem:[%s0 + $0x30] sm:$0xff]
  %v57 = vld [vmem:[%s0 + $0x38] sm:$0xff]
  %v58 = vld [vmem:[%s0 + $0x40] sm:$0xff]
  %v59 = vld [vmem:[%s0 + $0x48] sm:$0xff]
  %v60 = vld [vmem:[%s0 + $0x50] sm:$0xff]
  %v61 = vld [vmem:[%s0 + $0x58] sm:$0xff]
  %v62 = vld [vmem:[%s0 + $0x60] sm:$0xff]
  %v63 = vld [vmem:[%s0 + $0x68] sm:$0xff]
  %v64 = vld [vmem:[%s0 + $0x70] sm:$0xff]
  %v65 = vld [vmem:[%s0 + $0x78] sm:$0xff]
  %v66 = vld [vmem:[%s0 + $0x80] sm:$0xff]
  %v67 = vld [vmem:[%s0 + $0x88] sm:$0xff]
  %v68 = vld [vmem:[%s0 + $0x90] sm:$0xff]
  %v69 = vld [vmem:[%s0 + $0x98] sm:$0xff]
  %v70 = vld [vmem:[%s0 + $0xa0] sm:$0xff]
  %v71 = vld [vmem:[%s0 + $0xa8] sm:$0xff]
  %v72 = vld [vmem:[%s0 + $0xb0] sm:$0xff]
  %v73 = vld [vmem:[%s0 + $0xb8] sm:$0xff]
  %v74 = vld [vmem:[%s0 + $0xc0] sm:$0xff]
  %v75 = vld [vmem:[%s0 + $0xc8] sm:$0xff]
  %v76 = vld [vmem:[%s0 + $0xd0] sm:$0xff]
  %v77 = vld [vmem:[%s0 + $0xd8] sm:$0xff]
  %v78 = vld [vmem:[%s0 + $0xe0] sm:$0xff]
  %v79 = vld [vmem:[%s0 + $0xe8] sm:$0xff]
  %v80 = vld [vmem:[%s0 + $0xf0] sm:$0xff]
  %v81 = vld [vmem:[%s0 + $0xf8] sm:$0xff]
  %v82 = vld [vmem:[%s5] sm:$0xff]
  %v83 = vld [vmem:[%s6] sm:$0x1]
  %v85 = vlaneseq
  %v86 = vshrl.u32 %v85, 7
  %v87 = vsub.s32 0, %v86
  %v88 = vrot.slane %v83, %v87
  %vm90 = vcmask 64512
  %v92 = vsel %vm90, %v50, 0
  %v95 = vsel %vm90, %v51, 0
  %v98 = vsel %vm90, %v52, 0
  %v101 = vsel %vm90, %v53, 0
  %v104 = vsel %vm90, %v54, 0
  %v107 = vsel %vm90, %v55, 0
  %v110 = vsel %vm90, %v56, 0
  %v113 = vsel %vm90, %v57, 0
  %v116 = vsel %vm90, %v58, 0
  %v119 = vsel %vm90, %v59, 0
  %v122 = vsel %vm90, %v60, 0
  %v125 = vsel %vm90, %v61, 0
  %v128 = vsel %vm90, %v62, 0
  %v131 = vsel %vm90, %v63, 0
  %v134 = vsel %vm90, %v64, 0
  %v137 = vsel %vm90, %v65, 0
  %v140 = vsel %vm90, %v66, 0
  %v143 = vsel %vm90, %v67, 0
  %v146 = vsel %vm90, %v68, 0
  %v149 = vsel %vm90, %v69, 0
  %v152 = vsel %vm90, %v70, 0
  %v155 = vsel %vm90, %v71, 0
  %v158 = vsel %vm90, %v72, 0
  %v161 = vsel %vm90, %v73, 0
  %v164 = vsel %vm90, %v74, 0
  %v167 = vsel %vm90, %v75, 0
  %v170 = vsel %vm90, %v76, 0
  %v173 = vsel %vm90, %v77, 0
  %v176 = vsel %vm90, %v78, 0
  %v179 = vsel %vm90, %v79, 0
  %v182 = vsel %vm90, %v80, 0
  %v185 = vsel %vm90, %v81, 0
  %187 = vmatprep.subr.mxu0 0.0
  %188 = vmatpush1.msra.mxu0 %v82
  %189 = vmatprep.subr.mxu0 0.0
  %190 = vmatpush1.msra.mxu0 0.0
  %191 = vmatprep.subr.mxu0 0.0
  %192 = vmatpush1.msra.mxu0 0.0
  %193 = vmatprep.subr.mxu0 0.0
  %194 = vmatpush1.msra.mxu0 0.0
  %195 = vmatprep.subr.mxu0 0.0
  %196 = vmatpush1.msra.mxu0 0.0
  %197 = vmatprep.subr.mxu0 0.0
  %198 = vmatpush1.msra.mxu0 0.0
  %199 = vmatprep.subr.mxu0 0.0
  %200 = vmatpush1.msra.mxu0 0.0
  %201 = vmatprep.subr.mxu0 0.0
  %202 = vmatpush1.msra.mxu0 0.0
  %203 = vmatprep.subr.mxu0 0.0
  %204 = vmatpush1.msra.mxu0 0.0
  %205 = vmatprep.subr.mxu0 0.0
  %206 = vmatpush1.msra.mxu0 0.0
  %207 = vmatprep.subr.mxu0 0.0
  %208 = vmatpush1.msra.mxu0 0.0
  %209 = vmatprep.subr.mxu0 0.0
  %210 = vmatpush1.msra.mxu0 0.0
  %211 = vmatprep.subr.mxu0 0.0
  %212 = vmatpush1.msra.mxu0 0.0
  %213 = vmatprep.subr.mxu0 0.0
  %214 = vmatpush1.msra.mxu0 0.0
  %215 = vmatprep.subr.mxu0 0.0
  %216 = vmatpush1.msra.mxu0 0.0
  %217 = vmatprep.subr.mxu0 0.0
  %218 = vmatpush1.msra.mxu0 0.0
  %219 = vmatprep.subr.mxu0 0.0
  %220 = vmatpush1.msra.mxu0 0.0
  %221 = vmatprep.subr.mxu0 0.0
  %222 = vmatpush1.msra.mxu0 0.0
  %223 = vmatprep.subr.mxu0 0.0
  %224 = vmatpush1.msra.mxu0 0.0
  %225 = vmatprep.subr.mxu0 0.0
  %226 = vmatpush1.msra.mxu0 0.0
  %227 = vmatprep.subr.mxu0 0.0
  %228 = vmatpush1.msra.mxu0 0.0
  %229 = vmatprep.subr.mxu0 0.0
  %230 = vmatpush1.msra.mxu0 0.0
  %231 = vmatprep.subr.mxu0 0.0
  %232 = vmatpush1.msra.mxu0 0.0
  %233 = vmatprep.subr.mxu0 0.0
  %234 = vmatpush1.msra.mxu0 0.0
  %235 = vmatprep.subr.mxu0 0.0
  %236 = vmatpush1.msra.mxu0 0.0
  %237 = vmatprep.subr.mxu0 0.0
  %238 = vmatpush1.msra.mxu0 0.0
  %239 = vmatprep.subr.mxu0 0.0
  %240 = vmatpush1.msra.mxu0 0.0
  %241 = vmatprep.subr.mxu0 0.0
  %242 = vmatpush1.msra.mxu0 0.0
  %243 = vmatprep.subr.mxu0 0.0
  %244 = vmatpush1.msra.mxu0 0.0
  %245 = vmatprep.subr.mxu0 0.0
  %246 = vmatpush1.msra.mxu0 0.0
  %247 = vmatprep.subr.mxu0 0.0
  %248 = vmatpush1.msra.mxu0 0.0
  %249 = vmatprep.subr.mxu0 0.0
  %250 = vmatpush1.msra.mxu0 0.0
  %251 = vmatprep.mubr.f32.mxu0 0.0
  %252 = vmatmul.mubr.f32.gmra.mrb[0].mxu0 %v92
  %v253 = vpop.f32.mrb[0].mxu0
  %v254 = vadd.f32 %v88, %v253
  %v255 = vpop.f32.mrb[0].mxu0
  %256 = vmatprep.mubr.f32.mxu0 0.0
  %257 = vmatmul.mubr.f32.gmra.mrb[0].mxu0 %v95
  %v258 = vpop.f32.mrb[0].mxu0
  %v259 = vadd.f32 %v88, %v258
  %v260 = vpop.f32.mrb[0].mxu0
  %261 = vmatprep.mubr.f32.mxu0 0.0
  %262 = vmatmul.mubr.f32.gmra.mrb[0].mxu0 %v98
  %v263 = vpop.f32.mrb[0].mxu0
  %v264 = vadd.f32 %v88, %v263
  %v265 = vpop.f32.mrb[0].mxu0
  %266 = vmatprep.mubr.f32.mxu0 0.0
  %267 = vmatmul.mubr.f32.gmra.mrb[0].mxu0 %v101
  %v268 = vpop.f32.mrb[0].mxu0
  %v269 = vadd.f32 %v88, %v268
  %v270 = vpop.f32.mrb[0].mxu0
  %271 = vmatprep.mubr.f32.mxu0 0.0
  %272 = vmatmul.mubr.f32.gmra.mrb[0].mxu0 %v104
  %v273 = vpop.f32.mrb[0].mxu0
  %v274 = vadd.f32 %v88, %v273
  %v275 = vpop.f32.mrb[0].mxu0
  %276 = vmatprep.mubr.f32.mxu0 0.0
  %277 = vmatmul.mubr.f32.gmra.mrb[0].mxu0 %v107
  %v278 = vpop.f32.mrb[0].mxu0
  %v279 = vadd.f32 %v88, %v278
  %v280 = vpop.f32.mrb[0].mxu0
  %281 = vmatprep.mubr.f32.mxu0 0.0
  %282 = vmatmul.mubr.f32.gmra.mrb[0].mxu0 %v110
  %v283 = vpop.f32.mrb[0].mxu0
  %v284 = vadd.f32 %v88, %v283
  %v285 = vpop.f32.mrb[0].mxu0
  %286 = vmatprep.mubr.f32.mxu0 0.0
  %287 = vmatmul.mubr.f32.gmra.mrb[0].mxu0 %v113
  %v288 = vpop.f32.mrb[0].mxu0
  %v289 = vadd.f32 %v88, %v288
  %v290 = vpop.f32.mrb[0].mxu0
  %291 = vmatprep.mubr.f32.mxu0 0.0
  %292 = vmatmul.mubr.f32.gmra.mrb[0].mxu0 %v116
  %v293 = vpop.f32.mrb[0].mxu0
  %v294 = vadd.f32 %v88, %v293
  %v295 = vpop.f32.mrb[0].mxu0
  %296 = vmatprep.mubr.f32.mxu0 0.0
  %297 = vmatmul.mubr.f32.gmra.mrb[0].mxu0 %v119
  %v298 = vpop.f32.mrb[0].mxu0
  %v299 = vadd.f32 %v88, %v298
  %v300 = vpop.f32.mrb[0].mxu0
  %301 = vmatprep.mubr.f32.mxu0 0.0
  %302 = vmatmul.mubr.f32.gmra.mrb[0].mxu0 %v122
  %v303 = vpop.f32.mrb[0].mxu0
  %v304 = vadd.f32 %v88, %v303
  %v305 = vpop.f32.mrb[0].mxu0
  %306 = vmatprep.mubr.f32.mxu0 0.0
  %307 = vmatmul.mubr.f32.gmra.mrb[0].mxu0 %v125
  %v308 = vpop.f32.mrb[0].mxu0
  %v309 = vadd.f32 %v88, %v308
  %v310 = vpop.f32.mrb[0].mxu0
  %311 = vmatprep.mubr.f32.mxu0 0.0
  %312 = vmatmul.mubr.f32.gmra.mrb[0].mxu0 %v128
  %v313 = vpop.f32.mrb[0].mxu0
  %v314 = vadd.f32 %v88, %v313
  %v315 = vpop.f32.mrb[0].mxu0
  %316 = vmatprep.mubr.f32.mxu0 0.0
  %317 = vmatmul.mubr.f32.gmra.mrb[0].mxu0 %v131
  %v318 = vpop.f32.mrb[0].mxu0
  %v319 = vadd.f32 %v88, %v318
  %v320 = vpop.f32.mrb[0].mxu0
  %321 = vmatprep.mubr.f32.mxu0 0.0
  %322 = vmatmul.mubr.f32.gmra.mrb[0].mxu0 %v134
  %v323 = vpop.f32.mrb[0].mxu0
  %v324 = vadd.f32 %v88, %v323
  %v325 = vpop.f32.mrb[0].mxu0
  %326 = vmatprep.mubr.f32.mxu0 0.0
  %327 = vmatmul.mubr.f32.gmra.mrb[0].mxu0 %v137
  %v328 = vpop.f32.mrb[0].mxu0
  %v329 = vadd.f32 %v88, %v328
  %v330 = vpop.f32.mrb[0].mxu0
  %331 = vmatprep.mubr.f32.mxu0 0.0
  %332 = vmatmul.mubr.f32.gmra.mrb[0].mxu0 %v140
  %v333 = vpop.f32.mrb[0].mxu0
  %v334 = vadd.f32 %v88, %v333
  %v335 = vpop.f32.mrb[0].mxu0
  %336 = vmatprep.mubr.f32.mxu0 0.0
  %337 = vmatmul.mubr.f32.gmra.mrb[0].mxu0 %v143
  %v338 = vpop.f32.mrb[0].mxu0
  %v339 = vadd.f32 %v88, %v338
  %v340 = vpop.f32.mrb[0].mxu0
  %341 = vmatprep.mubr.f32.mxu0 0.0
  %342 = vmatmul.mubr.f32.gmra.mrb[0].mxu0 %v146
  %v343 = vpop.f32.mrb[0].mxu0
  %v344 = vadd.f32 %v88, %v343
  %v345 = vpop.f32.mrb[0].mxu0
  %346 = vmatprep.mubr.f32.mxu0 0.0
  %347 = vmatmul.mubr.f32.gmra.mrb[0].mxu0 %v149
  %v348 = vpop.f32.mrb[0].mxu0
  %v349 = vadd.f32 %v88, %v348
  %v350 = vpop.f32.mrb[0].mxu0
  %351 = vmatprep.mubr.f32.mxu0 0.0
  %352 = vmatmul.mubr.f32.gmra.mrb[0].mxu0 %v152
  %v353 = vpop.f32.mrb[0].mxu0
  %v354 = vadd.f32 %v88, %v353
  %v355 = vpop.f32.mrb[0].mxu0
  %356 = vmatprep.mubr.f32.mxu0 0.0
  %357 = vmatmul.mubr.f32.gmra.mrb[0].mxu0 %v155
  %v358 = vpop.f32.mrb[0].mxu0
  %v359 = vadd.f32 %v88, %v358
  %v360 = vpop.f32.mrb[0].mxu0
  %361 = vmatprep.mubr.f32.mxu0 0.0
  %362 = vmatmul.mubr.f32.gmra.mrb[0].mxu0 %v158
  %v363 = vpop.f32.mrb[0].mxu0
  %v364 = vadd.f32 %v88, %v363
  %v365 = vpop.f32.mrb[0].mxu0
  %366 = vmatprep.mubr.f32.mxu0 0.0
  %367 = vmatmul.mubr.f32.gmra.mrb[0].mxu0 %v161
  %v368 = vpop.f32.mrb[0].mxu0
  %v369 = vadd.f32 %v88, %v368
  %v370 = vpop.f32.mrb[0].mxu0
  %371 = vmatprep.mubr.f32.mxu0 0.0
  %372 = vmatmul.mubr.f32.gmra.mrb[0].mxu0 %v164
  %v373 = vpop.f32.mrb[0].mxu0
  %v374 = vadd.f32 %v88, %v373
  %v375 = vpop.f32.mrb[0].mxu0
  %376 = vmatprep.mubr.f32.mxu0 0.0
  %377 = vmatmul.mubr.f32.gmra.mrb[0].mxu0 %v167
  %v378 = vpop.f32.mrb[0].mxu0
  %v379 = vadd.f32 %v88, %v378
  %v380 = vpop.f32.mrb[0].mxu0
  %381 = vmatprep.mubr.f32.mxu0 0.0
  %382 = vmatmul.mubr.f32.gmra.mrb[0].mxu0 %v170
  %v383 = vpop.f32.mrb[0].mxu0
  %v384 = vadd.f32 %v88, %v383
  %v385 = vpop.f32.mrb[0].mxu0
  %386 = vmatprep.mubr.f32.mxu0 0.0
  %387 = vmatmul.mubr.f32.gmra.mrb[0].mxu0 %v173
  %v388 = vpop.f32.mrb[0].mxu0
  %v389 = vadd.f32 %v88, %v388
  %v390 = vpop.f32.mrb[0].mxu0
  %391 = vmatprep.mubr.f32.mxu0 0.0
  %392 = vmatmul.mubr.f32.gmra.mrb[0].mxu0 %v176
  %v393 = vpop.f32.mrb[0].mxu0
  %v394 = vadd.f32 %v88, %v393
  %v395 = vpop.f32.mrb[0].mxu0
  %396 = vmatprep.mubr.f32.mxu0 0.0
  %397 = vmatmul.mubr.f32.gmra.mrb[0].mxu0 %v179
  %v398 = vpop.f32.mrb[0].mxu0
  %v399 = vadd.f32 %v88, %v398
  %v400 = vpop.f32.mrb[0].mxu0
  %401 = vmatprep.mubr.f32.mxu0 0.0
  %402 = vmatmul.mubr.f32.gmra.mrb[0].mxu0 %v182
  %v403 = vpop.f32.mrb[0].mxu0
  %v404 = vadd.f32 %v88, %v403
  %v405 = vpop.f32.mrb[0].mxu0
  %406 = vmatprep.mubr.f32.mxu0 0.0
  %407 = vmatmul.mubr.f32.gmra.mrb[0].mxu0 %v185
  %v408 = vpop.f32.mrb[0].mxu0
  %v409 = vadd.f32 %v88, %v408
  %v410 = vpop.f32.mrb[0].mxu0
  %411 = vdwg.mxu0
  %v412 = vld [vmem:[%s1] sm:$0xff]
  %s413 = scalar_lea.vmem %s1, 8
  %v414 = vld [vmem:[%s413] sm:$0xff]
  %415 = vmatprep.subr.mxu0 0.0
  %416 = vmatpush1.msra.mxu0 %v414
  %417 = vmatprep.subr.mxu0 0.0
  %418 = vmatpush1.msra.mxu0 0.0
  %419 = vmatprep.subr.mxu0 0.0
  %420 = vmatpush1.msra.mxu0 0.0
  %421 = vmatprep.subr.mxu0 0.0
  %422 = vmatpush1.msra.mxu0 0.0
  %423 = vmatprep.subr.mxu0 0.0
  %424 = vmatpush1.msra.mxu0 0.0
  %425 = vmatprep.subr.mxu0 0.0
  %426 = vmatpush1.msra.mxu0 0.0
  %427 = vmatprep.subr.mxu0 0.0
  %428 = vmatpush1.msra.mxu0 0.0
  %429 = vmatprep.subr.mxu0 0.0
  %430 = vmatpush1.msra.mxu0 0.0
  %431 = vmatprep.subr.mxu0 0.0
  %432 = vmatpush1.msra.mxu0 0.0
  %433 = vmatprep.subr.mxu0 0.0
  %434 = vmatpush1.msra.mxu0 0.0
  %435 = vmatprep.subr.mxu0 0.0
  %436 = vmatpush1.msra.mxu0 0.0
  %437 = vmatprep.subr.mxu0 0.0
  %438 = vmatpush1.msra.mxu0 0.0
  %439 = vmatprep.subr.mxu0 0.0
  %440 = vmatpush1.msra.mxu0 0.0
  %441 = vmatprep.subr.mxu0 0.0
  %442 = vmatpush1.msra.mxu0 0.0
  %443 = vmatprep.subr.mxu0 0.0
  %444 = vmatpush1.msra.mxu0 0.0
  %445 = vmatprep.subr.mxu0 0.0
  %446 = vmatpush1.msra.mxu0 0.0
  %447 = vmatprep.subr.mxu0 0.0
  %448 = vmatpush1.msra.mxu0 0.0
  %449 = vmatprep.subr.mxu0 0.0
  %450 = vmatpush1.msra.mxu0 0.0
  %451 = vmatprep.subr.mxu0 0.0
  %452 = vmatpush1.msra.mxu0 0.0
  %453 = vmatprep.subr.mxu0 0.0
  %454 = vmatpush1.msra.mxu0 0.0
  %455 = vmatprep.subr.mxu0 0.0
  %456 = vmatpush1.msra.mxu0 0.0
  %457 = vmatprep.subr.mxu0 0.0
  %458 = vmatpush1.msra.mxu0 0.0
  %459 = vmatprep.subr.mxu0 0.0
  %460 = vmatpush1.msra.mxu0 0.0
  %461 = vmatprep.subr.mxu0 0.0
  %462 = vmatpush1.msra.mxu0 0.0
  %463 = vmatprep.subr.mxu0 0.0
  %464 = vmatpush1.msra.mxu0 0.0
  %465 = vmatprep.subr.mxu0 0.0
  %466 = vmatpush1.msra.mxu0 0.0
  %467 = vmatprep.subr.mxu0 0.0
  %468 = vmatpush1.msra.mxu0 0.0
  %469 = vmatprep.subr.mxu0 0.0
  %470 = vmatpush1.msra.mxu0 0.0
  %471 = vmatprep.subr.mxu0 0.0
  %472 = vmatpush1.msra.mxu0 0.0
  %473 = vmatprep.subr.mxu0 0.0
  %474 = vmatpush1.msra.mxu0 0.0
  %475 = vmatprep.subr.mxu0 0.0
  %476 = vmatpush1.msra.mxu0 0.0
  %477 = vmatprep.subr.mxu0 0.0
  %478 = vmatpush1.msra.mxu0 0.0
  %479 = vmatprep.mubr.f32.mxu0 0.0
  %480 = vmatmul.mubr.f32.gmra.mrb[0].mxu0 %v92
  %v481 = vpop.f32.mrb[0].mxu0
  %v482 = vadd.f32 0.0, %v481
  %v483 = vpop.f32.mrb[0].mxu0
  %484 = vmatprep.mubr.f32.mxu0 0.0
  %485 = vmatmul.mubr.f32.gmra.mrb[0].mxu0 %v95
  %v486 = vpop.f32.mrb[0].mxu0
  %v487 = vadd.f32 0.0, %v486
  %v488 = vpop.f32.mrb[0].mxu0
  %489 = vmatprep.mubr.f32.mxu0 0.0
  %490 = vmatmul.mubr.f32.gmra.mrb[0].mxu0 %v98
  %v491 = vpop.f32.mrb[0].mxu0
  %v492 = vadd.f32 0.0, %v491
  %v493 = vpop.f32.mrb[0].mxu0
  %494 = vmatprep.mubr.f32.mxu0 0.0
  %495 = vmatmul.mubr.f32.gmra.mrb[0].mxu0 %v101
  %v496 = vpop.f32.mrb[0].mxu0
  %v497 = vadd.f32 0.0, %v496
  %v498 = vpop.f32.mrb[0].mxu0
  %499 = vmatprep.mubr.f32.mxu0 0.0
  %500 = vmatmul.mubr.f32.gmra.mrb[0].mxu0 %v104
  %v501 = vpop.f32.mrb[0].mxu0
  %v502 = vadd.f32 0.0, %v501
  %v503 = vpop.f32.mrb[0].mxu0
  %504 = vmatprep.mubr.f32.mxu0 0.0
  %505 = vmatmul.mubr.f32.gmra.mrb[0].mxu0 %v107
  %v506 = vpop.f32.mrb[0].mxu0
  %v507 = vadd.f32 0.0, %v506
  %v508 = vpop.f32.mrb[0].mxu0
  %509 = vmatprep.mubr.f32.mxu0 0.0
  %510 = vmatmul.mubr.f32.gmra.mrb[0].mxu0 %v110
  %v511 = vpop.f32.mrb[0].mxu0
  %v512 = vadd.f32 0.0, %v511
  %v513 = vpop.f32.mrb[0].mxu0
  %514 = vmatprep.mubr.f32.mxu0 0.0
  %515 = vmatmul.mubr.f32.gmra.mrb[0].mxu0 %v113
  %v516 = vpop.f32.mrb[0].mxu0
  %v517 = vadd.f32 0.0, %v516
  %v518 = vpop.f32.mrb[0].mxu0
  %519 = vmatprep.mubr.f32.mxu0 0.0
  %520 = vmatmul.mubr.f32.gmra.mrb[0].mxu0 %v116
  %v521 = vpop.f32.mrb[0].mxu0
  %v522 = vadd.f32 0.0, %v521
  %v523 = vpop.f32.mrb[0].mxu0
  %524 = vmatprep.mubr.f32.mxu0 0.0
  %525 = vmatmul.mubr.f32.gmra.mrb[0].mxu0 %v119
  %v526 = vpop.f32.mrb[0].mxu0
  %v527 = vadd.f32 0.0, %v526
  %v528 = vpop.f32.mrb[0].mxu0
  %529 = vmatprep.mubr.f32.mxu0 0.0
  %530 = vmatmul.mubr.f32.gmra.mrb[0].mxu0 %v122
  %v531 = vpop.f32.mrb[0].mxu0
  %v532 = vadd.f32 0.0, %v531
  %v533 = vpop.f32.mrb[0].mxu0
  %534 = vmatprep.mubr.f32.mxu0 0.0
  %535 = vmatmul.mubr.f32.gmra.mrb[0].mxu0 %v125
  %v536 = vpop.f32.mrb[0].mxu0
  %v537 = vadd.f32 0.0, %v536
  %v538 = vpop.f32.mrb[0].mxu0
  %539 = vmatprep.mubr.f32.mxu0 0.0
  %540 = vmatmul.mubr.f32.gmra.mrb[0].mxu0 %v128
  %v541 = vpop.f32.mrb[0].mxu0
  %v542 = vadd.f32 0.0, %v541
  %v543 = vpop.f32.mrb[0].mxu0
  %544 = vmatprep.mubr.f32.mxu0 0.0
  %545 = vmatmul.mubr.f32.gmra.mrb[0].mxu0 %v131
  %v546 = vpop.f32.mrb[0].mxu0
  %v547 = vadd.f32 0.0, %v546
  %v548 = vpop.f32.mrb[0].mxu0
  %549 = vmatprep.mubr.f32.mxu0 0.0
  %550 = vmatmul.mubr.f32.gmra.mrb[0].mxu0 %v134
  %v551 = vpop.f32.mrb[0].mxu0
  %v552 = vadd.f32 0.0, %v551
  %v553 = vpop.f32.mrb[0].mxu0
  %554 = vmatprep.mubr.f32.mxu0 0.0
  %555 = vmatmul.mubr.f32.gmra.mrb[0].mxu0 %v137
  %v556 = vpop.f32.mrb[0].mxu0
  %v557 = vadd.f32 0.0, %v556
  %v558 = vpop.f32.mrb[0].mxu0
  %559 = vmatprep.mubr.f32.mxu0 0.0
  %560 = vmatmul.mubr.f32.gmra.mrb[0].mxu0 %v140
  %v561 = vpop.f32.mrb[0].mxu0
  %v562 = vadd.f32 0.0, %v561
  %v563 = vpop.f32.mrb[0].mxu0
  %564 = vmatprep.mubr.f32.mxu0 0.0
  %565 = vmatmul.mubr.f32.gmra.mrb[0].mxu0 %v143
  %v566 = vpop.f32.mrb[0].mxu0
  %v567 = vadd.f32 0.0, %v566
  %v568 = vpop.f32.mrb[0].mxu0
  %569 = vmatprep.mubr.f32.mxu0 0.0
  %570 = vmatmul.mubr.f32.gmra.mrb[0].mxu0 %v146
  %v571 = vpop.f32.mrb[0].mxu0
  %v572 = vadd.f32 0.0, %v571
  %v573 = vpop.f32.mrb[0].mxu0
  %574 = vmatprep.mubr.f32.mxu0 0.0
  %575 = vmatmul.mubr.f32.gmra.mrb[0].mxu0 %v149
  %v576 = vpop.f32.mrb[0].mxu0
  %v577 = vadd.f32 0.0, %v576
  %v578 = vpop.f32.mrb[0].mxu0
  %579 = vmatprep.mubr.f32.mxu0 0.0
  %580 = vmatmul.mubr.f32.gmra.mrb[0].mxu0 %v152
  %v581 = vpop.f32.mrb[0].mxu0
  %v582 = vadd.f32 0.0, %v581
  %v583 = vpop.f32.mrb[0].mxu0
  %584 = vmatprep.mubr.f32.mxu0 0.0
  %585 = vmatmul.mubr.f32.gmra.mrb[0].mxu0 %v155
  %v586 = vpop.f32.mrb[0].mxu0
  %v587 = vadd.f32 0.0, %v586
  %v588 = vpop.f32.mrb[0].mxu0
  %589 = vmatprep.mubr.f32.mxu0 0.0
  %590 = vmatmul.mubr.f32.gmra.mrb[0].mxu0 %v158
  %v591 = vpop.f32.mrb[0].mxu0
  %v592 = vadd.f32 0.0, %v591
  %v593 = vpop.f32.mrb[0].mxu0
  %594 = vmatprep.mubr.f32.mxu0 0.0
  %595 = vmatmul.mubr.f32.gmra.mrb[0].mxu0 %v161
  %v596 = vpop.f32.mrb[0].mxu0
  %v597 = vadd.f32 0.0, %v596
  %v598 = vpop.f32.mrb[0].mxu0
  %599 = vmatprep.mubr.f32.mxu0 0.0
  %600 = vmatmul.mubr.f32.gmra.mrb[0].mxu0 %v164
  %v601 = vpop.f32.mrb[0].mxu0
  %v602 = vadd.f32 0.0, %v601
  %v603 = vpop.f32.mrb[0].mxu0
  %604 = vmatprep.mubr.f32.mxu0 0.0
  %605 = vmatmul.mubr.f32.gmra.mrb[0].mxu0 %v167
  %v606 = vpop.f32.mrb[0].mxu0
  %v607 = vadd.f32 0.0, %v606
  %v608 = vpop.f32.mrb[0].mxu0
  %609 = vmatprep.mubr.f32.mxu0 0.0
  %610 = vmatmul.mubr.f32.gmra.mrb[0].mxu0 %v170
  %v611 = vpop.f32.mrb[0].mxu0
  %v612 = vadd.f32 0.0, %v611
  %v613 = vpop.f32.mrb[0].mxu0
  %614 = vmatprep.mubr.f32.mxu0 0.0
  %615 = vmatmul.mubr.f32.gmra.mrb[0].mxu0 %v173
  %v616 = vpop.f32.mrb[0].mxu0
  %v617 = vadd.f32 0.0, %v616
  %v618 = vpop.f32.mrb[0].mxu0
  %619 = vmatprep.mubr.f32.mxu0 0.0
  %620 = vmatmul.mubr.f32.gmra.mrb[0].mxu0 %v176
  %v621 = vpop.f32.mrb[0].mxu0
  %v622 = vadd.f32 0.0, %v621
  %v623 = vpop.f32.mrb[0].mxu0
  %624 = vmatprep.mubr.f32.mxu0 0.0
  %625 = vmatmul.mubr.f32.gmra.mrb[0].mxu0 %v179
  %v626 = vpop.f32.mrb[0].mxu0
  %v627 = vadd.f32 0.0, %v626
  %v628 = vpop.f32.mrb[0].mxu0
  %629 = vmatprep.mubr.f32.mxu0 0.0
  %630 = vmatmul.mubr.f32.gmra.mrb[0].mxu0 %v182
  %v631 = vpop.f32.mrb[0].mxu0
  %v632 = vadd.f32 0.0, %v631
  %v633 = vpop.f32.mrb[0].mxu0
  %634 = vmatprep.mubr.f32.mxu0 0.0
  %635 = vmatmul.mubr.f32.gmra.mrb[0].mxu0 %v185
  %v636 = vpop.f32.mrb[0].mxu0
  %v637 = vadd.f32 0.0, %v636
  %v638 = vpop.f32.mrb[0].mxu0
  %639 = vdwg.mxu0
  %v641 = vsel %vm90, 0.0, 0
  %643 = vmatprep.subr.mxu0 0.0
  %644 = vmatpush1.msra.mxu0 %v412
  %645 = vmatprep.subr.mxu0 0.0
  %646 = vmatpush1.msra.mxu0 0.0
  %647 = vmatprep.subr.mxu0 0.0
  %648 = vmatpush1.msra.mxu0 0.0
  %649 = vmatprep.subr.mxu0 0.0
  %650 = vmatpush1.msra.mxu0 0.0
  %651 = vmatprep.subr.mxu0 0.0
  %652 = vmatpush1.msra.mxu0 0.0
  %653 = vmatprep.subr.mxu0 0.0
  %654 = vmatpush1.msra.mxu0 0.0
  %655 = vmatprep.subr.mxu0 0.0
  %656 = vmatpush1.msra.mxu0 0.0
  %657 = vmatprep.subr.mxu0 0.0
  %658 = vmatpush1.msra.mxu0 0.0
  %659 = vmatprep.subr.mxu0 0.0
  %660 = vmatpush1.msra.mxu0 0.0
  %661 = vmatprep.subr.mxu0 0.0
  %662 = vmatpush1.msra.mxu0 0.0
  %663 = vmatprep.subr.mxu0 0.0
  %664 = vmatpush1.msra.mxu0 0.0
  %665 = vmatprep.subr.mxu0 0.0
  %666 = vmatpush1.msra.mxu0 0.0
  %667 = vmatprep.subr.mxu0 0.0
  %668 = vmatpush1.msra.mxu0 0.0
  %669 = vmatprep.subr.mxu0 0.0
  %670 = vmatpush1.msra.mxu0 0.0
  %671 = vmatprep.subr.mxu0 0.0
  %672 = vmatpush1.msra.mxu0 0.0
  %673 = vmatprep.subr.mxu0 0.0
  %674 = vmatpush1.msra.mxu0 0.0
  %675 = vmatprep.subr.mxu0 0.0
  %676 = vmatpush1.msra.mxu0 0.0
  %677 = vmatprep.subr.mxu0 0.0
  %678 = vmatpush1.msra.mxu0 0.0
  %679 = vmatprep.subr.mxu0 0.0
  %680 = vmatpush1.msra.mxu0 0.0
  %681 = vmatprep.subr.mxu0 0.0
  %682 = vmatpush1.msra.mxu0 0.0
  %683 = vmatprep.subr.mxu0 0.0
  %684 = vmatpush1.msra.mxu0 0.0
  %685 = vmatprep.subr.mxu0 0.0
  %686 = vmatpush1.msra.mxu0 0.0
  %687 = vmatprep.subr.mxu0 0.0
  %688 = vmatpush1.msra.mxu0 0.0
  %689 = vmatprep.subr.mxu0 0.0
  %690 = vmatpush1.msra.mxu0 0.0
  %691 = vmatprep.subr.mxu0 0.0
  %692 = vmatpush1.msra.mxu0 0.0
  %693 = vmatprep.subr.mxu0 0.0
  %694 = vmatpush1.msra.mxu0 0.0
  %695 = vmatprep.subr.mxu0 0.0
  %696 = vmatpush1.msra.mxu0 0.0
  %697 = vmatprep.subr.mxu0 0.0
  %698 = vmatpush1.msra.mxu0 0.0
  %699 = vmatprep.subr.mxu0 0.0
  %700 = vmatpush1.msra.mxu0 0.0
  %701 = vmatprep.subr.mxu0 0.0
  %702 = vmatpush1.msra.mxu0 0.0
  %703 = vmatprep.subr.mxu0 0.0
  %704 = vmatpush1.msra.mxu0 0.0
  %705 = vmatprep.subr.mxu0 0.0
  %706 = vmatpush1.msra.mxu0 0.0
  %707 = vmatprep.mubr.f32.mxu0 0.0
  %708 = vmatmul.mubr.f32.gmra.mrb[0].mxu0 %v641
  %v709 = vpop.f32.mrb[0].mxu0
  %v710 = vadd.f32 %v482, %v709
  %v711 = vpop.f32.mrb[0].mxu0
  %712 = vmatprep.mubr.f32.mxu0 0.0
  %713 = vmatmul.mubr.f32.gmra.mrb[0].mxu0 %v92
  %v714 = vpop.f32.mrb[0].mxu0
  %v715 = vadd.f32 %v487, %v714
  %v716 = vpop.f32.mrb[0].mxu0
  %717 = vmatprep.mubr.f32.mxu0 0.0
  %718 = vmatmul.mubr.f32.gmra.mrb[0].mxu0 %v95
  %v719 = vpop.f32.mrb[0].mxu0
  %v720 = vadd.f32 %v492, %v719
  %v721 = vpop.f32.mrb[0].mxu0
  %722 = vmatprep.mubr.f32.mxu0 0.0
  %723 = vmatmul.mubr.f32.gmra.mrb[0].mxu0 %v98
  %v724 = vpop.f32.mrb[0].mxu0
  %v725 = vadd.f32 %v497, %v724
  %v726 = vpop.f32.mrb[0].mxu0
  %727 = vmatprep.mubr.f32.mxu0 0.0
  %728 = vmatmul.mubr.f32.gmra.mrb[0].mxu0 %v101
  %v729 = vpop.f32.mrb[0].mxu0
  %v730 = vadd.f32 %v502, %v729
  %v731 = vpop.f32.mrb[0].mxu0
  %732 = vmatprep.mubr.f32.mxu0 0.0
  %733 = vmatmul.mubr.f32.gmra.mrb[0].mxu0 %v104
  %v734 = vpop.f32.mrb[0].mxu0
  %v735 = vadd.f32 %v507, %v734
  %v736 = vpop.f32.mrb[0].mxu0
  %737 = vmatprep.mubr.f32.mxu0 0.0
  %738 = vmatmul.mubr.f32.gmra.mrb[0].mxu0 %v107
  %v739 = vpop.f32.mrb[0].mxu0
  %v740 = vadd.f32 %v512, %v739
  %v741 = vpop.f32.mrb[0].mxu0
  %742 = vmatprep.mubr.f32.mxu0 0.0
  %743 = vmatmul.mubr.f32.gmra.mrb[0].mxu0 %v110
  %v744 = vpop.f32.mrb[0].mxu0
  %v745 = vadd.f32 %v517, %v744
  %v746 = vpop.f32.mrb[0].mxu0
  %747 = vmatprep.mubr.f32.mxu0 0.0
  %748 = vmatmul.mubr.f32.gmra.mrb[0].mxu0 %v113
  %v749 = vpop.f32.mrb[0].mxu0
  %v750 = vadd.f32 %v522, %v749
  %v751 = vpop.f32.mrb[0].mxu0
  %752 = vmatprep.mubr.f32.mxu0 0.0
  %753 = vmatmul.mubr.f32.gmra.mrb[0].mxu0 %v116
  %v754 = vpop.f32.mrb[0].mxu0
  %v755 = vadd.f32 %v527, %v754
  %v756 = vpop.f32.mrb[0].mxu0
  %757 = vmatprep.mubr.f32.mxu0 0.0
  %758 = vmatmul.mubr.f32.gmra.mrb[0].mxu0 %v119
  %v759 = vpop.f32.mrb[0].mxu0
  %v760 = vadd.f32 %v532, %v759
  %v761 = vpop.f32.mrb[0].mxu0
  %762 = vmatprep.mubr.f32.mxu0 0.0
  %763 = vmatmul.mubr.f32.gmra.mrb[0].mxu0 %v122
  %v764 = vpop.f32.mrb[0].mxu0
  %v765 = vadd.f32 %v537, %v764
  %v766 = vpop.f32.mrb[0].mxu0
  %767 = vmatprep.mubr.f32.mxu0 0.0
  %768 = vmatmul.mubr.f32.gmra.mrb[0].mxu0 %v125
  %v769 = vpop.f32.mrb[0].mxu0
  %v770 = vadd.f32 %v542, %v769
  %v771 = vpop.f32.mrb[0].mxu0
  %772 = vmatprep.mubr.f32.mxu0 0.0
  %773 = vmatmul.mubr.f32.gmra.mrb[0].mxu0 %v128
  %v774 = vpop.f32.mrb[0].mxu0
  %v775 = vadd.f32 %v547, %v774
  %v776 = vpop.f32.mrb[0].mxu0
  %777 = vmatprep.mubr.f32.mxu0 0.0
  %778 = vmatmul.mubr.f32.gmra.mrb[0].mxu0 %v131
  %v779 = vpop.f32.mrb[0].mxu0
  %v780 = vadd.f32 %v552, %v779
  %v781 = vpop.f32.mrb[0].mxu0
  %782 = vmatprep.mubr.f32.mxu0 0.0
  %783 = vmatmul.mubr.f32.gmra.mrb[0].mxu0 %v134
  %v784 = vpop.f32.mrb[0].mxu0
  %v785 = vadd.f32 %v557, %v784
  %v786 = vpop.f32.mrb[0].mxu0
  %787 = vmatprep.mubr.f32.mxu0 0.0
  %788 = vmatmul.mubr.f32.gmra.mrb[0].mxu0 %v137
  %v789 = vpop.f32.mrb[0].mxu0
  %v790 = vadd.f32 %v562, %v789
  %v791 = vpop.f32.mrb[0].mxu0
  %792 = vmatprep.mubr.f32.mxu0 0.0
  %793 = vmatmul.mubr.f32.gmra.mrb[0].mxu0 %v140
  %v794 = vpop.f32.mrb[0].mxu0
  %v795 = vadd.f32 %v567, %v794
  %v796 = vpop.f32.mrb[0].mxu0
  %797 = vmatprep.mubr.f32.mxu0 0.0
  %798 = vmatmul.mubr.f32.gmra.mrb[0].mxu0 %v143
  %v799 = vpop.f32.mrb[0].mxu0
  %v800 = vadd.f32 %v572, %v799
  %v801 = vpop.f32.mrb[0].mxu0
  %802 = vmatprep.mubr.f32.mxu0 0.0
  %803 = vmatmul.mubr.f32.gmra.mrb[0].mxu0 %v146
  %v804 = vpop.f32.mrb[0].mxu0
  %v805 = vadd.f32 %v577, %v804
  %v806 = vpop.f32.mrb[0].mxu0
  %807 = vmatprep.mubr.f32.mxu0 0.0
  %808 = vmatmul.mubr.f32.gmra.mrb[0].mxu0 %v149
  %v809 = vpop.f32.mrb[0].mxu0
  %v810 = vadd.f32 %v582, %v809
  %v811 = vpop.f32.mrb[0].mxu0
  %812 = vmatprep.mubr.f32.mxu0 0.0
  %813 = vmatmul.mubr.f32.gmra.mrb[0].mxu0 %v152
  %v814 = vpop.f32.mrb[0].mxu0
  %v815 = vadd.f32 %v587, %v814
  %v816 = vpop.f32.mrb[0].mxu0
  %817 = vmatprep.mubr.f32.mxu0 0.0
  %818 = vmatmul.mubr.f32.gmra.mrb[0].mxu0 %v155
  %v819 = vpop.f32.mrb[0].mxu0
  %v820 = vadd.f32 %v592, %v819
  %v821 = vpop.f32.mrb[0].mxu0
  %822 = vmatprep.mubr.f32.mxu0 0.0
  %823 = vmatmul.mubr.f32.gmra.mrb[0].mxu0 %v158
  %v824 = vpop.f32.mrb[0].mxu0
  %v825 = vadd.f32 %v597, %v824
  %v826 = vpop.f32.mrb[0].mxu0
  %827 = vmatprep.mubr.f32.mxu0 0.0
  %828 = vmatmul.mubr.f32.gmra.mrb[0].mxu0 %v161
  %v829 = vpop.f32.mrb[0].mxu0
  %v830 = vadd.f32 %v602, %v829
  %v831 = vpop.f32.mrb[0].mxu0
  %832 = vmatprep.mubr.f32.mxu0 0.0
  %833 = vmatmul.mubr.f32.gmra.mrb[0].mxu0 %v164
  %v834 = vpop.f32.mrb[0].mxu0
  %v835 = vadd.f32 %v607, %v834
  %v836 = vpop.f32.mrb[0].mxu0
  %837 = vmatprep.mubr.f32.mxu0 0.0
  %838 = vmatmul.mubr.f32.gmra.mrb[0].mxu0 %v167
  %v839 = vpop.f32.mrb[0].mxu0
  %v840 = vadd.f32 %v612, %v839
  %v841 = vpop.f32.mrb[0].mxu0
  %842 = vmatprep.mubr.f32.mxu0 0.0
  %843 = vmatmul.mubr.f32.gmra.mrb[0].mxu0 %v170
  %v844 = vpop.f32.mrb[0].mxu0
  %v845 = vadd.f32 %v617, %v844
  %v846 = vpop.f32.mrb[0].mxu0
  %847 = vmatprep.mubr.f32.mxu0 0.0
  %848 = vmatmul.mubr.f32.gmra.mrb[0].mxu0 %v173
  %v849 = vpop.f32.mrb[0].mxu0
  %v850 = vadd.f32 %v622, %v849
  %v851 = vpop.f32.mrb[0].mxu0
  %852 = vmatprep.mubr.f32.mxu0 0.0
  %853 = vmatmul.mubr.f32.gmra.mrb[0].mxu0 %v176
  %v854 = vpop.f32.mrb[0].mxu0
  %v855 = vadd.f32 %v627, %v854
  %v856 = vpop.f32.mrb[0].mxu0
  %857 = vmatprep.mubr.f32.mxu0 0.0
  %858 = vmatmul.mubr.f32.gmra.mrb[0].mxu0 %v179
  %v859 = vpop.f32.mrb[0].mxu0
  %v860 = vadd.f32 %v632, %v859
  %v861 = vpop.f32.mrb[0].mxu0
  %862 = vmatprep.mubr.f32.mxu0 0.0
  %863 = vmatmul.mubr.f32.gmra.mrb[0].mxu0 %v182
  %v864 = vpop.f32.mrb[0].mxu0
  %v865 = vadd.f32 %v637, %v864
  %v866 = vpop.f32.mrb[0].mxu0
  %867 = vdwg.mxu0
  %v868 = vld [vmem:[%s2] sm:$0x1]
  %v870 = vlaneseq
  %v871 = vshrl.u32 %v870, 7
  %v872 = vsub.s32 0, %v871
  %v873 = vrot.slane %v868, %v872
  %v875 = vadd.f32 %v710, %v873
  %v876 = vadd.f32 %v715, %v873
  %v877 = vadd.f32 %v720, %v873
  %v878 = vadd.f32 %v725, %v873
  %v879 = vadd.f32 %v730, %v873
  %v880 = vadd.f32 %v735, %v873
  %v881 = vadd.f32 %v740, %v873
  %v882 = vadd.f32 %v745, %v873
  %v883 = vadd.f32 %v750, %v873
  %v884 = vadd.f32 %v755, %v873
  %v885 = vadd.f32 %v760, %v873
  %v886 = vadd.f32 %v765, %v873
  %v887 = vadd.f32 %v770, %v873
  %v888 = vadd.f32 %v775, %v873
  %v889 = vadd.f32 %v780, %v873
  %v890 = vadd.f32 %v785, %v873
  %v891 = vadd.f32 %v790, %v873
  %v892 = vadd.f32 %v795, %v873
  %v893 = vadd.f32 %v800, %v873
  %v894 = vadd.f32 %v805, %v873
  %v895 = vadd.f32 %v810, %v873
  %v896 = vadd.f32 %v815, %v873
  %v897 = vadd.f32 %v820, %v873
  %v898 = vadd.f32 %v825, %v873
  %v899 = vadd.f32 %v830, %v873
  %v900 = vadd.f32 %v835, %v873
  %v901 = vadd.f32 %v840, %v873
  %v902 = vadd.f32 %v845, %v873
  %v903 = vadd.f32 %v850, %v873
  %v904 = vadd.f32 %v855, %v873
  %v905 = vadd.f32 %v860, %v873
  %v906 = vadd.f32 %v865, %v873
  %v907 = vmax.f32 %v875, 0.0
  %v908 = vmax.f32 %v876, 0.0
  %v909 = vmax.f32 %v877, 0.0
  %v910 = vmax.f32 %v878, 0.0
  %v911 = vmax.f32 %v879, 0.0
  %v912 = vmax.f32 %v880, 0.0
  %v913 = vmax.f32 %v881, 0.0
  %v914 = vmax.f32 %v882, 0.0
  %v915 = vmax.f32 %v883, 0.0
  %v916 = vmax.f32 %v884, 0.0
  %v917 = vmax.f32 %v885, 0.0
  %v918 = vmax.f32 %v886, 0.0
  %v919 = vmax.f32 %v887, 0.0
  %v920 = vmax.f32 %v888, 0.0
  %v921 = vmax.f32 %v889, 0.0
  %v922 = vmax.f32 %v890, 0.0
  %v923 = vmax.f32 %v891, 0.0
  %v924 = vmax.f32 %v892, 0.0
  %v925 = vmax.f32 %v893, 0.0
  %v926 = vmax.f32 %v894, 0.0
  %v927 = vmax.f32 %v895, 0.0
  %v928 = vmax.f32 %v896, 0.0
  %v929 = vmax.f32 %v897, 0.0
  %v930 = vmax.f32 %v898, 0.0
  %v931 = vmax.f32 %v899, 0.0
  %v932 = vmax.f32 %v900, 0.0
  %v933 = vmax.f32 %v901, 0.0
  %v934 = vmax.f32 %v902, 0.0
  %v935 = vmax.f32 %v903, 0.0
  %v936 = vmax.f32 %v904, 0.0
  %v937 = vmax.f32 %v905, 0.0
  %v938 = vmax.f32 %v906, 0.0
  %v939 = vld [vmem:[%s3] sm:$0xff]
  %v940 = vld [vmem:[%s3 + $0x8] sm:$0xff]
  %s941 = scalar_lea.vmem %s3, 16
  %v942 = vld [vmem:[%s941] sm:$0xff]
  %v943 = vld [vmem:[%s941 + $0x8] sm:$0xff]
  %vm944 = vcmask 130048
  %v946 = vsel %vm944, %v907, 0
  %v949 = vsel %vm944, %v908, 0
  %v952 = vsel %vm944, %v909, 0
  %v955 = vsel %vm944, %v910, 0
  %v958 = vsel %vm944, %v911, 0
  %v961 = vsel %vm944, %v912, 0
  %v964 = vsel %vm944, %v913, 0
  %v967 = vsel %vm944, %v914, 0
  %v970 = vsel %vm944, %v915, 0
  %v973 = vsel %vm944, %v916, 0
  %v976 = vsel %vm944, %v917, 0
  %v979 = vsel %vm944, %v918, 0
  %v982 = vsel %vm944, %v919, 0
  %v985 = vsel %vm944, %v920, 0
  %v988 = vsel %vm944, %v921, 0
  %v991 = vsel %vm944, %v922, 0
  %v994 = vsel %vm944, %v923, 0
  %v997 = vsel %vm944, %v924, 0
  %v1000 = vsel %vm944, %v925, 0
  %v1003 = vsel %vm944, %v926, 0
  %v1006 = vsel %vm944, %v927, 0
  %v1009 = vsel %vm944, %v928, 0
  %v1012 = vsel %vm944, %v929, 0
  %v1015 = vsel %vm944, %v930, 0
  %v1018 = vsel %vm944, %v931, 0
  %v1021 = vsel %vm944, %v932, 0
  %v1024 = vsel %vm944, %v933, 0
  %v1027 = vsel %vm944, %v934, 0
  %v1030 = vsel %vm944, %v935, 0
  %v1033 = vsel %vm944, %v936, 0
  %v1036 = vsel %vm944, %v937, 0
  %v1039 = vsel %vm944, %v938, 0
  %1041 = vmatprep.subr.mxu0 0.0
  %1042 = vmatpush1.msra.mxu0 %v942
  %1043 = vmatprep.subr.mxu0 0.0
  %1044 = vmatpush1.msra.mxu0 %v943
  %1045 = vmatprep.subr.mxu0 0.0
  %1046 = vmatpush1.msra.mxu0 0.0
  %1047 = vmatprep.subr.mxu0 0.0
  %1048 = vmatpush1.msra.mxu0 0.0
  %1049 = vmatprep.subr.mxu0 0.0
  %1050 = vmatpush1.msra.mxu0 0.0
  %1051 = vmatprep.subr.mxu0 0.0
  %1052 = vmatpush1.msra.mxu0 0.0
  %1053 = vmatprep.subr.mxu0 0.0
  %1054 = vmatpush1.msra.mxu0 0.0
  %1055 = vmatprep.subr.mxu0 0.0
  %1056 = vmatpush1.msra.mxu0 0.0
  %1057 = vmatprep.subr.mxu0 0.0
  %1058 = vmatpush1.msra.mxu0 0.0
  %1059 = vmatprep.subr.mxu0 0.0
  %1060 = vmatpush1.msra.mxu0 0.0
  %1061 = vmatprep.subr.mxu0 0.0
  %1062 = vmatpush1.msra.mxu0 0.0
  %1063 = vmatprep.subr.mxu0 0.0
  %1064 = vmatpush1.msra.mxu0 0.0
  %1065 = vmatprep.subr.mxu0 0.0
  %1066 = vmatpush1.msra.mxu0 0.0
  %1067 = vmatprep.subr.mxu0 0.0
  %1068 = vmatpush1.msra.mxu0 0.0
  %1069 = vmatprep.subr.mxu0 0.0
  %1070 = vmatpush1.msra.mxu0 0.0
  %1071 = vmatprep.subr.mxu0 0.0
  %1072 = vmatpush1.msra.mxu0 0.0
  %1073 = vmatprep.subr.mxu0 0.0
  %1074 = vmatpush1.msra.mxu0 0.0
  %1075 = vmatprep.subr.mxu0 0.0
  %1076 = vmatpush1.msra.mxu0 0.0
  %1077 = vmatprep.subr.mxu0 0.0
  %1078 = vmatpush1.msra.mxu0 0.0
  %1079 = vmatprep.subr.mxu0 0.0
  %1080 = vmatpush1.msra.mxu0 0.0
  %1081 = vmatprep.subr.mxu0 0.0
  %1082 = vmatpush1.msra.mxu0 0.0
  %1083 = vmatprep.subr.mxu0 0.0
  %1084 = vmatpush1.msra.mxu0 0.0
  %1085 = vmatprep.subr.mxu0 0.0
  %1086 = vmatpush1.msra.mxu0 0.0
  %1087 = vmatprep.subr.mxu0 0.0
  %1088 = vmatpush1.msra.mxu0 0.0
  %1089 = vmatprep.subr.mxu0 0.0
  %1090 = vmatpush1.msra.mxu0 0.0
  %1091 = vmatprep.subr.mxu0 0.0
  %1092 = vmatpush1.msra.mxu0 0.0
  %1093 = vmatprep.subr.mxu0 0.0
  %1094 = vmatpush1.msra.mxu0 0.0
  %1095 = vmatprep.subr.mxu0 0.0
  %1096 = vmatpush1.msra.mxu0 0.0
  %1097 = vmatprep.subr.mxu0 0.0
  %1098 = vmatpush1.msra.mxu0 0.0
  %1099 = vmatprep.subr.mxu0 0.0
  %1100 = vmatpush1.msra.mxu0 0.0
  %1101 = vmatprep.subr.mxu0 0.0
  %1102 = vmatpush1.msra.mxu0 0.0
  %1103 = vmatprep.subr.mxu0 0.0
  %1104 = vmatpush1.msra.mxu0 0.0
  %1105 = vmatprep.mubr.f32.mxu0 0.0
  %1106 = vmatmul.mubr.f32.gmra.mrb[0].mxu0 %v946
  %v1107 = vpop.f32.mrb[0].mxu0
  %v1108 = vadd.f32 0.0, %v1107
  %v1109 = vpop.f32.mrb[0].mxu0
  %1110 = vmatprep.mubr.f32.mxu0 0.0
  %1111 = vmatmul.mubr.f32.gmra.mrb[0].mxu0 %v949
  %v1112 = vpop.f32.mrb[0].mxu0
  %v1113 = vadd.f32 0.0, %v1112
  %v1114 = vpop.f32.mrb[0].mxu0
  %1115 = vmatprep.mubr.f32.mxu0 0.0
  %1116 = vmatmul.mubr.f32.gmra.mrb[0].mxu0 %v952
  %v1117 = vpop.f32.mrb[0].mxu0
  %v1118 = vadd.f32 0.0, %v1117
  %v1119 = vpop.f32.mrb[0].mxu0
  %1120 = vmatprep.mubr.f32.mxu0 0.0
  %1121 = vmatmul.mubr.f32.gmra.mrb[0].mxu0 %v955
  %v1122 = vpop.f32.mrb[0].mxu0
  %v1123 = vadd.f32 0.0, %v1122
  %v1124 = vpop.f32.mrb[0].mxu0
  %1125 = vmatprep.mubr.f32.mxu0 0.0
  %1126 = vmatmul.mubr.f32.gmra.mrb[0].mxu0 %v958
  %v1127 = vpop.f32.mrb[0].mxu0
  %v1128 = vadd.f32 0.0, %v1127
  %v1129 = vpop.f32.mrb[0].mxu0
  %1130 = vmatprep.mubr.f32.mxu0 0.0
  %1131 = vmatmul.mubr.f32.gmra.mrb[0].mxu0 %v961
  %v1132 = vpop.f32.mrb[0].mxu0
  %v1133 = vadd.f32 0.0, %v1132
  %v1134 = vpop.f32.mrb[0].mxu0
  %1135 = vmatprep.mubr.f32.mxu0 0.0
  %1136 = vmatmul.mubr.f32.gmra.mrb[0].mxu0 %v964
  %v1137 = vpop.f32.mrb[0].mxu0
  %v1138 = vadd.f32 0.0, %v1137
  %v1139 = vpop.f32.mrb[0].mxu0
  %1140 = vmatprep.mubr.f32.mxu0 0.0
  %1141 = vmatmul.mubr.f32.gmra.mrb[0].mxu0 %v967
  %v1142 = vpop.f32.mrb[0].mxu0
  %v1143 = vadd.f32 0.0, %v1142
  %v1144 = vpop.f32.mrb[0].mxu0
  %1145 = vmatprep.mubr.f32.mxu0 0.0
  %1146 = vmatmul.mubr.f32.gmra.mrb[0].mxu0 %v970
  %v1147 = vpop.f32.mrb[0].mxu0
  %v1148 = vadd.f32 0.0, %v1147
  %v1149 = vpop.f32.mrb[0].mxu0
  %1150 = vmatprep.mubr.f32.mxu0 0.0
  %1151 = vmatmul.mubr.f32.gmra.mrb[0].mxu0 %v973
  %v1152 = vpop.f32.mrb[0].mxu0
  %v1153 = vadd.f32 0.0, %v1152
  %v1154 = vpop.f32.mrb[0].mxu0
  %1155 = vmatprep.mubr.f32.mxu0 0.0
  %1156 = vmatmul.mubr.f32.gmra.mrb[0].mxu0 %v976
  %v1157 = vpop.f32.mrb[0].mxu0
  %v1158 = vadd.f32 0.0, %v1157
  %v1159 = vpop.f32.mrb[0].mxu0
  %1160 = vmatprep.mubr.f32.mxu0 0.0
  %1161 = vmatmul.mubr.f32.gmra.mrb[0].mxu0 %v979
  %v1162 = vpop.f32.mrb[0].mxu0
  %v1163 = vadd.f32 0.0, %v1162
  %v1164 = vpop.f32.mrb[0].mxu0
  %1165 = vmatprep.mubr.f32.mxu0 0.0
  %1166 = vmatmul.mubr.f32.gmra.mrb[0].mxu0 %v982
  %v1167 = vpop.f32.mrb[0].mxu0
  %v1168 = vadd.f32 0.0, %v1167
  %v1169 = vpop.f32.mrb[0].mxu0
  %1170 = vmatprep.mubr.f32.mxu0 0.0
  %1171 = vmatmul.mubr.f32.gmra.mrb[0].mxu0 %v985
  %v1172 = vpop.f32.mrb[0].mxu0
  %v1173 = vadd.f32 0.0, %v1172
  %v1174 = vpop.f32.mrb[0].mxu0
  %1175 = vmatprep.mubr.f32.mxu0 0.0
  %1176 = vmatmul.mubr.f32.gmra.mrb[0].mxu0 %v988
  %v1177 = vpop.f32.mrb[0].mxu0
  %v1178 = vadd.f32 0.0, %v1177
  %v1179 = vpop.f32.mrb[0].mxu0
  %1180 = vmatprep.mubr.f32.mxu0 0.0
  %1181 = vmatmul.mubr.f32.gmra.mrb[0].mxu0 %v991
  %v1182 = vpop.f32.mrb[0].mxu0
  %v1183 = vadd.f32 0.0, %v1182
  %v1184 = vpop.f32.mrb[0].mxu0
  %1185 = vmatprep.mubr.f32.mxu0 0.0
  %1186 = vmatmul.mubr.f32.gmra.mrb[0].mxu0 %v994
  %v1187 = vpop.f32.mrb[0].mxu0
  %v1188 = vadd.f32 0.0, %v1187
  %v1189 = vpop.f32.mrb[0].mxu0
  %1190 = vmatprep.mubr.f32.mxu0 0.0
  %1191 = vmatmul.mubr.f32.gmra.mrb[0].mxu0 %v997
  %v1192 = vpop.f32.mrb[0].mxu0
  %v1193 = vadd.f32 0.0, %v1192
  %v1194 = vpop.f32.mrb[0].mxu0
  %1195 = vmatprep.mubr.f32.mxu0 0.0
  %1196 = vmatmul.mubr.f32.gmra.mrb[0].mxu0 %v1000
  %v1197 = vpop.f32.mrb[0].mxu0
  %v1198 = vadd.f32 0.0, %v1197
  %v1199 = vpop.f32.mrb[0].mxu0
  %1200 = vmatprep.mubr.f32.mxu0 0.0
  %1201 = vmatmul.mubr.f32.gmra.mrb[0].mxu0 %v1003
  %v1202 = vpop.f32.mrb[0].mxu0
  %v1203 = vadd.f32 0.0, %v1202
  %v1204 = vpop.f32.mrb[0].mxu0
  %1205 = vmatprep.mubr.f32.mxu0 0.0
  %1206 = vmatmul.mubr.f32.gmra.mrb[0].mxu0 %v1006
  %v1207 = vpop.f32.mrb[0].mxu0
  %v1208 = vadd.f32 0.0, %v1207
  %v1209 = vpop.f32.mrb[0].mxu0
  %1210 = vmatprep.mubr.f32.mxu0 0.0
  %1211 = vmatmul.mubr.f32.gmra.mrb[0].mxu0 %v1009
  %v1212 = vpop.f32.mrb[0].mxu0
  %v1213 = vadd.f32 0.0, %v1212
  %v1214 = vpop.f32.mrb[0].mxu0
  %1215 = vmatprep.mubr.f32.mxu0 0.0
  %1216 = vmatmul.mubr.f32.gmra.mrb[0].mxu0 %v1012
  %v1217 = vpop.f32.mrb[0].mxu0
  %v1218 = vadd.f32 0.0, %v1217
  %v1219 = vpop.f32.mrb[0].mxu0
  %1220 = vmatprep.mubr.f32.mxu0 0.0
  %1221 = vmatmul.mubr.f32.gmra.mrb[0].mxu0 %v1015
  %v1222 = vpop.f32.mrb[0].mxu0
  %v1223 = vadd.f32 0.0, %v1222
  %v1224 = vpop.f32.mrb[0].mxu0
  %1225 = vmatprep.mubr.f32.mxu0 0.0
  %1226 = vmatmul.mubr.f32.gmra.mrb[0].mxu0 %v1018
  %v1227 = vpop.f32.mrb[0].mxu0
  %v1228 = vadd.f32 0.0, %v1227
  %v1229 = vpop.f32.mrb[0].mxu0
  %1230 = vmatprep.mubr.f32.mxu0 0.0
  %1231 = vmatmul.mubr.f32.gmra.mrb[0].mxu0 %v1021
  %v1232 = vpop.f32.mrb[0].mxu0
  %v1233 = vadd.f32 0.0, %v1232
  %v1234 = vpop.f32.mrb[0].mxu0
  %1235 = vmatprep.mubr.f32.mxu0 0.0
  %1236 = vmatmul.mubr.f32.gmra.mrb[0].mxu0 %v1024
  %v1237 = vpop.f32.mrb[0].mxu0
  %v1238 = vadd.f32 0.0, %v1237
  %v1239 = vpop.f32.mrb[0].mxu0
  %1240 = vmatprep.mubr.f32.mxu0 0.0
  %1241 = vmatmul.mubr.f32.gmra.mrb[0].mxu0 %v1027
  %v1242 = vpop.f32.mrb[0].mxu0
  %v1243 = vadd.f32 0.0, %v1242
  %v1244 = vpop.f32.mrb[0].mxu0
  %1245 = vmatprep.mubr.f32.mxu0 0.0
  %1246 = vmatmul.mubr.f32.gmra.mrb[0].mxu0 %v1030
  %v1247 = vpop.f32.mrb[0].mxu0
  %v1248 = vadd.f32 0.0, %v1247
  %v1249 = vpop.f32.mrb[0].mxu0
  %1250 = vmatprep.mubr.f32.mxu0 0.0
  %1251 = vmatmul.mubr.f32.gmra.mrb[0].mxu0 %v1033
  %v1252 = vpop.f32.mrb[0].mxu0
  %v1253 = vadd.f32 0.0, %v1252
  %v1254 = vpop.f32.mrb[0].mxu0
  %1255 = vmatprep.mubr.f32.mxu0 0.0
  %1256 = vmatmul.mubr.f32.gmra.mrb[0].mxu0 %v1036
  %v1257 = vpop.f32.mrb[0].mxu0
  %v1258 = vadd.f32 0.0, %v1257
  %v1259 = vpop.f32.mrb[0].mxu0
  %1260 = vmatprep.mubr.f32.mxu0 0.0
  %1261 = vmatmul.mubr.f32.gmra.mrb[0].mxu0 %v1039
  %v1262 = vpop.f32.mrb[0].mxu0
  %v1263 = vadd.f32 0.0, %v1262
  %v1264 = vpop.f32.mrb[0].mxu0
  %1265 = vdwg.mxu0
  %v1266 = vsel %vm944, 0.0, 0
  %1268 = vmatprep.subr.mxu0 0.0
  %1269 = vmatpush1.msra.mxu0 %v939
  %1270 = vmatprep.subr.mxu0 0.0
  %1271 = vmatpush1.msra.mxu0 %v940
  %1272 = vmatprep.subr.mxu0 0.0
  %1273 = vmatpush1.msra.mxu0 0.0
  %1274 = vmatprep.subr.mxu0 0.0
  %1275 = vmatpush1.msra.mxu0 0.0
  %1276 = vmatprep.subr.mxu0 0.0
  %1277 = vmatpush1.msra.mxu0 0.0
  %1278 = vmatprep.subr.mxu0 0.0
  %1279 = vmatpush1.msra.mxu0 0.0
  %1280 = vmatprep.subr.mxu0 0.0
  %1281 = vmatpush1.msra.mxu0 0.0
  %1282 = vmatprep.subr.mxu0 0.0
  %1283 = vmatpush1.msra.mxu0 0.0
  %1284 = vmatprep.subr.mxu0 0.0
  %1285 = vmatpush1.msra.mxu0 0.0
  %1286 = vmatprep.subr.mxu0 0.0
  %1287 = vmatpush1.msra.mxu0 0.0
  %1288 = vmatprep.subr.mxu0 0.0
  %1289 = vmatpush1.msra.mxu0 0.0
  %1290 = vmatprep.subr.mxu0 0.0
  %1291 = vmatpush1.msra.mxu0 0.0
  %1292 = vmatprep.subr.mxu0 0.0
  %1293 = vmatpush1.msra.mxu0 0.0
  %1294 = vmatprep.subr.mxu0 0.0
  %1295 = vmatpush1.msra.mxu0 0.0
  %1296 = vmatprep.subr.mxu0 0.0
  %1297 = vmatpush1.msra.mxu0 0.0
  %1298 = vmatprep.subr.mxu0 0.0
  %1299 = vmatpush1.msra.mxu0 0.0
  %1300 = vmatprep.subr.mxu0 0.0
  %1301 = vmatpush1.msra.mxu0 0.0
  %1302 = vmatprep.subr.mxu0 0.0
  %1303 = vmatpush1.msra.mxu0 0.0
  %1304 = vmatprep.subr.mxu0 0.0
  %1305 = vmatpush1.msra.mxu0 0.0
  %1306 = vmatprep.subr.mxu0 0.0
  %1307 = vmatpush1.msra.mxu0 0.0
  %1308 = vmatprep.subr.mxu0 0.0
  %1309 = vmatpush1.msra.mxu0 0.0
  %1310 = vmatprep.subr.mxu0 0.0
  %1311 = vmatpush1.msra.mxu0 0.0
  %1312 = vmatprep.subr.mxu0 0.0
  %1313 = vmatpush1.msra.mxu0 0.0
  %1314 = vmatprep.subr.mxu0 0.0
  %1315 = vmatpush1.msra.mxu0 0.0
  %1316 = vmatprep.subr.mxu0 0.0
  %1317 = vmatpush1.msra.mxu0 0.0
  %1318 = vmatprep.subr.mxu0 0.0
  %1319 = vmatpush1.msra.mxu0 0.0
  %1320 = vmatprep.subr.mxu0 0.0
  %1321 = vmatpush1.msra.mxu0 0.0
  %1322 = vmatprep.subr.mxu0 0.0
  %1323 = vmatpush1.msra.mxu0 0.0
  %1324 = vmatprep.subr.mxu0 0.0
  %1325 = vmatpush1.msra.mxu0 0.0
  %1326 = vmatprep.subr.mxu0 0.0
  %1327 = vmatpush1.msra.mxu0 0.0
  %1328 = vmatprep.subr.mxu0 0.0
  %1329 = vmatpush1.msra.mxu0 0.0
  %1330 = vmatprep.subr.mxu0 0.0
  %1331 = vmatpush1.msra.mxu0 0.0
  %1332 = vmatprep.mubr.f32.mxu0 0.0
  %1333 = vmatmul.mubr.f32.gmra.mrb[0].mxu0 %v1266
  %v1334 = vpop.f32.mrb[0].mxu0
  %v1335 = vadd.f32 %v1108, %v1334
  %v1336 = vpop.f32.mrb[0].mxu0
  %1337 = vmatprep.mubr.f32.mxu0 0.0
  %1338 = vmatmul.mubr.f32.gmra.mrb[0].mxu0 %v946
  %v1339 = vpop.f32.mrb[0].mxu0
  %v1340 = vadd.f32 %v1113, %v1339
  %v1341 = vpop.f32.mrb[0].mxu0
  %1342 = vmatprep.mubr.f32.mxu0 0.0
  %1343 = vmatmul.mubr.f32.gmra.mrb[0].mxu0 %v949
  %v1344 = vpop.f32.mrb[0].mxu0
  %v1345 = vadd.f32 %v1118, %v1344
  %v1346 = vpop.f32.mrb[0].mxu0
  %1347 = vmatprep.mubr.f32.mxu0 0.0
  %1348 = vmatmul.mubr.f32.gmra.mrb[0].mxu0 %v952
  %v1349 = vpop.f32.mrb[0].mxu0
  %v1350 = vadd.f32 %v1123, %v1349
  %v1351 = vpop.f32.mrb[0].mxu0
  %1352 = vmatprep.mubr.f32.mxu0 0.0
  %1353 = vmatmul.mubr.f32.gmra.mrb[0].mxu0 %v955
  %v1354 = vpop.f32.mrb[0].mxu0
  %v1355 = vadd.f32 %v1128, %v1354
  %v1356 = vpop.f32.mrb[0].mxu0
  %1357 = vmatprep.mubr.f32.mxu0 0.0
  %1358 = vmatmul.mubr.f32.gmra.mrb[0].mxu0 %v958
  %v1359 = vpop.f32.mrb[0].mxu0
  %v1360 = vadd.f32 %v1133, %v1359
  %v1361 = vpop.f32.mrb[0].mxu0
  %1362 = vmatprep.mubr.f32.mxu0 0.0
  %1363 = vmatmul.mubr.f32.gmra.mrb[0].mxu0 %v961
  %v1364 = vpop.f32.mrb[0].mxu0
  %v1365 = vadd.f32 %v1138, %v1364
  %v1366 = vpop.f32.mrb[0].mxu0
  %1367 = vmatprep.mubr.f32.mxu0 0.0
  %1368 = vmatmul.mubr.f32.gmra.mrb[0].mxu0 %v964
  %v1369 = vpop.f32.mrb[0].mxu0
  %v1370 = vadd.f32 %v1143, %v1369
  %v1371 = vpop.f32.mrb[0].mxu0
  %1372 = vmatprep.mubr.f32.mxu0 0.0
  %1373 = vmatmul.mubr.f32.gmra.mrb[0].mxu0 %v967
  %v1374 = vpop.f32.mrb[0].mxu0
  %v1375 = vadd.f32 %v1148, %v1374
  %v1376 = vpop.f32.mrb[0].mxu0
  %1377 = vmatprep.mubr.f32.mxu0 0.0
  %1378 = vmatmul.mubr.f32.gmra.mrb[0].mxu0 %v970
  %v1379 = vpop.f32.mrb[0].mxu0
  %v1380 = vadd.f32 %v1153, %v1379
  %v1381 = vpop.f32.mrb[0].mxu0
  %1382 = vmatprep.mubr.f32.mxu0 0.0
  %1383 = vmatmul.mubr.f32.gmra.mrb[0].mxu0 %v973
  %v1384 = vpop.f32.mrb[0].mxu0
  %v1385 = vadd.f32 %v1158, %v1384
  %v1386 = vpop.f32.mrb[0].mxu0
  %1387 = vmatprep.mubr.f32.mxu0 0.0
  %1388 = vmatmul.mubr.f32.gmra.mrb[0].mxu0 %v976
  %v1389 = vpop.f32.mrb[0].mxu0
  %v1390 = vadd.f32 %v1163, %v1389
  %v1391 = vpop.f32.mrb[0].mxu0
  %1392 = vmatprep.mubr.f32.mxu0 0.0
  %1393 = vmatmul.mubr.f32.gmra.mrb[0].mxu0 %v979
  %v1394 = vpop.f32.mrb[0].mxu0
  %v1395 = vadd.f32 %v1168, %v1394
  %v1396 = vpop.f32.mrb[0].mxu0
  %1397 = vmatprep.mubr.f32.mxu0 0.0
  %1398 = vmatmul.mubr.f32.gmra.mrb[0].mxu0 %v982
  %v1399 = vpop.f32.mrb[0].mxu0
  %v1400 = vadd.f32 %v1173, %v1399
  %v1401 = vpop.f32.mrb[0].mxu0
  %1402 = vmatprep.mubr.f32.mxu0 0.0
  %1403 = vmatmul.mubr.f32.gmra.mrb[0].mxu0 %v985
  %v1404 = vpop.f32.mrb[0].mxu0
  %v1405 = vadd.f32 %v1178, %v1404
  %v1406 = vpop.f32.mrb[0].mxu0
  %1407 = vmatprep.mubr.f32.mxu0 0.0
  %1408 = vmatmul.mubr.f32.gmra.mrb[0].mxu0 %v988
  %v1409 = vpop.f32.mrb[0].mxu0
  %v1410 = vadd.f32 %v1183, %v1409
  %v1411 = vpop.f32.mrb[0].mxu0
  %1412 = vmatprep.mubr.f32.mxu0 0.0
  %1413 = vmatmul.mubr.f32.gmra.mrb[0].mxu0 %v991
  %v1414 = vpop.f32.mrb[0].mxu0
  %v1415 = vadd.f32 %v1188, %v1414
  %v1416 = vpop.f32.mrb[0].mxu0
  %1417 = vmatprep.mubr.f32.mxu0 0.0
  %1418 = vmatmul.mubr.f32.gmra.mrb[0].mxu0 %v994
  %v1419 = vpop.f32.mrb[0].mxu0
  %v1420 = vadd.f32 %v1193, %v1419
  %v1421 = vpop.f32.mrb[0].mxu0
  %1422 = vmatprep.mubr.f32.mxu0 0.0
  %1423 = vmatmul.mubr.f32.gmra.mrb[0].mxu0 %v997
  %v1424 = vpop.f32.mrb[0].mxu0
  %v1425 = vadd.f32 %v1198, %v1424
  %v1426 = vpop.f32.mrb[0].mxu0
  %1427 = vmatprep.mubr.f32.mxu0 0.0
  %1428 = vmatmul.mubr.f32.gmra.mrb[0].mxu0 %v1000
  %v1429 = vpop.f32.mrb[0].mxu0
  %v1430 = vadd.f32 %v1203, %v1429
  %v1431 = vpop.f32.mrb[0].mxu0
  %1432 = vmatprep.mubr.f32.mxu0 0.0
  %1433 = vmatmul.mubr.f32.gmra.mrb[0].mxu0 %v1003
  %v1434 = vpop.f32.mrb[0].mxu0
  %v1435 = vadd.f32 %v1208, %v1434
  %v1436 = vpop.f32.mrb[0].mxu0
  %1437 = vmatprep.mubr.f32.mxu0 0.0
  %1438 = vmatmul.mubr.f32.gmra.mrb[0].mxu0 %v1006
  %v1439 = vpop.f32.mrb[0].mxu0
  %v1440 = vadd.f32 %v1213, %v1439
  %v1441 = vpop.f32.mrb[0].mxu0
  %1442 = vmatprep.mubr.f32.mxu0 0.0
  %1443 = vmatmul.mubr.f32.gmra.mrb[0].mxu0 %v1009
  %v1444 = vpop.f32.mrb[0].mxu0
  %v1445 = vadd.f32 %v1218, %v1444
  %v1446 = vpop.f32.mrb[0].mxu0
  %1447 = vmatprep.mubr.f32.mxu0 0.0
  %1448 = vmatmul.mubr.f32.gmra.mrb[0].mxu0 %v1012
  %v1449 = vpop.f32.mrb[0].mxu0
  %v1450 = vadd.f32 %v1223, %v1449
  %v1451 = vpop.f32.mrb[0].mxu0
  %1452 = vmatprep.mubr.f32.mxu0 0.0
  %1453 = vmatmul.mubr.f32.gmra.mrb[0].mxu0 %v1015
  %v1454 = vpop.f32.mrb[0].mxu0
  %v1455 = vadd.f32 %v1228, %v1454
  %v1456 = vpop.f32.mrb[0].mxu0
  %1457 = vmatprep.mubr.f32.mxu0 0.0
  %1458 = vmatmul.mubr.f32.gmra.mrb[0].mxu0 %v1018
  %v1459 = vpop.f32.mrb[0].mxu0
  %v1460 = vadd.f32 %v1233, %v1459
  %v1461 = vpop.f32.mrb[0].mxu0
  %1462 = vmatprep.mubr.f32.mxu0 0.0
  %1463 = vmatmul.mubr.f32.gmra.mrb[0].mxu0 %v1021
  %v1464 = vpop.f32.mrb[0].mxu0
  %v1465 = vadd.f32 %v1238, %v1464
  %v1466 = vpop.f32.mrb[0].mxu0
  %1467 = vmatprep.mubr.f32.mxu0 0.0
  %1468 = vmatmul.mubr.f32.gmra.mrb[0].mxu0 %v1024
  %v1469 = vpop.f32.mrb[0].mxu0
  %v1470 = vadd.f32 %v1243, %v1469
  %v1471 = vpop.f32.mrb[0].mxu0
  %1472 = vmatprep.mubr.f32.mxu0 0.0
  %1473 = vmatmul.mubr.f32.gmra.mrb[0].mxu0 %v1027
  %v1474 = vpop.f32.mrb[0].mxu0
  %v1475 = vadd.f32 %v1248, %v1474
  %v1476 = vpop.f32.mrb[0].mxu0
  %1477 = vmatprep.mubr.f32.mxu0 0.0
  %1478 = vmatmul.mubr.f32.gmra.mrb[0].mxu0 %v1030
  %v1479 = vpop.f32.mrb[0].mxu0
  %v1480 = vadd.f32 %v1253, %v1479
  %v1481 = vpop.f32.mrb[0].mxu0
  %1482 = vmatprep.mubr.f32.mxu0 0.0
  %1483 = vmatmul.mubr.f32.gmra.mrb[0].mxu0 %v1033
  %v1484 = vpop.f32.mrb[0].mxu0
  %v1485 = vadd.f32 %v1258, %v1484
  %v1486 = vpop.f32.mrb[0].mxu0
  %1487 = vmatprep.mubr.f32.mxu0 0.0
  %1488 = vmatmul.mubr.f32.gmra.mrb[0].mxu0 %v1036
  %v1489 = vpop.f32.mrb[0].mxu0
  %v1490 = vadd.f32 %v1263, %v1489
  %v1491 = vpop.f32.mrb[0].mxu0
  %1492 = vdwg.mxu0
  %v1493 = vld [vmem:[%s4] sm:$0x1]
  %v1495 = vlaneseq
  %v1496 = vshrl.u32 %v1495, 7
  %v1497 = vsub.s32 0, %v1496
  %v1498 = vrot.slane %v1493, %v1497
  %v1500 = vadd.f32 %v1335, %v1498
  %v1501 = vadd.f32 %v1340, %v1498
  %v1502 = vadd.f32 %v1345, %v1498
  %v1503 = vadd.f32 %v1350, %v1498
  %v1504 = vadd.f32 %v1355, %v1498
  %v1505 = vadd.f32 %v1360, %v1498
  %v1506 = vadd.f32 %v1365, %v1498
  %v1507 = vadd.f32 %v1370, %v1498
  %v1508 = vadd.f32 %v1375, %v1498
  %v1509 = vadd.f32 %v1380, %v1498
  %v1510 = vadd.f32 %v1385, %v1498
  %v1511 = vadd.f32 %v1390, %v1498
  %v1512 = vadd.f32 %v1395, %v1498
  %v1513 = vadd.f32 %v1400, %v1498
  %v1514 = vadd.f32 %v1405, %v1498
  %v1515 = vadd.f32 %v1410, %v1498
  %v1516 = vadd.f32 %v1415, %v1498
  %v1517 = vadd.f32 %v1420, %v1498
  %v1518 = vadd.f32 %v1425, %v1498
  %v1519 = vadd.f32 %v1430, %v1498
  %v1520 = vadd.f32 %v1435, %v1498
  %v1521 = vadd.f32 %v1440, %v1498
  %v1522 = vadd.f32 %v1445, %v1498
  %v1523 = vadd.f32 %v1450, %v1498
  %v1524 = vadd.f32 %v1455, %v1498
  %v1525 = vadd.f32 %v1460, %v1498
  %v1526 = vadd.f32 %v1465, %v1498
  %v1527 = vadd.f32 %v1470, %v1498
  %v1528 = vadd.f32 %v1475, %v1498
  %v1529 = vadd.f32 %v1480, %v1498
  %v1530 = vadd.f32 %v1485, %v1498
  %v1531 = vadd.f32 %v1490, %v1498
  %v1532 = vmax.f32 %v1500, 0.0
  %v1533 = vmax.f32 %v1501, 0.0
  %v1534 = vmax.f32 %v1502, 0.0
  %v1535 = vmax.f32 %v1503, 0.0
  %v1536 = vmax.f32 %v1504, 0.0
  %v1537 = vmax.f32 %v1505, 0.0
  %v1538 = vmax.f32 %v1506, 0.0
  %v1539 = vmax.f32 %v1507, 0.0
  %v1540 = vmax.f32 %v1508, 0.0
  %v1541 = vmax.f32 %v1509, 0.0
  %v1542 = vmax.f32 %v1510, 0.0
  %v1543 = vmax.f32 %v1511, 0.0
  %v1544 = vmax.f32 %v1512, 0.0
  %v1545 = vmax.f32 %v1513, 0.0
  %v1546 = vmax.f32 %v1514, 0.0
  %v1547 = vmax.f32 %v1515, 0.0
  %v1548 = vmax.f32 %v1516, 0.0
  %v1549 = vmax.f32 %v1517, 0.0
  %v1550 = vmax.f32 %v1518, 0.0
  %v1551 = vmax.f32 %v1519, 0.0
  %v1552 = vmax.f32 %v1520, 0.0
  %v1553 = vmax.f32 %v1521, 0.0
  %v1554 = vmax.f32 %v1522, 0.0
  %v1555 = vmax.f32 %v1523, 0.0
  %v1556 = vmax.f32 %v1524, 0.0
  %v1557 = vmax.f32 %v1525, 0.0
  %v1558 = vmax.f32 %v1526, 0.0
  %v1559 = vmax.f32 %v1527, 0.0
  %v1560 = vmax.f32 %v1528, 0.0
  %v1561 = vmax.f32 %v1529, 0.0
  %v1562 = vmax.f32 %v1530, 0.0
  %v1563 = vmax.f32 %v1531, 0.0
  %v1564 = vadd.f32 %v1532, %v254
  %v1565 = vadd.f32 %v1533, %v259
  %v1566 = vadd.f32 %v1534, %v264
  %v1567 = vadd.f32 %v1535, %v269
  %v1568 = vadd.f32 %v1536, %v274
  %v1569 = vadd.f32 %v1537, %v279
  %v1570 = vadd.f32 %v1538, %v284
  %v1571 = vadd.f32 %v1539, %v289
  %v1572 = vadd.f32 %v1540, %v294
  %v1573 = vadd.f32 %v1541, %v299
  %v1574 = vadd.f32 %v1542, %v304
  %v1575 = vadd.f32 %v1543, %v309
  %v1576 = vadd.f32 %v1544, %v314
  %v1577 = vadd.f32 %v1545, %v319
  %v1578 = vadd.f32 %v1546, %v324
  %v1579 = vadd.f32 %v1547, %v329
  %v1580 = vadd.f32 %v1548, %v334
  %v1581 = vadd.f32 %v1549, %v339
  %v1582 = vadd.f32 %v1550, %v344
  %v1583 = vadd.f32 %v1551, %v349
  %v1584 = vadd.f32 %v1552, %v354
  %v1585 = vadd.f32 %v1553, %v359
  %v1586 = vadd.f32 %v1554, %v364
  %v1587 = vadd.f32 %v1555, %v369
  %v1588 = vadd.f32 %v1556, %v374
  %v1589 = vadd.f32 %v1557, %v379
  %v1590 = vadd.f32 %v1558, %v384
  %v1591 = vadd.f32 %v1559, %v389
  %v1592 = vadd.f32 %v1560, %v394
  %v1593 = vadd.f32 %v1561, %v399
  %v1594 = vadd.f32 %v1562, %v404
  %v1595 = vadd.f32 %v1563, %v409
  %v1596 = vmax.f32 %v1564, 0.0
  %v1597 = vmax.f32 %v1565, 0.0
  %v1598 = vmax.f32 %v1566, 0.0
  %v1599 = vmax.f32 %v1567, 0.0
  %v1600 = vmax.f32 %v1568, 0.0
  %v1601 = vmax.f32 %v1569, 0.0
  %v1602 = vmax.f32 %v1570, 0.0
  %v1603 = vmax.f32 %v1571, 0.0
  %v1604 = vmax.f32 %v1572, 0.0
  %v1605 = vmax.f32 %v1573, 0.0
  %v1606 = vmax.f32 %v1574, 0.0
  %v1607 = vmax.f32 %v1575, 0.0
  %v1608 = vmax.f32 %v1576, 0.0
  %v1609 = vmax.f32 %v1577, 0.0
  %v1610 = vmax.f32 %v1578, 0.0
  %v1611 = vmax.f32 %v1579, 0.0
  %v1612 = vmax.f32 %v1580, 0.0
  %v1613 = vmax.f32 %v1581, 0.0
  %v1614 = vmax.f32 %v1582, 0.0
  %v1615 = vmax.f32 %v1583, 0.0
  %v1616 = vmax.f32 %v1584, 0.0
  %v1617 = vmax.f32 %v1585, 0.0
  %v1618 = vmax.f32 %v1586, 0.0
  %v1619 = vmax.f32 %v1587, 0.0
  %v1620 = vmax.f32 %v1588, 0.0
  %v1621 = vmax.f32 %v1589, 0.0
  %v1622 = vmax.f32 %v1590, 0.0
  %v1623 = vmax.f32 %v1591, 0.0
  %v1624 = vmax.f32 %v1592, 0.0
  %v1625 = vmax.f32 %v1593, 0.0
  %v1626 = vmax.f32 %v1594, 0.0
  %v1627 = vmax.f32 %v1595, 0.0
  %v1628 = vld [vmem:[%s7] sm:$0xff]
  %v1629 = vld [vmem:[%s7 + $0x8] sm:$0xff]
  %s1630 = scalar_lea.vmem %s7, 16
  %v1631 = vld [vmem:[%s1630] sm:$0xff]
  %v1632 = vld [vmem:[%s1630 + $0x8] sm:$0xff]
  %v1634 = vsel %vm944, %v1596, 0
  %v1637 = vsel %vm944, %v1597, 0
  %v1640 = vsel %vm944, %v1598, 0
  %v1643 = vsel %vm944, %v1599, 0
  %v1646 = vsel %vm944, %v1600, 0
  %v1649 = vsel %vm944, %v1601, 0
  %v1652 = vsel %vm944, %v1602, 0
  %v1655 = vsel %vm944, %v1603, 0
  %v1658 = vsel %vm944, %v1604, 0
  %v1661 = vsel %vm944, %v1605, 0
  %v1664 = vsel %vm944, %v1606, 0
  %v1667 = vsel %vm944, %v1607, 0
  %v1670 = vsel %vm944, %v1608, 0
  %v1673 = vsel %vm944, %v1609, 0
  %v1676 = vsel %vm944, %v1610, 0
  %v1679 = vsel %vm944, %v1611, 0
  %v1682 = vsel %vm944, %v1612, 0
  %v1685 = vsel %vm944, %v1613, 0
  %v1688 = vsel %vm944, %v1614, 0
  %v1691 = vsel %vm944, %v1615, 0
  %v1694 = vsel %vm944, %v1616, 0
  %v1697 = vsel %vm944, %v1617, 0
  %v1700 = vsel %vm944, %v1618, 0
  %v1703 = vsel %vm944, %v1619, 0
  %v1706 = vsel %vm944, %v1620, 0
  %v1709 = vsel %vm944, %v1621, 0
  %v1712 = vsel %vm944, %v1622, 0
  %v1715 = vsel %vm944, %v1623, 0
  %v1718 = vsel %vm944, %v1624, 0
  %v1721 = vsel %vm944, %v1625, 0
  %v1724 = vsel %vm944, %v1626, 0
  %v1727 = vsel %vm944, %v1627, 0
  %1729 = vmatprep.subr.mxu0 0.0
  %1730 = vmatpush1.msra.mxu0 %v1631
  %1731 = vmatprep.subr.mxu0 0.0
  %1732 = vmatpush1.msra.mxu0 %v1632
  %1733 = vmatprep.subr.mxu0 0.0
  %1734 = vmatpush1.msra.mxu0 0.0
  %1735 = vmatprep.subr.mxu0 0.0
  %1736 = vmatpush1.msra.mxu0 0.0
  %1737 = vmatprep.subr.mxu0 0.0
  %1738 = vmatpush1.msra.mxu0 0.0
  %1739 = vmatprep.subr.mxu0 0.0
  %1740 = vmatpush1.msra.mxu0 0.0
  %1741 = vmatprep.subr.mxu0 0.0
  %1742 = vmatpush1.msra.mxu0 0.0
  %1743 = vmatprep.subr.mxu0 0.0
  %1744 = vmatpush1.msra.mxu0 0.0
  %1745 = vmatprep.subr.mxu0 0.0
  %1746 = vmatpush1.msra.mxu0 0.0
  %1747 = vmatprep.subr.mxu0 0.0
  %1748 = vmatpush1.msra.mxu0 0.0
  %1749 = vmatprep.subr.mxu0 0.0
  %1750 = vmatpush1.msra.mxu0 0.0
  %1751 = vmatprep.subr.mxu0 0.0
  %1752 = vmatpush1.msra.mxu0 0.0
  %1753 = vmatprep.subr.mxu0 0.0
  %1754 = vmatpush1.msra.mxu0 0.0
  %1755 = vmatprep.subr.mxu0 0.0
  %1756 = vmatpush1.msra.mxu0 0.0
  %1757 = vmatprep.subr.mxu0 0.0
  %1758 = vmatpush1.msra.mxu0 0.0
  %1759 = vmatprep.subr.mxu0 0.0
  %1760 = vmatpush1.msra.mxu0 0.0
  %1761 = vmatprep.subr.mxu0 0.0
  %1762 = vmatpush1.msra.mxu0 0.0
  %1763 = vmatprep.subr.mxu0 0.0
  %1764 = vmatpush1.msra.mxu0 0.0
  %1765 = vmatprep.subr.mxu0 0.0
  %1766 = vmatpush1.msra.mxu0 0.0
  %1767 = vmatprep.subr.mxu0 0.0
  %1768 = vmatpush1.msra.mxu0 0.0
  %1769 = vmatprep.subr.mxu0 0.0
  %1770 = vmatpush1.msra.mxu0 0.0
  %1771 = vmatprep.subr.mxu0 0.0
  %1772 = vmatpush1.msra.mxu0 0.0
  %1773 = vmatprep.subr.mxu0 0.0
  %1774 = vmatpush1.msra.mxu0 0.0
  %1775 = vmatprep.subr.mxu0 0.0
  %1776 = vmatpush1.msra.mxu0 0.0
  %1777 = vmatprep.subr.mxu0 0.0
  %1778 = vmatpush1.msra.mxu0 0.0
  %1779 = vmatprep.subr.mxu0 0.0
  %1780 = vmatpush1.msra.mxu0 0.0
  %1781 = vmatprep.subr.mxu0 0.0
  %1782 = vmatpush1.msra.mxu0 0.0
  %1783 = vmatprep.subr.mxu0 0.0
  %1784 = vmatpush1.msra.mxu0 0.0
  %1785 = vmatprep.subr.mxu0 0.0
  %1786 = vmatpush1.msra.mxu0 0.0
  %1787 = vmatprep.subr.mxu0 0.0
  %1788 = vmatpush1.msra.mxu0 0.0
  %1789 = vmatprep.subr.mxu0 0.0
  %1790 = vmatpush1.msra.mxu0 0.0
  %1791 = vmatprep.subr.mxu0 0.0
  %1792 = vmatpush1.msra.mxu0 0.0
  %1793 = vmatprep.mubr.f32.mxu0 0.0
  %1794 = vmatmul.mubr.f32.gmra.mrb[0].mxu0 %v1634
  %v1795 = vpop.f32.mrb[0].mxu0
  %v1796 = vadd.f32 0.0, %v1795
  %v1797 = vpop.f32.mrb[0].mxu0
  %1798 = vmatprep.mubr.f32.mxu0 0.0
  %1799 = vmatmul.mubr.f32.gmra.mrb[0].mxu0 %v1637
  %v1800 = vpop.f32.mrb[0].mxu0
  %v1801 = vadd.f32 0.0, %v1800
  %v1802 = vpop.f32.mrb[0].mxu0
  %1803 = vmatprep.mubr.f32.mxu0 0.0
  %1804 = vmatmul.mubr.f32.gmra.mrb[0].mxu0 %v1640
  %v1805 = vpop.f32.mrb[0].mxu0
  %v1806 = vadd.f32 0.0, %v1805
  %v1807 = vpop.f32.mrb[0].mxu0
  %1808 = vmatprep.mubr.f32.mxu0 0.0
  %1809 = vmatmul.mubr.f32.gmra.mrb[0].mxu0 %v1643
  %v1810 = vpop.f32.mrb[0].mxu0
  %v1811 = vadd.f32 0.0, %v1810
  %v1812 = vpop.f32.mrb[0].mxu0
  %1813 = vmatprep.mubr.f32.mxu0 0.0
  %1814 = vmatmul.mubr.f32.gmra.mrb[0].mxu0 %v1646
  %v1815 = vpop.f32.mrb[0].mxu0
  %v1816 = vadd.f32 0.0, %v1815
  %v1817 = vpop.f32.mrb[0].mxu0
  %1818 = vmatprep.mubr.f32.mxu0 0.0
  %1819 = vmatmul.mubr.f32.gmra.mrb[0].mxu0 %v1649
  %v1820 = vpop.f32.mrb[0].mxu0
  %v1821 = vadd.f32 0.0, %v1820
  %v1822 = vpop.f32.mrb[0].mxu0
  %1823 = vmatprep.mubr.f32.mxu0 0.0
  %1824 = vmatmul.mubr.f32.gmra.mrb[0].mxu0 %v1652
  %v1825 = vpop.f32.mrb[0].mxu0
  %v1826 = vadd.f32 0.0, %v1825
  %v1827 = vpop.f32.mrb[0].mxu0
  %1828 = vmatprep.mubr.f32.mxu0 0.0
  %1829 = vmatmul.mubr.f32.gmra.mrb[0].mxu0 %v1655
  %v1830 = vpop.f32.mrb[0].mxu0
  %v1831 = vadd.f32 0.0, %v1830
  %v1832 = vpop.f32.mrb[0].mxu0
  %1833 = vmatprep.mubr.f32.mxu0 0.0
  %1834 = vmatmul.mubr.f32.gmra.mrb[0].mxu0 %v1658
  %v1835 = vpop.f32.mrb[0].mxu0
  %v1836 = vadd.f32 0.0, %v1835
  %v1837 = vpop.f32.mrb[0].mxu0
  %1838 = vmatprep.mubr.f32.mxu0 0.0
  %1839 = vmatmul.mubr.f32.gmra.mrb[0].mxu0 %v1661
  %v1840 = vpop.f32.mrb[0].mxu0
  %v1841 = vadd.f32 0.0, %v1840
  %v1842 = vpop.f32.mrb[0].mxu0
  %1843 = vmatprep.mubr.f32.mxu0 0.0
  %1844 = vmatmul.mubr.f32.gmra.mrb[0].mxu0 %v1664
  %v1845 = vpop.f32.mrb[0].mxu0
  %v1846 = vadd.f32 0.0, %v1845
  %v1847 = vpop.f32.mrb[0].mxu0
  %1848 = vmatprep.mubr.f32.mxu0 0.0
  %1849 = vmatmul.mubr.f32.gmra.mrb[0].mxu0 %v1667
  %v1850 = vpop.f32.mrb[0].mxu0
  %v1851 = vadd.f32 0.0, %v1850
  %v1852 = vpop.f32.mrb[0].mxu0
  %1853 = vmatprep.mubr.f32.mxu0 0.0
  %1854 = vmatmul.mubr.f32.gmra.mrb[0].mxu0 %v1670
  %v1855 = vpop.f32.mrb[0].mxu0
  %v1856 = vadd.f32 0.0, %v1855
  %v1857 = vpop.f32.mrb[0].mxu0
  %1858 = vmatprep.mubr.f32.mxu0 0.0
  %1859 = vmatmul.mubr.f32.gmra.mrb[0].mxu0 %v1673
  %v1860 = vpop.f32.mrb[0].mxu0
  %v1861 = vadd.f32 0.0, %v1860
  %v1862 = vpop.f32.mrb[0].mxu0
  %1863 = vmatprep.mubr.f32.mxu0 0.0
  %1864 = vmatmul.mubr.f32.gmra.mrb[0].mxu0 %v1676
  %v1865 = vpop.f32.mrb[0].mxu0
  %v1866 = vadd.f32 0.0, %v1865
  %v1867 = vpop.f32.mrb[0].mxu0
  %1868 = vmatprep.mubr.f32.mxu0 0.0
  %1869 = vmatmul.mubr.f32.gmra.mrb[0].mxu0 %v1679
  %v1870 = vpop.f32.mrb[0].mxu0
  %v1871 = vadd.f32 0.0, %v1870
  %v1872 = vpop.f32.mrb[0].mxu0
  %1873 = vmatprep.mubr.f32.mxu0 0.0
  %1874 = vmatmul.mubr.f32.gmra.mrb[0].mxu0 %v1682
  %v1875 = vpop.f32.mrb[0].mxu0
  %v1876 = vadd.f32 0.0, %v1875
  %v1877 = vpop.f32.mrb[0].mxu0
  %1878 = vmatprep.mubr.f32.mxu0 0.0
  %1879 = vmatmul.mubr.f32.gmra.mrb[0].mxu0 %v1685
  %v1880 = vpop.f32.mrb[0].mxu0
  %v1881 = vadd.f32 0.0, %v1880
  %v1882 = vpop.f32.mrb[0].mxu0
  %1883 = vmatprep.mubr.f32.mxu0 0.0
  %1884 = vmatmul.mubr.f32.gmra.mrb[0].mxu0 %v1688
  %v1885 = vpop.f32.mrb[0].mxu0
  %v1886 = vadd.f32 0.0, %v1885
  %v1887 = vpop.f32.mrb[0].mxu0
  %1888 = vmatprep.mubr.f32.mxu0 0.0
  %1889 = vmatmul.mubr.f32.gmra.mrb[0].mxu0 %v1691
  %v1890 = vpop.f32.mrb[0].mxu0
  %v1891 = vadd.f32 0.0, %v1890
  %v1892 = vpop.f32.mrb[0].mxu0
  %1893 = vmatprep.mubr.f32.mxu0 0.0
  %1894 = vmatmul.mubr.f32.gmra.mrb[0].mxu0 %v1694
  %v1895 = vpop.f32.mrb[0].mxu0
  %v1896 = vadd.f32 0.0, %v1895
  %v1897 = vpop.f32.mrb[0].mxu0
  %1898 = vmatprep.mubr.f32.mxu0 0.0
  %1899 = vmatmul.mubr.f32.gmra.mrb[0].mxu0 %v1697
  %v1900 = vpop.f32.mrb[0].mxu0
  %v1901 = vadd.f32 0.0, %v1900
  %v1902 = vpop.f32.mrb[0].mxu0
  %1903 = vmatprep.mubr.f32.mxu0 0.0
  %1904 = vmatmul.mubr.f32.gmra.mrb[0].mxu0 %v1700
  %v1905 = vpop.f32.mrb[0].mxu0
  %v1906 = vadd.f32 0.0, %v1905
  %v1907 = vpop.f32.mrb[0].mxu0
  %1908 = vmatprep.mubr.f32.mxu0 0.0
  %1909 = vmatmul.mubr.f32.gmra.mrb[0].mxu0 %v1703
  %v1910 = vpop.f32.mrb[0].mxu0
  %v1911 = vadd.f32 0.0, %v1910
  %v1912 = vpop.f32.mrb[0].mxu0
  %1913 = vmatprep.mubr.f32.mxu0 0.0
  %1914 = vmatmul.mubr.f32.gmra.mrb[0].mxu0 %v1706
  %v1915 = vpop.f32.mrb[0].mxu0
  %v1916 = vadd.f32 0.0, %v1915
  %v1917 = vpop.f32.mrb[0].mxu0
  %1918 = vmatprep.mubr.f32.mxu0 0.0
  %1919 = vmatmul.mubr.f32.gmra.mrb[0].mxu0 %v1709
  %v1920 = vpop.f32.mrb[0].mxu0
  %v1921 = vadd.f32 0.0, %v1920
  %v1922 = vpop.f32.mrb[0].mxu0
  %1923 = vmatprep.mubr.f32.mxu0 0.0
  %1924 = vmatmul.mubr.f32.gmra.mrb[0].mxu0 %v1712
  %v1925 = vpop.f32.mrb[0].mxu0
  %v1926 = vadd.f32 0.0, %v1925
  %v1927 = vpop.f32.mrb[0].mxu0
  %1928 = vmatprep.mubr.f32.mxu0 0.0
  %1929 = vmatmul.mubr.f32.gmra.mrb[0].mxu0 %v1715
  %v1930 = vpop.f32.mrb[0].mxu0
  %v1931 = vadd.f32 0.0, %v1930
  %v1932 = vpop.f32.mrb[0].mxu0
  %1933 = vmatprep.mubr.f32.mxu0 0.0
  %1934 = vmatmul.mubr.f32.gmra.mrb[0].mxu0 %v1718
  %v1935 = vpop.f32.mrb[0].mxu0
  %v1936 = vadd.f32 0.0, %v1935
  %v1937 = vpop.f32.mrb[0].mxu0
  %1938 = vmatprep.mubr.f32.mxu0 0.0
  %1939 = vmatmul.mubr.f32.gmra.mrb[0].mxu0 %v1721
  %v1940 = vpop.f32.mrb[0].mxu0
  %v1941 = vadd.f32 0.0, %v1940
  %v1942 = vpop.f32.mrb[0].mxu0
  %1943 = vmatprep.mubr.f32.mxu0 0.0
  %1944 = vmatmul.mubr.f32.gmra.mrb[0].mxu0 %v1724
  %v1945 = vpop.f32.mrb[0].mxu0
  %v1946 = vadd.f32 0.0, %v1945
  %v1947 = vpop.f32.mrb[0].mxu0
  %1948 = vmatprep.mubr.f32.mxu0 0.0
  %1949 = vmatmul.mubr.f32.gmra.mrb[0].mxu0 %v1727
  %v1950 = vpop.f32.mrb[0].mxu0
  %v1951 = vadd.f32 0.0, %v1950
  %v1952 = vpop.f32.mrb[0].mxu0
  %1953 = vdwg.mxu0
  %1954 = vmatprep.subr.mxu0 0.0
  %1955 = vmatpush1.msra.mxu0 %v1628
  %1956 = vmatprep.subr.mxu0 0.0
  %1957 = vmatpush1.msra.mxu0 %v1629
  %1958 = vmatprep.subr.mxu0 0.0
  %1959 = vmatpush1.msra.mxu0 0.0
  %1960 = vmatprep.subr.mxu0 0.0
  %1961 = vmatpush1.msra.mxu0 0.0
  %1962 = vmatprep.subr.mxu0 0.0
  %1963 = vmatpush1.msra.mxu0 0.0
  %1964 = vmatprep.subr.mxu0 0.0
  %1965 = vmatpush1.msra.mxu0 0.0
  %1966 = vmatprep.subr.mxu0 0.0
  %1967 = vmatpush1.msra.mxu0 0.0
  %1968 = vmatprep.subr.mxu0 0.0
  %1969 = vmatpush1.msra.mxu0 0.0
  %1970 = vmatprep.subr.mxu0 0.0
  %1971 = vmatpush1.msra.mxu0 0.0
  %1972 = vmatprep.subr.mxu0 0.0
  %1973 = vmatpush1.msra.mxu0 0.0
  %1974 = vmatprep.subr.mxu0 0.0
  %1975 = vmatpush1.msra.mxu0 0.0
  %1976 = vmatprep.subr.mxu0 0.0
  %1977 = vmatpush1.msra.mxu0 0.0
  %1978 = vmatprep.subr.mxu0 0.0
  %1979 = vmatpush1.msra.mxu0 0.0
  %1980 = vmatprep.subr.mxu0 0.0
  %1981 = vmatpush1.msra.mxu0 0.0
  %1982 = vmatprep.subr.mxu0 0.0
  %1983 = vmatpush1.msra.mxu0 0.0
  %1984 = vmatprep.subr.mxu0 0.0
  %1985 = vmatpush1.msra.mxu0 0.0
  %1986 = vmatprep.subr.mxu0 0.0
  %1987 = vmatpush1.msra.mxu0 0.0
  %1988 = vmatprep.subr.mxu0 0.0
  %1989 = vmatpush1.msra.mxu0 0.0
  %1990 = vmatprep.subr.mxu0 0.0
  %1991 = vmatpush1.msra.mxu0 0.0
  %1992 = vmatprep.subr.mxu0 0.0
  %1993 = vmatpush1.msra.mxu0 0.0
  %1994 = vmatprep.subr.mxu0 0.0
  %1995 = vmatpush1.msra.mxu0 0.0
  %1996 = vmatprep.subr.mxu0 0.0
  %1997 = vmatpush1.msra.mxu0 0.0
  %1998 = vmatprep.subr.mxu0 0.0
  %1999 = vmatpush1.msra.mxu0 0.0
  %2000 = vmatprep.subr.mxu0 0.0
  %2001 = vmatpush1.msra.mxu0 0.0
  %2002 = vmatprep.subr.mxu0 0.0
  %2003 = vmatpush1.msra.mxu0 0.0
  %2004 = vmatprep.subr.mxu0 0.0
  %2005 = vmatpush1.msra.mxu0 0.0
  %2006 = vmatprep.subr.mxu0 0.0
  %2007 = vmatpush1.msra.mxu0 0.0
  %2008 = vmatprep.subr.mxu0 0.0
  %2009 = vmatpush1.msra.mxu0 0.0
  %2010 = vmatprep.subr.mxu0 0.0
  %2011 = vmatpush1.msra.mxu0 0.0
  %2012 = vmatprep.subr.mxu0 0.0
  %2013 = vmatpush1.msra.mxu0 0.0
  %2014 = vmatprep.subr.mxu0 0.0
  %2015 = vmatpush1.msra.mxu0 0.0
  %2016 = vmatprep.subr.mxu0 0.0
  %2017 = vmatpush1.msra.mxu0 0.0
  %2018 = vmatprep.mubr.f32.mxu0 0.0
  %2019 = vmatmul.mubr.f32.gmra.mrb[0].mxu0 %v1266
  %v2020 = vpop.f32.mrb[0].mxu0
  %v2021 = vadd.f32 %v1796, %v2020
  %v2022 = vpop.f32.mrb[0].mxu0
  %2023 = vmatprep.mubr.f32.mxu0 0.0
  %2024 = vmatmul.mubr.f32.gmra.mrb[0].mxu0 %v1266
  %v2025 = vpop.f32.mrb[0].mxu0
  %v2026 = vadd.f32 %v1801, %v2025
  %v2027 = vpop.f32.mrb[0].mxu0
  %2028 = vmatprep.mubr.f32.mxu0 0.0
  %2029 = vmatmul.mubr.f32.gmra.mrb[0].mxu0 %v1634
  %v2030 = vpop.f32.mrb[0].mxu0
  %v2031 = vadd.f32 %v1806, %v2030
  %v2032 = vpop.f32.mrb[0].mxu0
  %2033 = vmatprep.mubr.f32.mxu0 0.0
  %2034 = vmatmul.mubr.f32.gmra.mrb[0].mxu0 %v1637
  %v2035 = vpop.f32.mrb[0].mxu0
  %v2036 = vadd.f32 %v1811, %v2035
  %v2037 = vpop.f32.mrb[0].mxu0
  %2038 = vmatprep.mubr.f32.mxu0 0.0
  %2039 = vmatmul.mubr.f32.gmra.mrb[0].mxu0 %v1640
  %v2040 = vpop.f32.mrb[0].mxu0
  %v2041 = vadd.f32 %v1816, %v2040
  %v2042 = vpop.f32.mrb[0].mxu0
  %2043 = vmatprep.mubr.f32.mxu0 0.0
  %2044 = vmatmul.mubr.f32.gmra.mrb[0].mxu0 %v1643
  %v2045 = vpop.f32.mrb[0].mxu0
  %v2046 = vadd.f32 %v1821, %v2045
  %v2047 = vpop.f32.mrb[0].mxu0
  %2048 = vmatprep.mubr.f32.mxu0 0.0
  %2049 = vmatmul.mubr.f32.gmra.mrb[0].mxu0 %v1646
  %v2050 = vpop.f32.mrb[0].mxu0
  %v2051 = vadd.f32 %v1826, %v2050
  %v2052 = vpop.f32.mrb[0].mxu0
  %2053 = vmatprep.mubr.f32.mxu0 0.0
  %2054 = vmatmul.mubr.f32.gmra.mrb[0].mxu0 %v1649
  %v2055 = vpop.f32.mrb[0].mxu0
  %v2056 = vadd.f32 %v1831, %v2055
  %v2057 = vpop.f32.mrb[0].mxu0
  %2058 = vmatprep.mubr.f32.mxu0 0.0
  %2059 = vmatmul.mubr.f32.gmra.mrb[0].mxu0 %v1652
  %v2060 = vpop.f32.mrb[0].mxu0
  %v2061 = vadd.f32 %v1836, %v2060
  %v2062 = vpop.f32.mrb[0].mxu0
  %2063 = vmatprep.mubr.f32.mxu0 0.0
  %2064 = vmatmul.mubr.f32.gmra.mrb[0].mxu0 %v1655
  %v2065 = vpop.f32.mrb[0].mxu0
  %v2066 = vadd.f32 %v1841, %v2065
  %v2067 = vpop.f32.mrb[0].mxu0
  %2068 = vmatprep.mubr.f32.mxu0 0.0
  %2069 = vmatmul.mubr.f32.gmra.mrb[0].mxu0 %v1658
  %v2070 = vpop.f32.mrb[0].mxu0
  %v2071 = vadd.f32 %v1846, %v2070
  %v2072 = vpop.f32.mrb[0].mxu0
  %2073 = vmatprep.mubr.f32.mxu0 0.0
  %2074 = vmatmul.mubr.f32.gmra.mrb[0].mxu0 %v1661
  %v2075 = vpop.f32.mrb[0].mxu0
  %v2076 = vadd.f32 %v1851, %v2075
  %v2077 = vpop.f32.mrb[0].mxu0
  %2078 = vmatprep.mubr.f32.mxu0 0.0
  %2079 = vmatmul.mubr.f32.gmra.mrb[0].mxu0 %v1664
  %v2080 = vpop.f32.mrb[0].mxu0
  %v2081 = vadd.f32 %v1856, %v2080
  %v2082 = vpop.f32.mrb[0].mxu0
  %2083 = vmatprep.mubr.f32.mxu0 0.0
  %2084 = vmatmul.mubr.f32.gmra.mrb[0].mxu0 %v1667
  %v2085 = vpop.f32.mrb[0].mxu0
  %v2086 = vadd.f32 %v1861, %v2085
  %v2087 = vpop.f32.mrb[0].mxu0
  %2088 = vmatprep.mubr.f32.mxu0 0.0
  %2089 = vmatmul.mubr.f32.gmra.mrb[0].mxu0 %v1670
  %v2090 = vpop.f32.mrb[0].mxu0
  %v2091 = vadd.f32 %v1866, %v2090
  %v2092 = vpop.f32.mrb[0].mxu0
  %2093 = vmatprep.mubr.f32.mxu0 0.0
  %2094 = vmatmul.mubr.f32.gmra.mrb[0].mxu0 %v1673
  %v2095 = vpop.f32.mrb[0].mxu0
  %v2096 = vadd.f32 %v1871, %v2095
  %v2097 = vpop.f32.mrb[0].mxu0
  %2098 = vmatprep.mubr.f32.mxu0 0.0
  %2099 = vmatmul.mubr.f32.gmra.mrb[0].mxu0 %v1676
  %v2100 = vpop.f32.mrb[0].mxu0
  %v2101 = vadd.f32 %v1876, %v2100
  %v2102 = vpop.f32.mrb[0].mxu0
  %2103 = vmatprep.mubr.f32.mxu0 0.0
  %2104 = vmatmul.mubr.f32.gmra.mrb[0].mxu0 %v1679
  %v2105 = vpop.f32.mrb[0].mxu0
  %v2106 = vadd.f32 %v1881, %v2105
  %v2107 = vpop.f32.mrb[0].mxu0
  %2108 = vmatprep.mubr.f32.mxu0 0.0
  %2109 = vmatmul.mubr.f32.gmra.mrb[0].mxu0 %v1682
  %v2110 = vpop.f32.mrb[0].mxu0
  %v2111 = vadd.f32 %v1886, %v2110
  %v2112 = vpop.f32.mrb[0].mxu0
  %2113 = vmatprep.mubr.f32.mxu0 0.0
  %2114 = vmatmul.mubr.f32.gmra.mrb[0].mxu0 %v1685
  %v2115 = vpop.f32.mrb[0].mxu0
  %v2116 = vadd.f32 %v1891, %v2115
  %v2117 = vpop.f32.mrb[0].mxu0
  %2118 = vmatprep.mubr.f32.mxu0 0.0
  %2119 = vmatmul.mubr.f32.gmra.mrb[0].mxu0 %v1688
  %v2120 = vpop.f32.mrb[0].mxu0
  %v2121 = vadd.f32 %v1896, %v2120
  %v2122 = vpop.f32.mrb[0].mxu0
  %2123 = vmatprep.mubr.f32.mxu0 0.0
  %2124 = vmatmul.mubr.f32.gmra.mrb[0].mxu0 %v1691
  %v2125 = vpop.f32.mrb[0].mxu0
  %v2126 = vadd.f32 %v1901, %v2125
  %v2127 = vpop.f32.mrb[0].mxu0
  %2128 = vmatprep.mubr.f32.mxu0 0.0
  %2129 = vmatmul.mubr.f32.gmra.mrb[0].mxu0 %v1694
  %v2130 = vpop.f32.mrb[0].mxu0
  %v2131 = vadd.f32 %v1906, %v2130
  %v2132 = vpop.f32.mrb[0].mxu0
  %2133 = vmatprep.mubr.f32.mxu0 0.0
  %2134 = vmatmul.mubr.f32.gmra.mrb[0].mxu0 %v1697
  %v2135 = vpop.f32.mrb[0].mxu0
  %v2136 = vadd.f32 %v1911, %v2135
  %v2137 = vpop.f32.mrb[0].mxu0
  %2138 = vmatprep.mubr.f32.mxu0 0.0
  %2139 = vmatmul.mubr.f32.gmra.mrb[0].mxu0 %v1700
  %v2140 = vpop.f32.mrb[0].mxu0
  %v2141 = vadd.f32 %v1916, %v2140
  %v2142 = vpop.f32.mrb[0].mxu0
  %2143 = vmatprep.mubr.f32.mxu0 0.0
  %2144 = vmatmul.mubr.f32.gmra.mrb[0].mxu0 %v1703
  %v2145 = vpop.f32.mrb[0].mxu0
  %v2146 = vadd.f32 %v1921, %v2145
  %v2147 = vpop.f32.mrb[0].mxu0
  %2148 = vmatprep.mubr.f32.mxu0 0.0
  %2149 = vmatmul.mubr.f32.gmra.mrb[0].mxu0 %v1706
  %v2150 = vpop.f32.mrb[0].mxu0
  %v2151 = vadd.f32 %v1926, %v2150
  %v2152 = vpop.f32.mrb[0].mxu0
  %2153 = vmatprep.mubr.f32.mxu0 0.0
  %2154 = vmatmul.mubr.f32.gmra.mrb[0].mxu0 %v1709
  %v2155 = vpop.f32.mrb[0].mxu0
  %v2156 = vadd.f32 %v1931, %v2155
  %v2157 = vpop.f32.mrb[0].mxu0
  %2158 = vmatprep.mubr.f32.mxu0 0.0
  %2159 = vmatmul.mubr.f32.gmra.mrb[0].mxu0 %v1712
  %v2160 = vpop.f32.mrb[0].mxu0
  %v2161 = vadd.f32 %v1936, %v2160
  %v2162 = vpop.f32.mrb[0].mxu0
  %2163 = vmatprep.mubr.f32.mxu0 0.0
  %2164 = vmatmul.mubr.f32.gmra.mrb[0].mxu0 %v1715
  %v2165 = vpop.f32.mrb[0].mxu0
  %v2166 = vadd.f32 %v1941, %v2165
  %v2167 = vpop.f32.mrb[0].mxu0
  %2168 = vmatprep.mubr.f32.mxu0 0.0
  %2169 = vmatmul.mubr.f32.gmra.mrb[0].mxu0 %v1718
  %v2170 = vpop.f32.mrb[0].mxu0
  %v2171 = vadd.f32 %v1946, %v2170
  %v2172 = vpop.f32.mrb[0].mxu0
  %2173 = vmatprep.mubr.f32.mxu0 0.0
  %2174 = vmatmul.mubr.f32.gmra.mrb[0].mxu0 %v1721
  %v2175 = vpop.f32.mrb[0].mxu0
  %v2176 = vadd.f32 %v1951, %v2175
  %v2177 = vpop.f32.mrb[0].mxu0
  %2178 = vdwg.mxu0
  %v2179 = vld [vmem:[%s8] sm:$0x1]
  %v2181 = vlaneseq
  %v2182 = vshrl.u32 %v2181, 7
  %v2183 = vsub.s32 0, %v2182
  %v2184 = vrot.slane %v2179, %v2183
  %v2186 = vadd.f32 %v2021, %v2184
  %v2187 = vadd.f32 %v2026, %v2184
  %v2188 = vadd.f32 %v2031, %v2184
  %v2189 = vadd.f32 %v2036, %v2184
  %v2190 = vadd.f32 %v2041, %v2184
  %v2191 = vadd.f32 %v2046, %v2184
  %v2192 = vadd.f32 %v2051, %v2184
  %v2193 = vadd.f32 %v2056, %v2184
  %v2194 = vadd.f32 %v2061, %v2184
  %v2195 = vadd.f32 %v2066, %v2184
  %v2196 = vadd.f32 %v2071, %v2184
  %v2197 = vadd.f32 %v2076, %v2184
  %v2198 = vadd.f32 %v2081, %v2184
  %v2199 = vadd.f32 %v2086, %v2184
  %v2200 = vadd.f32 %v2091, %v2184
  %v2201 = vadd.f32 %v2096, %v2184
  %v2202 = vadd.f32 %v2101, %v2184
  %v2203 = vadd.f32 %v2106, %v2184
  %v2204 = vadd.f32 %v2111, %v2184
  %v2205 = vadd.f32 %v2116, %v2184
  %v2206 = vadd.f32 %v2121, %v2184
  %v2207 = vadd.f32 %v2126, %v2184
  %v2208 = vadd.f32 %v2131, %v2184
  %v2209 = vadd.f32 %v2136, %v2184
  %v2210 = vadd.f32 %v2141, %v2184
  %v2211 = vadd.f32 %v2146, %v2184
  %v2212 = vadd.f32 %v2151, %v2184
  %v2213 = vadd.f32 %v2156, %v2184
  %v2214 = vadd.f32 %v2161, %v2184
  %v2215 = vadd.f32 %v2166, %v2184
  %v2216 = vadd.f32 %v2171, %v2184
  %v2217 = vadd.f32 %v2176, %v2184
  %v2218 = vmax.f32 %v2186, 0.0
  %v2219 = vmax.f32 %v2187, 0.0
  %v2220 = vmax.f32 %v2188, 0.0
  %v2221 = vmax.f32 %v2189, 0.0
  %v2222 = vmax.f32 %v2190, 0.0
  %v2223 = vmax.f32 %v2191, 0.0
  %v2224 = vmax.f32 %v2192, 0.0
  %v2225 = vmax.f32 %v2193, 0.0
  %v2226 = vmax.f32 %v2194, 0.0
  %v2227 = vmax.f32 %v2195, 0.0
  %v2228 = vmax.f32 %v2196, 0.0
  %v2229 = vmax.f32 %v2197, 0.0
  %v2230 = vmax.f32 %v2198, 0.0
  %v2231 = vmax.f32 %v2199, 0.0
  %v2232 = vmax.f32 %v2200, 0.0
  %v2233 = vmax.f32 %v2201, 0.0
  %v2234 = vmax.f32 %v2202, 0.0
  %v2235 = vmax.f32 %v2203, 0.0
  %v2236 = vmax.f32 %v2204, 0.0
  %v2237 = vmax.f32 %v2205, 0.0
  %v2238 = vmax.f32 %v2206, 0.0
  %v2239 = vmax.f32 %v2207, 0.0
  %v2240 = vmax.f32 %v2208, 0.0
  %v2241 = vmax.f32 %v2209, 0.0
  %v2242 = vmax.f32 %v2210, 0.0
  %v2243 = vmax.f32 %v2211, 0.0
  %v2244 = vmax.f32 %v2212, 0.0
  %v2245 = vmax.f32 %v2213, 0.0
  %v2246 = vmax.f32 %v2214, 0.0
  %v2247 = vmax.f32 %v2215, 0.0
  %v2248 = vmax.f32 %v2216, 0.0
  %v2249 = vmax.f32 %v2217, 0.0
  %v2250 = vld [vmem:[%s9] sm:$0xff]
  %v2251 = vld [vmem:[%s9 + $0x8] sm:$0xff]
  %s2252 = scalar_lea.vmem %s9, 16
  %v2253 = vld [vmem:[%s2252] sm:$0xff]
  %v2254 = vld [vmem:[%s2252 + $0x8] sm:$0xff]
  %v2256 = vsel %vm944, %v2218, 0
  %v2259 = vsel %vm944, %v2219, 0
  %v2262 = vsel %vm944, %v2220, 0
  %v2265 = vsel %vm944, %v2221, 0
  %v2268 = vsel %vm944, %v2222, 0
  %v2271 = vsel %vm944, %v2223, 0
  %v2274 = vsel %vm944, %v2224, 0
  %v2277 = vsel %vm944, %v2225, 0
  %v2280 = vsel %vm944, %v2226, 0
  %v2283 = vsel %vm944, %v2227, 0
  %v2286 = vsel %vm944, %v2228, 0
  %v2289 = vsel %vm944, %v2229, 0
  %v2292 = vsel %vm944, %v2230, 0
  %v2295 = vsel %vm944, %v2231, 0
  %v2298 = vsel %vm944, %v2232, 0
  %v2301 = vsel %vm944, %v2233, 0
  %v2304 = vsel %vm944, %v2234, 0
  %v2307 = vsel %vm944, %v2235, 0
  %v2310 = vsel %vm944, %v2236, 0
  %v2313 = vsel %vm944, %v2237, 0
  %v2316 = vsel %vm944, %v2238, 0
  %v2319 = vsel %vm944, %v2239, 0
  %v2322 = vsel %vm944, %v2240, 0
  %v2325 = vsel %vm944, %v2241, 0
  %v2328 = vsel %vm944, %v2242, 0
  %v2331 = vsel %vm944, %v2243, 0
  %v2334 = vsel %vm944, %v2244, 0
  %v2337 = vsel %vm944, %v2245, 0
  %v2340 = vsel %vm944, %v2246, 0
  %v2343 = vsel %vm944, %v2247, 0
  %v2346 = vsel %vm944, %v2248, 0
  %v2349 = vsel %vm944, %v2249, 0
  %2351 = vmatprep.subr.mxu0 0.0
  %2352 = vmatpush1.msra.mxu0 %v2253
  %2353 = vmatprep.subr.mxu0 0.0
  %2354 = vmatpush1.msra.mxu0 %v2254
  %2355 = vmatprep.subr.mxu0 0.0
  %2356 = vmatpush1.msra.mxu0 0.0
  %2357 = vmatprep.subr.mxu0 0.0
  %2358 = vmatpush1.msra.mxu0 0.0
  %2359 = vmatprep.subr.mxu0 0.0
  %2360 = vmatpush1.msra.mxu0 0.0
  %2361 = vmatprep.subr.mxu0 0.0
  %2362 = vmatpush1.msra.mxu0 0.0
  %2363 = vmatprep.subr.mxu0 0.0
  %2364 = vmatpush1.msra.mxu0 0.0
  %2365 = vmatprep.subr.mxu0 0.0
  %2366 = vmatpush1.msra.mxu0 0.0
  %2367 = vmatprep.subr.mxu0 0.0
  %2368 = vmatpush1.msra.mxu0 0.0
  %2369 = vmatprep.subr.mxu0 0.0
  %2370 = vmatpush1.msra.mxu0 0.0
  %2371 = vmatprep.subr.mxu0 0.0
  %2372 = vmatpush1.msra.mxu0 0.0
  %2373 = vmatprep.subr.mxu0 0.0
  %2374 = vmatpush1.msra.mxu0 0.0
  %2375 = vmatprep.subr.mxu0 0.0
  %2376 = vmatpush1.msra.mxu0 0.0
  %2377 = vmatprep.subr.mxu0 0.0
  %2378 = vmatpush1.msra.mxu0 0.0
  %2379 = vmatprep.subr.mxu0 0.0
  %2380 = vmatpush1.msra.mxu0 0.0
  %2381 = vmatprep.subr.mxu0 0.0
  %2382 = vmatpush1.msra.mxu0 0.0
  %2383 = vmatprep.subr.mxu0 0.0
  %2384 = vmatpush1.msra.mxu0 0.0
  %2385 = vmatprep.subr.mxu0 0.0
  %2386 = vmatpush1.msra.mxu0 0.0
  %2387 = vmatprep.subr.mxu0 0.0
  %2388 = vmatpush1.msra.mxu0 0.0
  %2389 = vmatprep.subr.mxu0 0.0
  %2390 = vmatpush1.msra.mxu0 0.0
  %2391 = vmatprep.subr.mxu0 0.0
  %2392 = vmatpush1.msra.mxu0 0.0
  %2393 = vmatprep.subr.mxu0 0.0
  %2394 = vmatpush1.msra.mxu0 0.0
  %2395 = vmatprep.subr.mxu0 0.0
  %2396 = vmatpush1.msra.mxu0 0.0
  %2397 = vmatprep.subr.mxu0 0.0
  %2398 = vmatpush1.msra.mxu0 0.0
  %2399 = vmatprep.subr.mxu0 0.0
  %2400 = vmatpush1.msra.mxu0 0.0
  %2401 = vmatprep.subr.mxu0 0.0
  %2402 = vmatpush1.msra.mxu0 0.0
  %2403 = vmatprep.subr.mxu0 0.0
  %2404 = vmatpush1.msra.mxu0 0.0
  %2405 = vmatprep.subr.mxu0 0.0
  %2406 = vmatpush1.msra.mxu0 0.0
  %2407 = vmatprep.subr.mxu0 0.0
  %2408 = vmatpush1.msra.mxu0 0.0
  %2409 = vmatprep.subr.mxu0 0.0
  %2410 = vmatpush1.msra.mxu0 0.0
  %2411 = vmatprep.subr.mxu0 0.0
  %2412 = vmatpush1.msra.mxu0 0.0
  %2413 = vmatprep.subr.mxu0 0.0
  %2414 = vmatpush1.msra.mxu0 0.0
  %2415 = vmatprep.mubr.f32.mxu0 0.0
  %2416 = vmatmul.mubr.f32.gmra.mrb[0].mxu0 %v2256
  %v2417 = vpop.f32.mrb[0].mxu0
  %v2418 = vadd.f32 0.0, %v2417
  %v2419 = vpop.f32.mrb[0].mxu0
  %2420 = vmatprep.mubr.f32.mxu0 0.0
  %2421 = vmatmul.mubr.f32.gmra.mrb[0].mxu0 %v2259
  %v2422 = vpop.f32.mrb[0].mxu0
  %v2423 = vadd.f32 0.0, %v2422
  %v2424 = vpop.f32.mrb[0].mxu0
  %2425 = vmatprep.mubr.f32.mxu0 0.0
  %2426 = vmatmul.mubr.f32.gmra.mrb[0].mxu0 %v2262
  %v2427 = vpop.f32.mrb[0].mxu0
  %v2428 = vadd.f32 0.0, %v2427
  %v2429 = vpop.f32.mrb[0].mxu0
  %2430 = vmatprep.mubr.f32.mxu0 0.0
  %2431 = vmatmul.mubr.f32.gmra.mrb[0].mxu0 %v2265
  %v2432 = vpop.f32.mrb[0].mxu0
  %v2433 = vadd.f32 0.0, %v2432
  %v2434 = vpop.f32.mrb[0].mxu0
  %2435 = vmatprep.mubr.f32.mxu0 0.0
  %2436 = vmatmul.mubr.f32.gmra.mrb[0].mxu0 %v2268
  %v2437 = vpop.f32.mrb[0].mxu0
  %v2438 = vadd.f32 0.0, %v2437
  %v2439 = vpop.f32.mrb[0].mxu0
  %2440 = vmatprep.mubr.f32.mxu0 0.0
  %2441 = vmatmul.mubr.f32.gmra.mrb[0].mxu0 %v2271
  %v2442 = vpop.f32.mrb[0].mxu0
  %v2443 = vadd.f32 0.0, %v2442
  %v2444 = vpop.f32.mrb[0].mxu0
  %2445 = vmatprep.mubr.f32.mxu0 0.0
  %2446 = vmatmul.mubr.f32.gmra.mrb[0].mxu0 %v2274
  %v2447 = vpop.f32.mrb[0].mxu0
  %v2448 = vadd.f32 0.0, %v2447
  %v2449 = vpop.f32.mrb[0].mxu0
  %2450 = vmatprep.mubr.f32.mxu0 0.0
  %2451 = vmatmul.mubr.f32.gmra.mrb[0].mxu0 %v2277
  %v2452 = vpop.f32.mrb[0].mxu0
  %v2453 = vadd.f32 0.0, %v2452
  %v2454 = vpop.f32.mrb[0].mxu0
  %2455 = vmatprep.mubr.f32.mxu0 0.0
  %2456 = vmatmul.mubr.f32.gmra.mrb[0].mxu0 %v2280
  %v2457 = vpop.f32.mrb[0].mxu0
  %v2458 = vadd.f32 0.0, %v2457
  %v2459 = vpop.f32.mrb[0].mxu0
  %2460 = vmatprep.mubr.f32.mxu0 0.0
  %2461 = vmatmul.mubr.f32.gmra.mrb[0].mxu0 %v2283
  %v2462 = vpop.f32.mrb[0].mxu0
  %v2463 = vadd.f32 0.0, %v2462
  %v2464 = vpop.f32.mrb[0].mxu0
  %2465 = vmatprep.mubr.f32.mxu0 0.0
  %2466 = vmatmul.mubr.f32.gmra.mrb[0].mxu0 %v2286
  %v2467 = vpop.f32.mrb[0].mxu0
  %v2468 = vadd.f32 0.0, %v2467
  %v2469 = vpop.f32.mrb[0].mxu0
  %2470 = vmatprep.mubr.f32.mxu0 0.0
  %2471 = vmatmul.mubr.f32.gmra.mrb[0].mxu0 %v2289
  %v2472 = vpop.f32.mrb[0].mxu0
  %v2473 = vadd.f32 0.0, %v2472
  %v2474 = vpop.f32.mrb[0].mxu0
  %2475 = vmatprep.mubr.f32.mxu0 0.0
  %2476 = vmatmul.mubr.f32.gmra.mrb[0].mxu0 %v2292
  %v2477 = vpop.f32.mrb[0].mxu0
  %v2478 = vadd.f32 0.0, %v2477
  %v2479 = vpop.f32.mrb[0].mxu0
  %2480 = vmatprep.mubr.f32.mxu0 0.0
  %2481 = vmatmul.mubr.f32.gmra.mrb[0].mxu0 %v2295
  %v2482 = vpop.f32.mrb[0].mxu0
  %v2483 = vadd.f32 0.0, %v2482
  %v2484 = vpop.f32.mrb[0].mxu0
  %2485 = vmatprep.mubr.f32.mxu0 0.0
  %2486 = vmatmul.mubr.f32.gmra.mrb[0].mxu0 %v2298
  %v2487 = vpop.f32.mrb[0].mxu0
  %v2488 = vadd.f32 0.0, %v2487
  %v2489 = vpop.f32.mrb[0].mxu0
  %2490 = vmatprep.mubr.f32.mxu0 0.0
  %2491 = vmatmul.mubr.f32.gmra.mrb[0].mxu0 %v2301
  %v2492 = vpop.f32.mrb[0].mxu0
  %v2493 = vadd.f32 0.0, %v2492
  %v2494 = vpop.f32.mrb[0].mxu0
  %2495 = vmatprep.mubr.f32.mxu0 0.0
  %2496 = vmatmul.mubr.f32.gmra.mrb[0].mxu0 %v2304
  %v2497 = vpop.f32.mrb[0].mxu0
  %v2498 = vadd.f32 0.0, %v2497
  %v2499 = vpop.f32.mrb[0].mxu0
  %2500 = vmatprep.mubr.f32.mxu0 0.0
  %2501 = vmatmul.mubr.f32.gmra.mrb[0].mxu0 %v2307
  %v2502 = vpop.f32.mrb[0].mxu0
  %v2503 = vadd.f32 0.0, %v2502
  %v2504 = vpop.f32.mrb[0].mxu0
  %2505 = vmatprep.mubr.f32.mxu0 0.0
  %2506 = vmatmul.mubr.f32.gmra.mrb[0].mxu0 %v2310
  %v2507 = vpop.f32.mrb[0].mxu0
  %v2508 = vadd.f32 0.0, %v2507
  %v2509 = vpop.f32.mrb[0].mxu0
  %2510 = vmatprep.mubr.f32.mxu0 0.0
  %2511 = vmatmul.mubr.f32.gmra.mrb[0].mxu0 %v2313
  %v2512 = vpop.f32.mrb[0].mxu0
  %v2513 = vadd.f32 0.0, %v2512
  %v2514 = vpop.f32.mrb[0].mxu0
  %2515 = vmatprep.mubr.f32.mxu0 0.0
  %2516 = vmatmul.mubr.f32.gmra.mrb[0].mxu0 %v2316
  %v2517 = vpop.f32.mrb[0].mxu0
  %v2518 = vadd.f32 0.0, %v2517
  %v2519 = vpop.f32.mrb[0].mxu0
  %2520 = vmatprep.mubr.f32.mxu0 0.0
  %2521 = vmatmul.mubr.f32.gmra.mrb[0].mxu0 %v2319
  %v2522 = vpop.f32.mrb[0].mxu0
  %v2523 = vadd.f32 0.0, %v2522
  %v2524 = vpop.f32.mrb[0].mxu0
  %2525 = vmatprep.mubr.f32.mxu0 0.0
  %2526 = vmatmul.mubr.f32.gmra.mrb[0].mxu0 %v2322
  %v2527 = vpop.f32.mrb[0].mxu0
  %v2528 = vadd.f32 0.0, %v2527
  %v2529 = vpop.f32.mrb[0].mxu0
  %2530 = vmatprep.mubr.f32.mxu0 0.0
  %2531 = vmatmul.mubr.f32.gmra.mrb[0].mxu0 %v2325
  %v2532 = vpop.f32.mrb[0].mxu0
  %v2533 = vadd.f32 0.0, %v2532
  %v2534 = vpop.f32.mrb[0].mxu0
  %2535 = vmatprep.mubr.f32.mxu0 0.0
  %2536 = vmatmul.mubr.f32.gmra.mrb[0].mxu0 %v2328
  %v2537 = vpop.f32.mrb[0].mxu0
  %v2538 = vadd.f32 0.0, %v2537
  %v2539 = vpop.f32.mrb[0].mxu0
  %2540 = vmatprep.mubr.f32.mxu0 0.0
  %2541 = vmatmul.mubr.f32.gmra.mrb[0].mxu0 %v2331
  %v2542 = vpop.f32.mrb[0].mxu0
  %v2543 = vadd.f32 0.0, %v2542
  %v2544 = vpop.f32.mrb[0].mxu0
  %2545 = vmatprep.mubr.f32.mxu0 0.0
  %2546 = vmatmul.mubr.f32.gmra.mrb[0].mxu0 %v2334
  %v2547 = vpop.f32.mrb[0].mxu0
  %v2548 = vadd.f32 0.0, %v2547
  %v2549 = vpop.f32.mrb[0].mxu0
  %2550 = vmatprep.mubr.f32.mxu0 0.0
  %2551 = vmatmul.mubr.f32.gmra.mrb[0].mxu0 %v2337
  %v2552 = vpop.f32.mrb[0].mxu0
  %v2553 = vadd.f32 0.0, %v2552
  %v2554 = vpop.f32.mrb[0].mxu0
  %2555 = vmatprep.mubr.f32.mxu0 0.0
  %2556 = vmatmul.mubr.f32.gmra.mrb[0].mxu0 %v2340
  %v2557 = vpop.f32.mrb[0].mxu0
  %v2558 = vadd.f32 0.0, %v2557
  %v2559 = vpop.f32.mrb[0].mxu0
  %2560 = vmatprep.mubr.f32.mxu0 0.0
  %2561 = vmatmul.mubr.f32.gmra.mrb[0].mxu0 %v2343
  %v2562 = vpop.f32.mrb[0].mxu0
  %v2563 = vadd.f32 0.0, %v2562
  %v2564 = vpop.f32.mrb[0].mxu0
  %2565 = vmatprep.mubr.f32.mxu0 0.0
  %2566 = vmatmul.mubr.f32.gmra.mrb[0].mxu0 %v2346
  %v2567 = vpop.f32.mrb[0].mxu0
  %v2568 = vadd.f32 0.0, %v2567
  %v2569 = vpop.f32.mrb[0].mxu0
  %2570 = vmatprep.mubr.f32.mxu0 0.0
  %2571 = vmatmul.mubr.f32.gmra.mrb[0].mxu0 %v2349
  %v2572 = vpop.f32.mrb[0].mxu0
  %v2573 = vadd.f32 0.0, %v2572
  %v2574 = vpop.f32.mrb[0].mxu0
  %2575 = vdwg.mxu0
  %2576 = vmatprep.subr.mxu0 0.0
  %2577 = vmatpush1.msra.mxu0 %v2250
  %2578 = vmatprep.subr.mxu0 0.0
  %2579 = vmatpush1.msra.mxu0 %v2251
  %2580 = vmatprep.subr.mxu0 0.0
  %2581 = vmatpush1.msra.mxu0 0.0
  %2582 = vmatprep.subr.mxu0 0.0
  %2583 = vmatpush1.msra.mxu0 0.0
  %2584 = vmatprep.subr.mxu0 0.0
  %2585 = vmatpush1.msra.mxu0 0.0
  %2586 = vmatprep.subr.mxu0 0.0
  %2587 = vmatpush1.msra.mxu0 0.0
  %2588 = vmatprep.subr.mxu0 0.0
  %2589 = vmatpush1.msra.mxu0 0.0
  %2590 = vmatprep.subr.mxu0 0.0
  %2591 = vmatpush1.msra.mxu0 0.0
  %2592 = vmatprep.subr.mxu0 0.0
  %2593 = vmatpush1.msra.mxu0 0.0
  %2594 = vmatprep.subr.mxu0 0.0
  %2595 = vmatpush1.msra.mxu0 0.0
  %2596 = vmatprep.subr.mxu0 0.0
  %2597 = vmatpush1.msra.mxu0 0.0
  %2598 = vmatprep.subr.mxu0 0.0
  %2599 = vmatpush1.msra.mxu0 0.0
  %2600 = vmatprep.subr.mxu0 0.0
  %2601 = vmatpush1.msra.mxu0 0.0
  %2602 = vmatprep.subr.mxu0 0.0
  %2603 = vmatpush1.msra.mxu0 0.0
  %2604 = vmatprep.subr.mxu0 0.0
  %2605 = vmatpush1.msra.mxu0 0.0
  %2606 = vmatprep.subr.mxu0 0.0
  %2607 = vmatpush1.msra.mxu0 0.0
  %2608 = vmatprep.subr.mxu0 0.0
  %2609 = vmatpush1.msra.mxu0 0.0
  %2610 = vmatprep.subr.mxu0 0.0
  %2611 = vmatpush1.msra.mxu0 0.0
  %2612 = vmatprep.subr.mxu0 0.0
  %2613 = vmatpush1.msra.mxu0 0.0
  %2614 = vmatprep.subr.mxu0 0.0
  %2615 = vmatpush1.msra.mxu0 0.0
  %2616 = vmatprep.subr.mxu0 0.0
  %2617 = vmatpush1.msra.mxu0 0.0
  %2618 = vmatprep.subr.mxu0 0.0
  %2619 = vmatpush1.msra.mxu0 0.0
  %2620 = vmatprep.subr.mxu0 0.0
  %2621 = vmatpush1.msra.mxu0 0.0
  %2622 = vmatprep.subr.mxu0 0.0
  %2623 = vmatpush1.msra.mxu0 0.0
  %2624 = vmatprep.subr.mxu0 0.0
  %2625 = vmatpush1.msra.mxu0 0.0
  %2626 = vmatprep.subr.mxu0 0.0
  %2627 = vmatpush1.msra.mxu0 0.0
  %2628 = vmatprep.subr.mxu0 0.0
  %2629 = vmatpush1.msra.mxu0 0.0
  %2630 = vmatprep.subr.mxu0 0.0
  %2631 = vmatpush1.msra.mxu0 0.0
  %2632 = vmatprep.subr.mxu0 0.0
  %2633 = vmatpush1.msra.mxu0 0.0
  %2634 = vmatprep.subr.mxu0 0.0
  %2635 = vmatpush1.msra.mxu0 0.0
  %2636 = vmatprep.subr.mxu0 0.0
  %2637 = vmatpush1.msra.mxu0 0.0
  %2638 = vmatprep.subr.mxu0 0.0
  %2639 = vmatpush1.msra.mxu0 0.0
  %2640 = vmatprep.mubr.f32.mxu0 0.0
  %2641 = vmatmul.mubr.f32.gmra.mrb[0].mxu0 %v1266
  %v2642 = vpop.f32.mrb[0].mxu0
  %v2643 = vadd.f32 %v2418, %v2642
  %v2644 = vpop.f32.mrb[0].mxu0
  %2645 = vmatprep.mubr.f32.mxu0 0.0
  %2646 = vmatmul.mubr.f32.gmra.mrb[0].mxu0 %v1266
  %v2647 = vpop.f32.mrb[0].mxu0
  %v2648 = vadd.f32 %v2423, %v2647
  %v2649 = vpop.f32.mrb[0].mxu0
  %2650 = vmatprep.mubr.f32.mxu0 0.0
  %2651 = vmatmul.mubr.f32.gmra.mrb[0].mxu0 %v2256
  %v2652 = vpop.f32.mrb[0].mxu0
  %v2653 = vadd.f32 %v2428, %v2652
  %v2654 = vpop.f32.mrb[0].mxu0
  %2655 = vmatprep.mubr.f32.mxu0 0.0
  %2656 = vmatmul.mubr.f32.gmra.mrb[0].mxu0 %v2259
  %v2657 = vpop.f32.mrb[0].mxu0
  %v2658 = vadd.f32 %v2433, %v2657
  %v2659 = vpop.f32.mrb[0].mxu0
  %2660 = vmatprep.mubr.f32.mxu0 0.0
  %2661 = vmatmul.mubr.f32.gmra.mrb[0].mxu0 %v2262
  %v2662 = vpop.f32.mrb[0].mxu0
  %v2663 = vadd.f32 %v2438, %v2662
  %v2664 = vpop.f32.mrb[0].mxu0
  %2665 = vmatprep.mubr.f32.mxu0 0.0
  %2666 = vmatmul.mubr.f32.gmra.mrb[0].mxu0 %v2265
  %v2667 = vpop.f32.mrb[0].mxu0
  %v2668 = vadd.f32 %v2443, %v2667
  %v2669 = vpop.f32.mrb[0].mxu0
  %2670 = vmatprep.mubr.f32.mxu0 0.0
  %2671 = vmatmul.mubr.f32.gmra.mrb[0].mxu0 %v2268
  %v2672 = vpop.f32.mrb[0].mxu0
  %v2673 = vadd.f32 %v2448, %v2672
  %v2674 = vpop.f32.mrb[0].mxu0
  %2675 = vmatprep.mubr.f32.mxu0 0.0
  %2676 = vmatmul.mubr.f32.gmra.mrb[0].mxu0 %v2271
  %v2677 = vpop.f32.mrb[0].mxu0
  %v2678 = vadd.f32 %v2453, %v2677
  %v2679 = vpop.f32.mrb[0].mxu0
  %2680 = vmatprep.mubr.f32.mxu0 0.0
  %2681 = vmatmul.mubr.f32.gmra.mrb[0].mxu0 %v2274
  %v2682 = vpop.f32.mrb[0].mxu0
  %v2683 = vadd.f32 %v2458, %v2682
  %v2684 = vpop.f32.mrb[0].mxu0
  %2685 = vmatprep.mubr.f32.mxu0 0.0
  %2686 = vmatmul.mubr.f32.gmra.mrb[0].mxu0 %v2277
  %v2687 = vpop.f32.mrb[0].mxu0
  %v2688 = vadd.f32 %v2463, %v2687
  %v2689 = vpop.f32.mrb[0].mxu0
  %2690 = vmatprep.mubr.f32.mxu0 0.0
  %2691 = vmatmul.mubr.f32.gmra.mrb[0].mxu0 %v2280
  %v2692 = vpop.f32.mrb[0].mxu0
  %v2693 = vadd.f32 %v2468, %v2692
  %v2694 = vpop.f32.mrb[0].mxu0
  %2695 = vmatprep.mubr.f32.mxu0 0.0
  %2696 = vmatmul.mubr.f32.gmra.mrb[0].mxu0 %v2283
  %v2697 = vpop.f32.mrb[0].mxu0
  %v2698 = vadd.f32 %v2473, %v2697
  %v2699 = vpop.f32.mrb[0].mxu0
  %2700 = vmatprep.mubr.f32.mxu0 0.0
  %2701 = vmatmul.mubr.f32.gmra.mrb[0].mxu0 %v2286
  %v2702 = vpop.f32.mrb[0].mxu0
  %v2703 = vadd.f32 %v2478, %v2702
  %v2704 = vpop.f32.mrb[0].mxu0
  %2705 = vmatprep.mubr.f32.mxu0 0.0
  %2706 = vmatmul.mubr.f32.gmra.mrb[0].mxu0 %v2289
  %v2707 = vpop.f32.mrb[0].mxu0
  %v2708 = vadd.f32 %v2483, %v2707
  %v2709 = vpop.f32.mrb[0].mxu0
  %2710 = vmatprep.mubr.f32.mxu0 0.0
  %2711 = vmatmul.mubr.f32.gmra.mrb[0].mxu0 %v2292
  %v2712 = vpop.f32.mrb[0].mxu0
  %v2713 = vadd.f32 %v2488, %v2712
  %v2714 = vpop.f32.mrb[0].mxu0
  %2715 = vmatprep.mubr.f32.mxu0 0.0
  %2716 = vmatmul.mubr.f32.gmra.mrb[0].mxu0 %v2295
  %v2717 = vpop.f32.mrb[0].mxu0
  %v2718 = vadd.f32 %v2493, %v2717
  %v2719 = vpop.f32.mrb[0].mxu0
  %2720 = vmatprep.mubr.f32.mxu0 0.0
  %2721 = vmatmul.mubr.f32.gmra.mrb[0].mxu0 %v2298
  %v2722 = vpop.f32.mrb[0].mxu0
  %v2723 = vadd.f32 %v2498, %v2722
  %v2724 = vpop.f32.mrb[0].mxu0
  %2725 = vmatprep.mubr.f32.mxu0 0.0
  %2726 = vmatmul.mubr.f32.gmra.mrb[0].mxu0 %v2301
  %v2727 = vpop.f32.mrb[0].mxu0
  %v2728 = vadd.f32 %v2503, %v2727
  %v2729 = vpop.f32.mrb[0].mxu0
  %2730 = vmatprep.mubr.f32.mxu0 0.0
  %2731 = vmatmul.mubr.f32.gmra.mrb[0].mxu0 %v2304
  %v2732 = vpop.f32.mrb[0].mxu0
  %v2733 = vadd.f32 %v2508, %v2732
  %v2734 = vpop.f32.mrb[0].mxu0
  %2735 = vmatprep.mubr.f32.mxu0 0.0
  %2736 = vmatmul.mubr.f32.gmra.mrb[0].mxu0 %v2307
  %v2737 = vpop.f32.mrb[0].mxu0
  %v2738 = vadd.f32 %v2513, %v2737
  %v2739 = vpop.f32.mrb[0].mxu0
  %2740 = vmatprep.mubr.f32.mxu0 0.0
  %2741 = vmatmul.mubr.f32.gmra.mrb[0].mxu0 %v2310
  %v2742 = vpop.f32.mrb[0].mxu0
  %v2743 = vadd.f32 %v2518, %v2742
  %v2744 = vpop.f32.mrb[0].mxu0
  %2745 = vmatprep.mubr.f32.mxu0 0.0
  %2746 = vmatmul.mubr.f32.gmra.mrb[0].mxu0 %v2313
  %v2747 = vpop.f32.mrb[0].mxu0
  %v2748 = vadd.f32 %v2523, %v2747
  %v2749 = vpop.f32.mrb[0].mxu0
  %2750 = vmatprep.mubr.f32.mxu0 0.0
  %2751 = vmatmul.mubr.f32.gmra.mrb[0].mxu0 %v2316
  %v2752 = vpop.f32.mrb[0].mxu0
  %v2753 = vadd.f32 %v2528, %v2752
  %v2754 = vpop.f32.mrb[0].mxu0
  %2755 = vmatprep.mubr.f32.mxu0 0.0
  %2756 = vmatmul.mubr.f32.gmra.mrb[0].mxu0 %v2319
  %v2757 = vpop.f32.mrb[0].mxu0
  %v2758 = vadd.f32 %v2533, %v2757
  %v2759 = vpop.f32.mrb[0].mxu0
  %2760 = vmatprep.mubr.f32.mxu0 0.0
  %2761 = vmatmul.mubr.f32.gmra.mrb[0].mxu0 %v2322
  %v2762 = vpop.f32.mrb[0].mxu0
  %v2763 = vadd.f32 %v2538, %v2762
  %v2764 = vpop.f32.mrb[0].mxu0
  %2765 = vmatprep.mubr.f32.mxu0 0.0
  %2766 = vmatmul.mubr.f32.gmra.mrb[0].mxu0 %v2325
  %v2767 = vpop.f32.mrb[0].mxu0
  %v2768 = vadd.f32 %v2543, %v2767
  %v2769 = vpop.f32.mrb[0].mxu0
  %2770 = vmatprep.mubr.f32.mxu0 0.0
  %2771 = vmatmul.mubr.f32.gmra.mrb[0].mxu0 %v2328
  %v2772 = vpop.f32.mrb[0].mxu0
  %v2773 = vadd.f32 %v2548, %v2772
  %v2774 = vpop.f32.mrb[0].mxu0
  %2775 = vmatprep.mubr.f32.mxu0 0.0
  %2776 = vmatmul.mubr.f32.gmra.mrb[0].mxu0 %v2331
  %v2777 = vpop.f32.mrb[0].mxu0
  %v2778 = vadd.f32 %v2553, %v2777
  %v2779 = vpop.f32.mrb[0].mxu0
  %2780 = vmatprep.mubr.f32.mxu0 0.0
  %2781 = vmatmul.mubr.f32.gmra.mrb[0].mxu0 %v2334
  %v2782 = vpop.f32.mrb[0].mxu0
  %v2783 = vadd.f32 %v2558, %v2782
  %v2784 = vpop.f32.mrb[0].mxu0
  %2785 = vmatprep.mubr.f32.mxu0 0.0
  %2786 = vmatmul.mubr.f32.gmra.mrb[0].mxu0 %v2337
  %v2787 = vpop.f32.mrb[0].mxu0
  %v2788 = vadd.f32 %v2563, %v2787
  %v2789 = vpop.f32.mrb[0].mxu0
  %2790 = vmatprep.mubr.f32.mxu0 0.0
  %2791 = vmatmul.mubr.f32.gmra.mrb[0].mxu0 %v2340
  %v2792 = vpop.f32.mrb[0].mxu0
  %v2793 = vadd.f32 %v2568, %v2792
  %v2794 = vpop.f32.mrb[0].mxu0
  %2795 = vmatprep.mubr.f32.mxu0 0.0
  %2796 = vmatmul.mubr.f32.gmra.mrb[0].mxu0 %v2343
  %v2797 = vpop.f32.mrb[0].mxu0
  %v2798 = vadd.f32 %v2573, %v2797
  %v2799 = vpop.f32.mrb[0].mxu0
  %2800 = vdwg.mxu0
  %v2801 = vld [vmem:[%s10] sm:$0x1]
  %v2803 = vlaneseq
  %v2804 = vshrl.u32 %v2803, 7
  %v2805 = vsub.s32 0, %v2804
  %v2806 = vrot.slane %v2801, %v2805
  %v2808 = vadd.f32 %v2643, %v2806
  %v2809 = vadd.f32 %v2648, %v2806
  %v2810 = vadd.f32 %v2653, %v2806
  %v2811 = vadd.f32 %v2658, %v2806
  %v2812 = vadd.f32 %v2663, %v2806
  %v2813 = vadd.f32 %v2668, %v2806
  %v2814 = vadd.f32 %v2673, %v2806
  %v2815 = vadd.f32 %v2678, %v2806
  %v2816 = vadd.f32 %v2683, %v2806
  %v2817 = vadd.f32 %v2688, %v2806
  %v2818 = vadd.f32 %v2693, %v2806
  %v2819 = vadd.f32 %v2698, %v2806
  %v2820 = vadd.f32 %v2703, %v2806
  %v2821 = vadd.f32 %v2708, %v2806
  %v2822 = vadd.f32 %v2713, %v2806
  %v2823 = vadd.f32 %v2718, %v2806
  %v2824 = vadd.f32 %v2723, %v2806
  %v2825 = vadd.f32 %v2728, %v2806
  %v2826 = vadd.f32 %v2733, %v2806
  %v2827 = vadd.f32 %v2738, %v2806
  %v2828 = vadd.f32 %v2743, %v2806
  %v2829 = vadd.f32 %v2748, %v2806
  %v2830 = vadd.f32 %v2753, %v2806
  %v2831 = vadd.f32 %v2758, %v2806
  %v2832 = vadd.f32 %v2763, %v2806
  %v2833 = vadd.f32 %v2768, %v2806
  %v2834 = vadd.f32 %v2773, %v2806
  %v2835 = vadd.f32 %v2778, %v2806
  %v2836 = vadd.f32 %v2783, %v2806
  %v2837 = vadd.f32 %v2788, %v2806
  %v2838 = vadd.f32 %v2793, %v2806
  %v2839 = vadd.f32 %v2798, %v2806
  %v2840 = vmax.f32 %v2808, 0.0
  %v2841 = vmax.f32 %v2809, 0.0
  %v2842 = vmax.f32 %v2810, 0.0
  %v2843 = vmax.f32 %v2811, 0.0
  %v2844 = vmax.f32 %v2812, 0.0
  %v2845 = vmax.f32 %v2813, 0.0
  %v2846 = vmax.f32 %v2814, 0.0
  %v2847 = vmax.f32 %v2815, 0.0
  %v2848 = vmax.f32 %v2816, 0.0
  %v2849 = vmax.f32 %v2817, 0.0
  %v2850 = vmax.f32 %v2818, 0.0
  %v2851 = vmax.f32 %v2819, 0.0
  %v2852 = vmax.f32 %v2820, 0.0
  %v2853 = vmax.f32 %v2821, 0.0
  %v2854 = vmax.f32 %v2822, 0.0
  %v2855 = vmax.f32 %v2823, 0.0
  %v2856 = vmax.f32 %v2824, 0.0
  %v2857 = vmax.f32 %v2825, 0.0
  %v2858 = vmax.f32 %v2826, 0.0
  %v2859 = vmax.f32 %v2827, 0.0
  %v2860 = vmax.f32 %v2828, 0.0
  %v2861 = vmax.f32 %v2829, 0.0
  %v2862 = vmax.f32 %v2830, 0.0
  %v2863 = vmax.f32 %v2831, 0.0
  %v2864 = vmax.f32 %v2832, 0.0
  %v2865 = vmax.f32 %v2833, 0.0
  %v2866 = vmax.f32 %v2834, 0.0
  %v2867 = vmax.f32 %v2835, 0.0
  %v2868 = vmax.f32 %v2836, 0.0
  %v2869 = vmax.f32 %v2837, 0.0
  %v2870 = vmax.f32 %v2838, 0.0
  %v2871 = vmax.f32 %v2839, 0.0
  %v2872 = vadd.f32 %v2840, %v1596
  %v2873 = vadd.f32 %v2841, %v1597
  %v2874 = vadd.f32 %v2842, %v1598
  %v2875 = vadd.f32 %v2843, %v1599
  %v2876 = vadd.f32 %v2844, %v1600
  %v2877 = vadd.f32 %v2845, %v1601
  %v2878 = vadd.f32 %v2846, %v1602
  %v2879 = vadd.f32 %v2847, %v1603
  %v2880 = vadd.f32 %v2848, %v1604
  %v2881 = vadd.f32 %v2849, %v1605
  %v2882 = vadd.f32 %v2850, %v1606
  %v2883 = vadd.f32 %v2851, %v1607
  %v2884 = vadd.f32 %v2852, %v1608
  %v2885 = vadd.f32 %v2853, %v1609
  %v2886 = vadd.f32 %v2854, %v1610
  %v2887 = vadd.f32 %v2855, %v1611
  %v2888 = vadd.f32 %v2856, %v1612
  %v2889 = vadd.f32 %v2857, %v1613
  %v2890 = vadd.f32 %v2858, %v1614
  %v2891 = vadd.f32 %v2859, %v1615
  %v2892 = vadd.f32 %v2860, %v1616
  %v2893 = vadd.f32 %v2861, %v1617
  %v2894 = vadd.f32 %v2862, %v1618
  %v2895 = vadd.f32 %v2863, %v1619
  %v2896 = vadd.f32 %v2864, %v1620
  %v2897 = vadd.f32 %v2865, %v1621
  %v2898 = vadd.f32 %v2866, %v1622
  %v2899 = vadd.f32 %v2867, %v1623
  %v2900 = vadd.f32 %v2868, %v1624
  %v2901 = vadd.f32 %v2869, %v1625
  %v2902 = vadd.f32 %v2870, %v1626
  %v2903 = vadd.f32 %v2871, %v1627
  %v2904 = vmax.f32 %v2872, 0.0
  %v2905 = vmax.f32 %v2873, 0.0
  %v2906 = vmax.f32 %v2874, 0.0
  %v2907 = vmax.f32 %v2875, 0.0
  %v2908 = vmax.f32 %v2876, 0.0
  %v2909 = vmax.f32 %v2877, 0.0
  %v2910 = vmax.f32 %v2878, 0.0
  %v2911 = vmax.f32 %v2879, 0.0
  %v2912 = vmax.f32 %v2880, 0.0
  %v2913 = vmax.f32 %v2881, 0.0
  %v2914 = vmax.f32 %v2882, 0.0
  %v2915 = vmax.f32 %v2883, 0.0
  %v2916 = vmax.f32 %v2884, 0.0
  %v2917 = vmax.f32 %v2885, 0.0
  %v2918 = vmax.f32 %v2886, 0.0
  %v2919 = vmax.f32 %v2887, 0.0
  %v2920 = vmax.f32 %v2888, 0.0
  %v2921 = vmax.f32 %v2889, 0.0
  %v2922 = vmax.f32 %v2890, 0.0
  %v2923 = vmax.f32 %v2891, 0.0
  %v2924 = vmax.f32 %v2892, 0.0
  %v2925 = vmax.f32 %v2893, 0.0
  %v2926 = vmax.f32 %v2894, 0.0
  %v2927 = vmax.f32 %v2895, 0.0
  %v2928 = vmax.f32 %v2896, 0.0
  %v2929 = vmax.f32 %v2897, 0.0
  %v2930 = vmax.f32 %v2898, 0.0
  %v2931 = vmax.f32 %v2899, 0.0
  %v2932 = vmax.f32 %v2900, 0.0
  %v2933 = vmax.f32 %v2901, 0.0
  %v2934 = vmax.f32 %v2902, 0.0
  %v2935 = vmax.f32 %v2903, 0.0
  %v2936 = vld [vmem:[%s11] sm:$0xff]
  %v2937 = vld [vmem:[%s11 + $0x8] sm:$0xff]
  %s2938 = scalar_lea.vmem %s11, 16
  %v2939 = vld [vmem:[%s2938] sm:$0xff]
  %v2940 = vld [vmem:[%s2938 + $0x8] sm:$0xff]
  %v2942 = vsel %vm944, %v2904, 0
  %v2945 = vsel %vm944, %v2905, 0
  %v2948 = vsel %vm944, %v2906, 0
  %v2951 = vsel %vm944, %v2907, 0
  %v2954 = vsel %vm944, %v2908, 0
  %v2957 = vsel %vm944, %v2909, 0
  %v2960 = vsel %vm944, %v2910, 0
  %v2963 = vsel %vm944, %v2911, 0
  %v2966 = vsel %vm944, %v2912, 0
  %v2969 = vsel %vm944, %v2913, 0
  %v2972 = vsel %vm944, %v2914, 0
  %v2975 = vsel %vm944, %v2915, 0
  %v2978 = vsel %vm944, %v2916, 0
  %v2981 = vsel %vm944, %v2917, 0
  %v2984 = vsel %vm944, %v2918, 0
  %v2987 = vsel %vm944, %v2919, 0
  %v2990 = vsel %vm944, %v2920, 0
  %v2993 = vsel %vm944, %v2921, 0
  %v2996 = vsel %vm944, %v2922, 0
  %v2999 = vsel %vm944, %v2923, 0
  %v3002 = vsel %vm944, %v2924, 0
  %v3005 = vsel %vm944, %v2925, 0
  %v3008 = vsel %vm944, %v2926, 0
  %v3011 = vsel %vm944, %v2927, 0
  %v3014 = vsel %vm944, %v2928, 0
  %v3017 = vsel %vm944, %v2929, 0
  %v3020 = vsel %vm944, %v2930, 0
  %v3023 = vsel %vm944, %v2931, 0
  %v3026 = vsel %vm944, %v2932, 0
  %v3029 = vsel %vm944, %v2933, 0
  %v3032 = vsel %vm944, %v2934, 0
  %v3035 = vsel %vm944, %v2935, 0
  %3037 = vmatprep.subr.mxu0 0.0
  %3038 = vmatpush1.msra.mxu0 %v2939
  %3039 = vmatprep.subr.mxu0 0.0
  %3040 = vmatpush1.msra.mxu0 %v2940
  %3041 = vmatprep.subr.mxu0 0.0
  %3042 = vmatpush1.msra.mxu0 0.0
  %3043 = vmatprep.subr.mxu0 0.0
  %3044 = vmatpush1.msra.mxu0 0.0
  %3045 = vmatprep.subr.mxu0 0.0
  %3046 = vmatpush1.msra.mxu0 0.0
  %3047 = vmatprep.subr.mxu0 0.0
  %3048 = vmatpush1.msra.mxu0 0.0
  %3049 = vmatprep.subr.mxu0 0.0
  %3050 = vmatpush1.msra.mxu0 0.0
  %3051 = vmatprep.subr.mxu0 0.0
  %3052 = vmatpush1.msra.mxu0 0.0
  %3053 = vmatprep.subr.mxu0 0.0
  %3054 = vmatpush1.msra.mxu0 0.0
  %3055 = vmatprep.subr.mxu0 0.0
  %3056 = vmatpush1.msra.mxu0 0.0
  %3057 = vmatprep.subr.mxu0 0.0
  %3058 = vmatpush1.msra.mxu0 0.0
  %3059 = vmatprep.subr.mxu0 0.0
  %3060 = vmatpush1.msra.mxu0 0.0
  %3061 = vmatprep.subr.mxu0 0.0
  %3062 = vmatpush1.msra.mxu0 0.0
  %3063 = vmatprep.subr.mxu0 0.0
  %3064 = vmatpush1.msra.mxu0 0.0
  %3065 = vmatprep.subr.mxu0 0.0
  %3066 = vmatpush1.msra.mxu0 0.0
  %3067 = vmatprep.subr.mxu0 0.0
  %3068 = vmatpush1.msra.mxu0 0.0
  %3069 = vmatprep.subr.mxu0 0.0
  %3070 = vmatpush1.msra.mxu0 0.0
  %3071 = vmatprep.subr.mxu0 0.0
  %3072 = vmatpush1.msra.mxu0 0.0
  %3073 = vmatprep.subr.mxu0 0.0
  %3074 = vmatpush1.msra.mxu0 0.0
  %3075 = vmatprep.subr.mxu0 0.0
  %3076 = vmatpush1.msra.mxu0 0.0
  %3077 = vmatprep.subr.mxu0 0.0
  %3078 = vmatpush1.msra.mxu0 0.0
  %3079 = vmatprep.subr.mxu0 0.0
  %3080 = vmatpush1.msra.mxu0 0.0
  %3081 = vmatprep.subr.mxu0 0.0
  %3082 = vmatpush1.msra.mxu0 0.0
  %3083 = vmatprep.subr.mxu0 0.0
  %3084 = vmatpush1.msra.mxu0 0.0
  %3085 = vmatprep.subr.mxu0 0.0
  %3086 = vmatpush1.msra.mxu0 0.0
  %3087 = vmatprep.subr.mxu0 0.0
  %3088 = vmatpush1.msra.mxu0 0.0
  %3089 = vmatprep.subr.mxu0 0.0
  %3090 = vmatpush1.msra.mxu0 0.0
  %3091 = vmatprep.subr.mxu0 0.0
  %3092 = vmatpush1.msra.mxu0 0.0
  %3093 = vmatprep.subr.mxu0 0.0
  %3094 = vmatpush1.msra.mxu0 0.0
  %3095 = vmatprep.subr.mxu0 0.0
  %3096 = vmatpush1.msra.mxu0 0.0
  %3097 = vmatprep.subr.mxu0 0.0
  %3098 = vmatpush1.msra.mxu0 0.0
  %3099 = vmatprep.subr.mxu0 0.0
  %3100 = vmatpush1.msra.mxu0 0.0
  %3101 = vmatprep.mubr.f32.mxu0 0.0
  %3102 = vmatmul.mubr.f32.gmra.mrb[0].mxu0 %v2942
  %v3103 = vpop.f32.mrb[0].mxu0
  %v3104 = vadd.f32 0.0, %v3103
  %v3105 = vpop.f32.mrb[0].mxu0
  %3106 = vmatprep.mubr.f32.mxu0 0.0
  %3107 = vmatmul.mubr.f32.gmra.mrb[0].mxu0 %v2945
  %v3108 = vpop.f32.mrb[0].mxu0
  %v3109 = vadd.f32 0.0, %v3108
  %v3110 = vpop.f32.mrb[0].mxu0
  %3111 = vmatprep.mubr.f32.mxu0 0.0
  %3112 = vmatmul.mubr.f32.gmra.mrb[0].mxu0 %v2948
  %v3113 = vpop.f32.mrb[0].mxu0
  %v3114 = vadd.f32 0.0, %v3113
  %v3115 = vpop.f32.mrb[0].mxu0
  %3116 = vmatprep.mubr.f32.mxu0 0.0
  %3117 = vmatmul.mubr.f32.gmra.mrb[0].mxu0 %v2951
  %v3118 = vpop.f32.mrb[0].mxu0
  %v3119 = vadd.f32 0.0, %v3118
  %v3120 = vpop.f32.mrb[0].mxu0
  %3121 = vmatprep.mubr.f32.mxu0 0.0
  %3122 = vmatmul.mubr.f32.gmra.mrb[0].mxu0 %v2954
  %v3123 = vpop.f32.mrb[0].mxu0
  %v3124 = vadd.f32 0.0, %v3123
  %v3125 = vpop.f32.mrb[0].mxu0
  %3126 = vmatprep.mubr.f32.mxu0 0.0
  %3127 = vmatmul.mubr.f32.gmra.mrb[0].mxu0 %v2957
  %v3128 = vpop.f32.mrb[0].mxu0
  %v3129 = vadd.f32 0.0, %v3128
  %v3130 = vpop.f32.mrb[0].mxu0
  %3131 = vmatprep.mubr.f32.mxu0 0.0
  %3132 = vmatmul.mubr.f32.gmra.mrb[0].mxu0 %v2960
  %v3133 = vpop.f32.mrb[0].mxu0
  %v3134 = vadd.f32 0.0, %v3133
  %v3135 = vpop.f32.mrb[0].mxu0
  %3136 = vmatprep.mubr.f32.mxu0 0.0
  %3137 = vmatmul.mubr.f32.gmra.mrb[0].mxu0 %v2963
  %v3138 = vpop.f32.mrb[0].mxu0
  %v3139 = vadd.f32 0.0, %v3138
  %v3140 = vpop.f32.mrb[0].mxu0
  %3141 = vmatprep.mubr.f32.mxu0 0.0
  %3142 = vmatmul.mubr.f32.gmra.mrb[0].mxu0 %v2966
  %v3143 = vpop.f32.mrb[0].mxu0
  %v3144 = vadd.f32 0.0, %v3143
  %v3145 = vpop.f32.mrb[0].mxu0
  %3146 = vmatprep.mubr.f32.mxu0 0.0
  %3147 = vmatmul.mubr.f32.gmra.mrb[0].mxu0 %v2969
  %v3148 = vpop.f32.mrb[0].mxu0
  %v3149 = vadd.f32 0.0, %v3148
  %v3150 = vpop.f32.mrb[0].mxu0
  %3151 = vmatprep.mubr.f32.mxu0 0.0
  %3152 = vmatmul.mubr.f32.gmra.mrb[0].mxu0 %v2972
  %v3153 = vpop.f32.mrb[0].mxu0
  %v3154 = vadd.f32 0.0, %v3153
  %v3155 = vpop.f32.mrb[0].mxu0
  %3156 = vmatprep.mubr.f32.mxu0 0.0
  %3157 = vmatmul.mubr.f32.gmra.mrb[0].mxu0 %v2975
  %v3158 = vpop.f32.mrb[0].mxu0
  %v3159 = vadd.f32 0.0, %v3158
  %v3160 = vpop.f32.mrb[0].mxu0
  %3161 = vmatprep.mubr.f32.mxu0 0.0
  %3162 = vmatmul.mubr.f32.gmra.mrb[0].mxu0 %v2978
  %v3163 = vpop.f32.mrb[0].mxu0
  %v3164 = vadd.f32 0.0, %v3163
  %v3165 = vpop.f32.mrb[0].mxu0
  %3166 = vmatprep.mubr.f32.mxu0 0.0
  %3167 = vmatmul.mubr.f32.gmra.mrb[0].mxu0 %v2981
  %v3168 = vpop.f32.mrb[0].mxu0
  %v3169 = vadd.f32 0.0, %v3168
  %v3170 = vpop.f32.mrb[0].mxu0
  %3171 = vmatprep.mubr.f32.mxu0 0.0
  %3172 = vmatmul.mubr.f32.gmra.mrb[0].mxu0 %v2984
  %v3173 = vpop.f32.mrb[0].mxu0
  %v3174 = vadd.f32 0.0, %v3173
  %v3175 = vpop.f32.mrb[0].mxu0
  %3176 = vmatprep.mubr.f32.mxu0 0.0
  %3177 = vmatmul.mubr.f32.gmra.mrb[0].mxu0 %v2987
  %v3178 = vpop.f32.mrb[0].mxu0
  %v3179 = vadd.f32 0.0, %v3178
  %v3180 = vpop.f32.mrb[0].mxu0
  %3181 = vmatprep.mubr.f32.mxu0 0.0
  %3182 = vmatmul.mubr.f32.gmra.mrb[0].mxu0 %v2990
  %v3183 = vpop.f32.mrb[0].mxu0
  %v3184 = vadd.f32 0.0, %v3183
  %v3185 = vpop.f32.mrb[0].mxu0
  %3186 = vmatprep.mubr.f32.mxu0 0.0
  %3187 = vmatmul.mubr.f32.gmra.mrb[0].mxu0 %v2993
  %v3188 = vpop.f32.mrb[0].mxu0
  %v3189 = vadd.f32 0.0, %v3188
  %v3190 = vpop.f32.mrb[0].mxu0
  %3191 = vmatprep.mubr.f32.mxu0 0.0
  %3192 = vmatmul.mubr.f32.gmra.mrb[0].mxu0 %v2996
  %v3193 = vpop.f32.mrb[0].mxu0
  %v3194 = vadd.f32 0.0, %v3193
  %v3195 = vpop.f32.mrb[0].mxu0
  %3196 = vmatprep.mubr.f32.mxu0 0.0
  %3197 = vmatmul.mubr.f32.gmra.mrb[0].mxu0 %v2999
  %v3198 = vpop.f32.mrb[0].mxu0
  %v3199 = vadd.f32 0.0, %v3198
  %v3200 = vpop.f32.mrb[0].mxu0
  %3201 = vmatprep.mubr.f32.mxu0 0.0
  %3202 = vmatmul.mubr.f32.gmra.mrb[0].mxu0 %v3002
  %v3203 = vpop.f32.mrb[0].mxu0
  %v3204 = vadd.f32 0.0, %v3203
  %v3205 = vpop.f32.mrb[0].mxu0
  %3206 = vmatprep.mubr.f32.mxu0 0.0
  %3207 = vmatmul.mubr.f32.gmra.mrb[0].mxu0 %v3005
  %v3208 = vpop.f32.mrb[0].mxu0
  %v3209 = vadd.f32 0.0, %v3208
  %v3210 = vpop.f32.mrb[0].mxu0
  %3211 = vmatprep.mubr.f32.mxu0 0.0
  %3212 = vmatmul.mubr.f32.gmra.mrb[0].mxu0 %v3008
  %v3213 = vpop.f32.mrb[0].mxu0
  %v3214 = vadd.f32 0.0, %v3213
  %v3215 = vpop.f32.mrb[0].mxu0
  %3216 = vmatprep.mubr.f32.mxu0 0.0
  %3217 = vmatmul.mubr.f32.gmra.mrb[0].mxu0 %v3011
  %v3218 = vpop.f32.mrb[0].mxu0
  %v3219 = vadd.f32 0.0, %v3218
  %v3220 = vpop.f32.mrb[0].mxu0
  %3221 = vmatprep.mubr.f32.mxu0 0.0
  %3222 = vmatmul.mubr.f32.gmra.mrb[0].mxu0 %v3014
  %v3223 = vpop.f32.mrb[0].mxu0
  %v3224 = vadd.f32 0.0, %v3223
  %v3225 = vpop.f32.mrb[0].mxu0
  %3226 = vmatprep.mubr.f32.mxu0 0.0
  %3227 = vmatmul.mubr.f32.gmra.mrb[0].mxu0 %v3017
  %v3228 = vpop.f32.mrb[0].mxu0
  %v3229 = vadd.f32 0.0, %v3228
  %v3230 = vpop.f32.mrb[0].mxu0
  %3231 = vmatprep.mubr.f32.mxu0 0.0
  %3232 = vmatmul.mubr.f32.gmra.mrb[0].mxu0 %v3020
  %v3233 = vpop.f32.mrb[0].mxu0
  %v3234 = vadd.f32 0.0, %v3233
  %v3235 = vpop.f32.mrb[0].mxu0
  %3236 = vmatprep.mubr.f32.mxu0 0.0
  %3237 = vmatmul.mubr.f32.gmra.mrb[0].mxu0 %v3023
  %v3238 = vpop.f32.mrb[0].mxu0
  %v3239 = vadd.f32 0.0, %v3238
  %v3240 = vpop.f32.mrb[0].mxu0
  %3241 = vmatprep.mubr.f32.mxu0 0.0
  %3242 = vmatmul.mubr.f32.gmra.mrb[0].mxu0 %v3026
  %v3243 = vpop.f32.mrb[0].mxu0
  %v3244 = vadd.f32 0.0, %v3243
  %v3245 = vpop.f32.mrb[0].mxu0
  %3246 = vmatprep.mubr.f32.mxu0 0.0
  %3247 = vmatmul.mubr.f32.gmra.mrb[0].mxu0 %v3029
  %v3248 = vpop.f32.mrb[0].mxu0
  %v3249 = vadd.f32 0.0, %v3248
  %v3250 = vpop.f32.mrb[0].mxu0
  %3251 = vmatprep.mubr.f32.mxu0 0.0
  %3252 = vmatmul.mubr.f32.gmra.mrb[0].mxu0 %v3032
  %v3253 = vpop.f32.mrb[0].mxu0
  %v3254 = vadd.f32 0.0, %v3253
  %v3255 = vpop.f32.mrb[0].mxu0
  %3256 = vmatprep.mubr.f32.mxu0 0.0
  %3257 = vmatmul.mubr.f32.gmra.mrb[0].mxu0 %v3035
  %v3258 = vpop.f32.mrb[0].mxu0
  %v3259 = vadd.f32 0.0, %v3258
  %v3260 = vpop.f32.mrb[0].mxu0
  %3261 = vdwg.mxu0
  %3262 = vmatprep.subr.mxu0 0.0
  %3263 = vmatpush1.msra.mxu0 %v2936
  %3264 = vmatprep.subr.mxu0 0.0
  %3265 = vmatpush1.msra.mxu0 %v2937
  %3266 = vmatprep.subr.mxu0 0.0
  %3267 = vmatpush1.msra.mxu0 0.0
  %3268 = vmatprep.subr.mxu0 0.0
  %3269 = vmatpush1.msra.mxu0 0.0
  %3270 = vmatprep.subr.mxu0 0.0
  %3271 = vmatpush1.msra.mxu0 0.0
  %3272 = vmatprep.subr.mxu0 0.0
  %3273 = vmatpush1.msra.mxu0 0.0
  %3274 = vmatprep.subr.mxu0 0.0
  %3275 = vmatpush1.msra.mxu0 0.0
  %3276 = vmatprep.subr.mxu0 0.0
  %3277 = vmatpush1.msra.mxu0 0.0
  %3278 = vmatprep.subr.mxu0 0.0
  %3279 = vmatpush1.msra.mxu0 0.0
  %3280 = vmatprep.subr.mxu0 0.0
  %3281 = vmatpush1.msra.mxu0 0.0
  %3282 = vmatprep.subr.mxu0 0.0
  %3283 = vmatpush1.msra.mxu0 0.0
  %3284 = vmatprep.subr.mxu0 0.0
  %3285 = vmatpush1.msra.mxu0 0.0
  %3286 = vmatprep.subr.mxu0 0.0
  %3287 = vmatpush1.msra.mxu0 0.0
  %3288 = vmatprep.subr.mxu0 0.0
  %3289 = vmatpush1.msra.mxu0 0.0
  %3290 = vmatprep.subr.mxu0 0.0
  %3291 = vmatpush1.msra.mxu0 0.0
  %3292 = vmatprep.subr.mxu0 0.0
  %3293 = vmatpush1.msra.mxu0 0.0
  %3294 = vmatprep.subr.mxu0 0.0
  %3295 = vmatpush1.msra.mxu0 0.0
  %3296 = vmatprep.subr.mxu0 0.0
  %3297 = vmatpush1.msra.mxu0 0.0
  %3298 = vmatprep.subr.mxu0 0.0
  %3299 = vmatpush1.msra.mxu0 0.0
  %3300 = vmatprep.subr.mxu0 0.0
  %3301 = vmatpush1.msra.mxu0 0.0
  %3302 = vmatprep.subr.mxu0 0.0
  %3303 = vmatpush1.msra.mxu0 0.0
  %3304 = vmatprep.subr.mxu0 0.0
  %3305 = vmatpush1.msra.mxu0 0.0
  %3306 = vmatprep.subr.mxu0 0.0
  %3307 = vmatpush1.msra.mxu0 0.0
  %3308 = vmatprep.subr.mxu0 0.0
  %3309 = vmatpush1.msra.mxu0 0.0
  %3310 = vmatprep.subr.mxu0 0.0
  %3311 = vmatpush1.msra.mxu0 0.0
  %3312 = vmatprep.subr.mxu0 0.0
  %3313 = vmatpush1.msra.mxu0 0.0
  %3314 = vmatprep.subr.mxu0 0.0
  %3315 = vmatpush1.msra.mxu0 0.0
  %3316 = vmatprep.subr.mxu0 0.0
  %3317 = vmatpush1.msra.mxu0 0.0
  %3318 = vmatprep.subr.mxu0 0.0
  %3319 = vmatpush1.msra.mxu0 0.0
  %3320 = vmatprep.subr.mxu0 0.0
  %3321 = vmatpush1.msra.mxu0 0.0
  %3322 = vmatprep.subr.mxu0 0.0
  %3323 = vmatpush1.msra.mxu0 0.0
  %3324 = vmatprep.subr.mxu0 0.0
  %3325 = vmatpush1.msra.mxu0 0.0
  %3326 = vmatprep.mubr.f32.mxu0 0.0
  %3327 = vmatmul.mubr.f32.gmra.mrb[0].mxu0 %v1266
  %v3328 = vpop.f32.mrb[0].mxu0
  %v3329 = vadd.f32 %v3104, %v3328
  %v3330 = vpop.f32.mrb[0].mxu0
  %3331 = vmatprep.mubr.f32.mxu0 0.0
  %3332 = vmatmul.mubr.f32.gmra.mrb[0].mxu0 %v1266
  %v3333 = vpop.f32.mrb[0].mxu0
  %v3334 = vadd.f32 %v3109, %v3333
  %v3335 = vpop.f32.mrb[0].mxu0
  %3336 = vmatprep.mubr.f32.mxu0 0.0
  %3337 = vmatmul.mubr.f32.gmra.mrb[0].mxu0 %v1266
  %v3338 = vpop.f32.mrb[0].mxu0
  %v3339 = vadd.f32 %v3114, %v3338
  %v3340 = vpop.f32.mrb[0].mxu0
  %3341 = vmatprep.mubr.f32.mxu0 0.0
  %3342 = vmatmul.mubr.f32.gmra.mrb[0].mxu0 %v1266
  %v3343 = vpop.f32.mrb[0].mxu0
  %v3344 = vadd.f32 %v3119, %v3343
  %v3345 = vpop.f32.mrb[0].mxu0
  %3346 = vmatprep.mubr.f32.mxu0 0.0
  %3347 = vmatmul.mubr.f32.gmra.mrb[0].mxu0 %v2942
  %v3348 = vpop.f32.mrb[0].mxu0
  %v3349 = vadd.f32 %v3124, %v3348
  %v3350 = vpop.f32.mrb[0].mxu0
  %3351 = vmatprep.mubr.f32.mxu0 0.0
  %3352 = vmatmul.mubr.f32.gmra.mrb[0].mxu0 %v2945
  %v3353 = vpop.f32.mrb[0].mxu0
  %v3354 = vadd.f32 %v3129, %v3353
  %v3355 = vpop.f32.mrb[0].mxu0
  %3356 = vmatprep.mubr.f32.mxu0 0.0
  %3357 = vmatmul.mubr.f32.gmra.mrb[0].mxu0 %v2948
  %v3358 = vpop.f32.mrb[0].mxu0
  %v3359 = vadd.f32 %v3134, %v3358
  %v3360 = vpop.f32.mrb[0].mxu0
  %3361 = vmatprep.mubr.f32.mxu0 0.0
  %3362 = vmatmul.mubr.f32.gmra.mrb[0].mxu0 %v2951
  %v3363 = vpop.f32.mrb[0].mxu0
  %v3364 = vadd.f32 %v3139, %v3363
  %v3365 = vpop.f32.mrb[0].mxu0
  %3366 = vmatprep.mubr.f32.mxu0 0.0
  %3367 = vmatmul.mubr.f32.gmra.mrb[0].mxu0 %v2954
  %v3368 = vpop.f32.mrb[0].mxu0
  %v3369 = vadd.f32 %v3144, %v3368
  %v3370 = vpop.f32.mrb[0].mxu0
  %3371 = vmatprep.mubr.f32.mxu0 0.0
  %3372 = vmatmul.mubr.f32.gmra.mrb[0].mxu0 %v2957
  %v3373 = vpop.f32.mrb[0].mxu0
  %v3374 = vadd.f32 %v3149, %v3373
  %v3375 = vpop.f32.mrb[0].mxu0
  %3376 = vmatprep.mubr.f32.mxu0 0.0
  %3377 = vmatmul.mubr.f32.gmra.mrb[0].mxu0 %v2960
  %v3378 = vpop.f32.mrb[0].mxu0
  %v3379 = vadd.f32 %v3154, %v3378
  %v3380 = vpop.f32.mrb[0].mxu0
  %3381 = vmatprep.mubr.f32.mxu0 0.0
  %3382 = vmatmul.mubr.f32.gmra.mrb[0].mxu0 %v2963
  %v3383 = vpop.f32.mrb[0].mxu0
  %v3384 = vadd.f32 %v3159, %v3383
  %v3385 = vpop.f32.mrb[0].mxu0
  %3386 = vmatprep.mubr.f32.mxu0 0.0
  %3387 = vmatmul.mubr.f32.gmra.mrb[0].mxu0 %v2966
  %v3388 = vpop.f32.mrb[0].mxu0
  %v3389 = vadd.f32 %v3164, %v3388
  %v3390 = vpop.f32.mrb[0].mxu0
  %3391 = vmatprep.mubr.f32.mxu0 0.0
  %3392 = vmatmul.mubr.f32.gmra.mrb[0].mxu0 %v2969
  %v3393 = vpop.f32.mrb[0].mxu0
  %v3394 = vadd.f32 %v3169, %v3393
  %v3395 = vpop.f32.mrb[0].mxu0
  %3396 = vmatprep.mubr.f32.mxu0 0.0
  %3397 = vmatmul.mubr.f32.gmra.mrb[0].mxu0 %v2972
  %v3398 = vpop.f32.mrb[0].mxu0
  %v3399 = vadd.f32 %v3174, %v3398
  %v3400 = vpop.f32.mrb[0].mxu0
  %3401 = vmatprep.mubr.f32.mxu0 0.0
  %3402 = vmatmul.mubr.f32.gmra.mrb[0].mxu0 %v2975
  %v3403 = vpop.f32.mrb[0].mxu0
  %v3404 = vadd.f32 %v3179, %v3403
  %v3405 = vpop.f32.mrb[0].mxu0
  %3406 = vmatprep.mubr.f32.mxu0 0.0
  %3407 = vmatmul.mubr.f32.gmra.mrb[0].mxu0 %v2978
  %v3408 = vpop.f32.mrb[0].mxu0
  %v3409 = vadd.f32 %v3184, %v3408
  %v3410 = vpop.f32.mrb[0].mxu0
  %3411 = vmatprep.mubr.f32.mxu0 0.0
  %3412 = vmatmul.mubr.f32.gmra.mrb[0].mxu0 %v2981
  %v3413 = vpop.f32.mrb[0].mxu0
  %v3414 = vadd.f32 %v3189, %v3413
  %v3415 = vpop.f32.mrb[0].mxu0
  %3416 = vmatprep.mubr.f32.mxu0 0.0
  %3417 = vmatmul.mubr.f32.gmra.mrb[0].mxu0 %v2984
  %v3418 = vpop.f32.mrb[0].mxu0
  %v3419 = vadd.f32 %v3194, %v3418
  %v3420 = vpop.f32.mrb[0].mxu0
  %3421 = vmatprep.mubr.f32.mxu0 0.0
  %3422 = vmatmul.mubr.f32.gmra.mrb[0].mxu0 %v2987
  %v3423 = vpop.f32.mrb[0].mxu0
  %v3424 = vadd.f32 %v3199, %v3423
  %v3425 = vpop.f32.mrb[0].mxu0
  %3426 = vmatprep.mubr.f32.mxu0 0.0
  %3427 = vmatmul.mubr.f32.gmra.mrb[0].mxu0 %v2990
  %v3428 = vpop.f32.mrb[0].mxu0
  %v3429 = vadd.f32 %v3204, %v3428
  %v3430 = vpop.f32.mrb[0].mxu0
  %3431 = vmatprep.mubr.f32.mxu0 0.0
  %3432 = vmatmul.mubr.f32.gmra.mrb[0].mxu0 %v2993
  %v3433 = vpop.f32.mrb[0].mxu0
  %v3434 = vadd.f32 %v3209, %v3433
  %v3435 = vpop.f32.mrb[0].mxu0
  %3436 = vmatprep.mubr.f32.mxu0 0.0
  %3437 = vmatmul.mubr.f32.gmra.mrb[0].mxu0 %v2996
  %v3438 = vpop.f32.mrb[0].mxu0
  %v3439 = vadd.f32 %v3214, %v3438
  %v3440 = vpop.f32.mrb[0].mxu0
  %3441 = vmatprep.mubr.f32.mxu0 0.0
  %3442 = vmatmul.mubr.f32.gmra.mrb[0].mxu0 %v2999
  %v3443 = vpop.f32.mrb[0].mxu0
  %v3444 = vadd.f32 %v3219, %v3443
  %v3445 = vpop.f32.mrb[0].mxu0
  %3446 = vmatprep.mubr.f32.mxu0 0.0
  %3447 = vmatmul.mubr.f32.gmra.mrb[0].mxu0 %v3002
  %v3448 = vpop.f32.mrb[0].mxu0
  %v3449 = vadd.f32 %v3224, %v3448
  %v3450 = vpop.f32.mrb[0].mxu0
  %3451 = vmatprep.mubr.f32.mxu0 0.0
  %3452 = vmatmul.mubr.f32.gmra.mrb[0].mxu0 %v3005
  %v3453 = vpop.f32.mrb[0].mxu0
  %v3454 = vadd.f32 %v3229, %v3453
  %v3455 = vpop.f32.mrb[0].mxu0
  %3456 = vmatprep.mubr.f32.mxu0 0.0
  %3457 = vmatmul.mubr.f32.gmra.mrb[0].mxu0 %v3008
  %v3458 = vpop.f32.mrb[0].mxu0
  %v3459 = vadd.f32 %v3234, %v3458
  %v3460 = vpop.f32.mrb[0].mxu0
  %3461 = vmatprep.mubr.f32.mxu0 0.0
  %3462 = vmatmul.mubr.f32.gmra.mrb[0].mxu0 %v3011
  %v3463 = vpop.f32.mrb[0].mxu0
  %v3464 = vadd.f32 %v3239, %v3463
  %v3465 = vpop.f32.mrb[0].mxu0
  %3466 = vmatprep.mubr.f32.mxu0 0.0
  %3467 = vmatmul.mubr.f32.gmra.mrb[0].mxu0 %v3014
  %v3468 = vpop.f32.mrb[0].mxu0
  %v3469 = vadd.f32 %v3244, %v3468
  %v3470 = vpop.f32.mrb[0].mxu0
  %3471 = vmatprep.mubr.f32.mxu0 0.0
  %3472 = vmatmul.mubr.f32.gmra.mrb[0].mxu0 %v3017
  %v3473 = vpop.f32.mrb[0].mxu0
  %v3474 = vadd.f32 %v3249, %v3473
  %v3475 = vpop.f32.mrb[0].mxu0
  %3476 = vmatprep.mubr.f32.mxu0 0.0
  %3477 = vmatmul.mubr.f32.gmra.mrb[0].mxu0 %v3020
  %v3478 = vpop.f32.mrb[0].mxu0
  %v3479 = vadd.f32 %v3254, %v3478
  %v3480 = vpop.f32.mrb[0].mxu0
  %3481 = vmatprep.mubr.f32.mxu0 0.0
  %3482 = vmatmul.mubr.f32.gmra.mrb[0].mxu0 %v3023
  %v3483 = vpop.f32.mrb[0].mxu0
  %v3484 = vadd.f32 %v3259, %v3483
  %v3485 = vpop.f32.mrb[0].mxu0
  %3486 = vdwg.mxu0
  %v3487 = vld [vmem:[%s12] sm:$0x1]
  %v3489 = vlaneseq
  %v3490 = vshrl.u32 %v3489, 7
  %v3491 = vsub.s32 0, %v3490
  %v3492 = vrot.slane %v3487, %v3491
  %v3494 = vadd.f32 %v3329, %v3492
  %v3495 = vadd.f32 %v3334, %v3492
  %v3496 = vadd.f32 %v3339, %v3492
  %v3497 = vadd.f32 %v3344, %v3492
  %v3498 = vadd.f32 %v3349, %v3492
  %v3499 = vadd.f32 %v3354, %v3492
  %v3500 = vadd.f32 %v3359, %v3492
  %v3501 = vadd.f32 %v3364, %v3492
  %v3502 = vadd.f32 %v3369, %v3492
  %v3503 = vadd.f32 %v3374, %v3492
  %v3504 = vadd.f32 %v3379, %v3492
  %v3505 = vadd.f32 %v3384, %v3492
  %v3506 = vadd.f32 %v3389, %v3492
  %v3507 = vadd.f32 %v3394, %v3492
  %v3508 = vadd.f32 %v3399, %v3492
  %v3509 = vadd.f32 %v3404, %v3492
  %v3510 = vadd.f32 %v3409, %v3492
  %v3511 = vadd.f32 %v3414, %v3492
  %v3512 = vadd.f32 %v3419, %v3492
  %v3513 = vadd.f32 %v3424, %v3492
  %v3514 = vadd.f32 %v3429, %v3492
  %v3515 = vadd.f32 %v3434, %v3492
  %v3516 = vadd.f32 %v3439, %v3492
  %v3517 = vadd.f32 %v3444, %v3492
  %v3518 = vadd.f32 %v3449, %v3492
  %v3519 = vadd.f32 %v3454, %v3492
  %v3520 = vadd.f32 %v3459, %v3492
  %v3521 = vadd.f32 %v3464, %v3492
  %v3522 = vadd.f32 %v3469, %v3492
  %v3523 = vadd.f32 %v3474, %v3492
  %v3524 = vadd.f32 %v3479, %v3492
  %v3525 = vadd.f32 %v3484, %v3492
  %v3526 = vmax.f32 %v3494, 0.0
  %v3527 = vmax.f32 %v3495, 0.0
  %v3528 = vmax.f32 %v3496, 0.0
  %v3529 = vmax.f32 %v3497, 0.0
  %v3530 = vmax.f32 %v3498, 0.0
  %v3531 = vmax.f32 %v3499, 0.0
  %v3532 = vmax.f32 %v3500, 0.0
  %v3533 = vmax.f32 %v3501, 0.0
  %v3534 = vmax.f32 %v3502, 0.0
  %v3535 = vmax.f32 %v3503, 0.0
  %v3536 = vmax.f32 %v3504, 0.0
  %v3537 = vmax.f32 %v3505, 0.0
  %v3538 = vmax.f32 %v3506, 0.0
  %v3539 = vmax.f32 %v3507, 0.0
  %v3540 = vmax.f32 %v3508, 0.0
  %v3541 = vmax.f32 %v3509, 0.0
  %v3542 = vmax.f32 %v3510, 0.0
  %v3543 = vmax.f32 %v3511, 0.0
  %v3544 = vmax.f32 %v3512, 0.0
  %v3545 = vmax.f32 %v3513, 0.0
  %v3546 = vmax.f32 %v3514, 0.0
  %v3547 = vmax.f32 %v3515, 0.0
  %v3548 = vmax.f32 %v3516, 0.0
  %v3549 = vmax.f32 %v3517, 0.0
  %v3550 = vmax.f32 %v3518, 0.0
  %v3551 = vmax.f32 %v3519, 0.0
  %v3552 = vmax.f32 %v3520, 0.0
  %v3553 = vmax.f32 %v3521, 0.0
  %v3554 = vmax.f32 %v3522, 0.0
  %v3555 = vmax.f32 %v3523, 0.0
  %v3556 = vmax.f32 %v3524, 0.0
  %v3557 = vmax.f32 %v3525, 0.0
  %v3558 = vld [vmem:[%s13] sm:$0xff]
  %v3559 = vld [vmem:[%s13 + $0x8] sm:$0xff]
  %s3560 = scalar_lea.vmem %s13, 16
  %v3561 = vld [vmem:[%s3560] sm:$0xff]
  %v3562 = vld [vmem:[%s3560 + $0x8] sm:$0xff]
  %v3564 = vsel %vm944, %v3526, 0
  %v3567 = vsel %vm944, %v3527, 0
  %v3570 = vsel %vm944, %v3528, 0
  %v3573 = vsel %vm944, %v3529, 0
  %v3576 = vsel %vm944, %v3530, 0
  %v3579 = vsel %vm944, %v3531, 0
  %v3582 = vsel %vm944, %v3532, 0
  %v3585 = vsel %vm944, %v3533, 0
  %v3588 = vsel %vm944, %v3534, 0
  %v3591 = vsel %vm944, %v3535, 0
  %v3594 = vsel %vm944, %v3536, 0
  %v3597 = vsel %vm944, %v3537, 0
  %v3600 = vsel %vm944, %v3538, 0
  %v3603 = vsel %vm944, %v3539, 0
  %v3606 = vsel %vm944, %v3540, 0
  %v3609 = vsel %vm944, %v3541, 0
  %v3612 = vsel %vm944, %v3542, 0
  %v3615 = vsel %vm944, %v3543, 0
  %v3618 = vsel %vm944, %v3544, 0
  %v3621 = vsel %vm944, %v3545, 0
  %v3624 = vsel %vm944, %v3546, 0
  %v3627 = vsel %vm944, %v3547, 0
  %v3630 = vsel %vm944, %v3548, 0
  %v3633 = vsel %vm944, %v3549, 0
  %v3636 = vsel %vm944, %v3550, 0
  %v3639 = vsel %vm944, %v3551, 0
  %v3642 = vsel %vm944, %v3552, 0
  %v3645 = vsel %vm944, %v3553, 0
  %v3648 = vsel %vm944, %v3554, 0
  %v3651 = vsel %vm944, %v3555, 0
  %v3654 = vsel %vm944, %v3556, 0
  %v3657 = vsel %vm944, %v3557, 0
  %3659 = vmatprep.subr.mxu0 0.0
  %3660 = vmatpush1.msra.mxu0 %v3561
  %3661 = vmatprep.subr.mxu0 0.0
  %3662 = vmatpush1.msra.mxu0 %v3562
  %3663 = vmatprep.subr.mxu0 0.0
  %3664 = vmatpush1.msra.mxu0 0.0
  %3665 = vmatprep.subr.mxu0 0.0
  %3666 = vmatpush1.msra.mxu0 0.0
  %3667 = vmatprep.subr.mxu0 0.0
  %3668 = vmatpush1.msra.mxu0 0.0
  %3669 = vmatprep.subr.mxu0 0.0
  %3670 = vmatpush1.msra.mxu0 0.0
  %3671 = vmatprep.subr.mxu0 0.0
  %3672 = vmatpush1.msra.mxu0 0.0
  %3673 = vmatprep.subr.mxu0 0.0
  %3674 = vmatpush1.msra.mxu0 0.0
  %3675 = vmatprep.subr.mxu0 0.0
  %3676 = vmatpush1.msra.mxu0 0.0
  %3677 = vmatprep.subr.mxu0 0.0
  %3678 = vmatpush1.msra.mxu0 0.0
  %3679 = vmatprep.subr.mxu0 0.0
  %3680 = vmatpush1.msra.mxu0 0.0
  %3681 = vmatprep.subr.mxu0 0.0
  %3682 = vmatpush1.msra.mxu0 0.0
  %3683 = vmatprep.subr.mxu0 0.0
  %3684 = vmatpush1.msra.mxu0 0.0
  %3685 = vmatprep.subr.mxu0 0.0
  %3686 = vmatpush1.msra.mxu0 0.0
  %3687 = vmatprep.subr.mxu0 0.0
  %3688 = vmatpush1.msra.mxu0 0.0
  %3689 = vmatprep.subr.mxu0 0.0
  %3690 = vmatpush1.msra.mxu0 0.0
  %3691 = vmatprep.subr.mxu0 0.0
  %3692 = vmatpush1.msra.mxu0 0.0
  %3693 = vmatprep.subr.mxu0 0.0
  %3694 = vmatpush1.msra.mxu0 0.0
  %3695 = vmatprep.subr.mxu0 0.0
  %3696 = vmatpush1.msra.mxu0 0.0
  %3697 = vmatprep.subr.mxu0 0.0
  %3698 = vmatpush1.msra.mxu0 0.0
  %3699 = vmatprep.subr.mxu0 0.0
  %3700 = vmatpush1.msra.mxu0 0.0
  %3701 = vmatprep.subr.mxu0 0.0
  %3702 = vmatpush1.msra.mxu0 0.0
  %3703 = vmatprep.subr.mxu0 0.0
  %3704 = vmatpush1.msra.mxu0 0.0
  %3705 = vmatprep.subr.mxu0 0.0
  %3706 = vmatpush1.msra.mxu0 0.0
  %3707 = vmatprep.subr.mxu0 0.0
  %3708 = vmatpush1.msra.mxu0 0.0
  %3709 = vmatprep.subr.mxu0 0.0
  %3710 = vmatpush1.msra.mxu0 0.0
  %3711 = vmatprep.subr.mxu0 0.0
  %3712 = vmatpush1.msra.mxu0 0.0
  %3713 = vmatprep.subr.mxu0 0.0
  %3714 = vmatpush1.msra.mxu0 0.0
  %3715 = vmatprep.subr.mxu0 0.0
  %3716 = vmatpush1.msra.mxu0 0.0
  %3717 = vmatprep.subr.mxu0 0.0
  %3718 = vmatpush1.msra.mxu0 0.0
  %3719 = vmatprep.subr.mxu0 0.0
  %3720 = vmatpush1.msra.mxu0 0.0
  %3721 = vmatprep.subr.mxu0 0.0
  %3722 = vmatpush1.msra.mxu0 0.0
  %3723 = vmatprep.mubr.f32.mxu0 0.0
  %3724 = vmatmul.mubr.f32.gmra.mrb[0].mxu0 %v3564
  %v3725 = vpop.f32.mrb[0].mxu0
  %v3726 = vadd.f32 0.0, %v3725
  %v3727 = vpop.f32.mrb[0].mxu0
  %3728 = vmatprep.mubr.f32.mxu0 0.0
  %3729 = vmatmul.mubr.f32.gmra.mrb[0].mxu0 %v3567
  %v3730 = vpop.f32.mrb[0].mxu0
  %v3731 = vadd.f32 0.0, %v3730
  %v3732 = vpop.f32.mrb[0].mxu0
  %3733 = vmatprep.mubr.f32.mxu0 0.0
  %3734 = vmatmul.mubr.f32.gmra.mrb[0].mxu0 %v3570
  %v3735 = vpop.f32.mrb[0].mxu0
  %v3736 = vadd.f32 0.0, %v3735
  %v3737 = vpop.f32.mrb[0].mxu0
  %3738 = vmatprep.mubr.f32.mxu0 0.0
  %3739 = vmatmul.mubr.f32.gmra.mrb[0].mxu0 %v3573
  %v3740 = vpop.f32.mrb[0].mxu0
  %v3741 = vadd.f32 0.0, %v3740
  %v3742 = vpop.f32.mrb[0].mxu0
  %3743 = vmatprep.mubr.f32.mxu0 0.0
  %3744 = vmatmul.mubr.f32.gmra.mrb[0].mxu0 %v3576
  %v3745 = vpop.f32.mrb[0].mxu0
  %v3746 = vadd.f32 0.0, %v3745
  %v3747 = vpop.f32.mrb[0].mxu0
  %3748 = vmatprep.mubr.f32.mxu0 0.0
  %3749 = vmatmul.mubr.f32.gmra.mrb[0].mxu0 %v3579
  %v3750 = vpop.f32.mrb[0].mxu0
  %v3751 = vadd.f32 0.0, %v3750
  %v3752 = vpop.f32.mrb[0].mxu0
  %3753 = vmatprep.mubr.f32.mxu0 0.0
  %3754 = vmatmul.mubr.f32.gmra.mrb[0].mxu0 %v3582
  %v3755 = vpop.f32.mrb[0].mxu0
  %v3756 = vadd.f32 0.0, %v3755
  %v3757 = vpop.f32.mrb[0].mxu0
  %3758 = vmatprep.mubr.f32.mxu0 0.0
  %3759 = vmatmul.mubr.f32.gmra.mrb[0].mxu0 %v3585
  %v3760 = vpop.f32.mrb[0].mxu0
  %v3761 = vadd.f32 0.0, %v3760
  %v3762 = vpop.f32.mrb[0].mxu0
  %3763 = vmatprep.mubr.f32.mxu0 0.0
  %3764 = vmatmul.mubr.f32.gmra.mrb[0].mxu0 %v3588
  %v3765 = vpop.f32.mrb[0].mxu0
  %v3766 = vadd.f32 0.0, %v3765
  %v3767 = vpop.f32.mrb[0].mxu0
  %3768 = vmatprep.mubr.f32.mxu0 0.0
  %3769 = vmatmul.mubr.f32.gmra.mrb[0].mxu0 %v3591
  %v3770 = vpop.f32.mrb[0].mxu0
  %v3771 = vadd.f32 0.0, %v3770
  %v3772 = vpop.f32.mrb[0].mxu0
  %3773 = vmatprep.mubr.f32.mxu0 0.0
  %3774 = vmatmul.mubr.f32.gmra.mrb[0].mxu0 %v3594
  %v3775 = vpop.f32.mrb[0].mxu0
  %v3776 = vadd.f32 0.0, %v3775
  %v3777 = vpop.f32.mrb[0].mxu0
  %3778 = vmatprep.mubr.f32.mxu0 0.0
  %3779 = vmatmul.mubr.f32.gmra.mrb[0].mxu0 %v3597
  %v3780 = vpop.f32.mrb[0].mxu0
  %v3781 = vadd.f32 0.0, %v3780
  %v3782 = vpop.f32.mrb[0].mxu0
  %3783 = vmatprep.mubr.f32.mxu0 0.0
  %3784 = vmatmul.mubr.f32.gmra.mrb[0].mxu0 %v3600
  %v3785 = vpop.f32.mrb[0].mxu0
  %v3786 = vadd.f32 0.0, %v3785
  %v3787 = vpop.f32.mrb[0].mxu0
  %3788 = vmatprep.mubr.f32.mxu0 0.0
  %3789 = vmatmul.mubr.f32.gmra.mrb[0].mxu0 %v3603
  %v3790 = vpop.f32.mrb[0].mxu0
  %v3791 = vadd.f32 0.0, %v3790
  %v3792 = vpop.f32.mrb[0].mxu0
  %3793 = vmatprep.mubr.f32.mxu0 0.0
  %3794 = vmatmul.mubr.f32.gmra.mrb[0].mxu0 %v3606
  %v3795 = vpop.f32.mrb[0].mxu0
  %v3796 = vadd.f32 0.0, %v3795
  %v3797 = vpop.f32.mrb[0].mxu0
  %3798 = vmatprep.mubr.f32.mxu0 0.0
  %3799 = vmatmul.mubr.f32.gmra.mrb[0].mxu0 %v3609
  %v3800 = vpop.f32.mrb[0].mxu0
  %v3801 = vadd.f32 0.0, %v3800
  %v3802 = vpop.f32.mrb[0].mxu0
  %3803 = vmatprep.mubr.f32.mxu0 0.0
  %3804 = vmatmul.mubr.f32.gmra.mrb[0].mxu0 %v3612
  %v3805 = vpop.f32.mrb[0].mxu0
  %v3806 = vadd.f32 0.0, %v3805
  %v3807 = vpop.f32.mrb[0].mxu0
  %3808 = vmatprep.mubr.f32.mxu0 0.0
  %3809 = vmatmul.mubr.f32.gmra.mrb[0].mxu0 %v3615
  %v3810 = vpop.f32.mrb[0].mxu0
  %v3811 = vadd.f32 0.0, %v3810
  %v3812 = vpop.f32.mrb[0].mxu0
  %3813 = vmatprep.mubr.f32.mxu0 0.0
  %3814 = vmatmul.mubr.f32.gmra.mrb[0].mxu0 %v3618
  %v3815 = vpop.f32.mrb[0].mxu0
  %v3816 = vadd.f32 0.0, %v3815
  %v3817 = vpop.f32.mrb[0].mxu0
  %3818 = vmatprep.mubr.f32.mxu0 0.0
  %3819 = vmatmul.mubr.f32.gmra.mrb[0].mxu0 %v3621
  %v3820 = vpop.f32.mrb[0].mxu0
  %v3821 = vadd.f32 0.0, %v3820
  %v3822 = vpop.f32.mrb[0].mxu0
  %3823 = vmatprep.mubr.f32.mxu0 0.0
  %3824 = vmatmul.mubr.f32.gmra.mrb[0].mxu0 %v3624
  %v3825 = vpop.f32.mrb[0].mxu0
  %v3826 = vadd.f32 0.0, %v3825
  %v3827 = vpop.f32.mrb[0].mxu0
  %3828 = vmatprep.mubr.f32.mxu0 0.0
  %3829 = vmatmul.mubr.f32.gmra.mrb[0].mxu0 %v3627
  %v3830 = vpop.f32.mrb[0].mxu0
  %v3831 = vadd.f32 0.0, %v3830
  %v3832 = vpop.f32.mrb[0].mxu0
  %3833 = vmatprep.mubr.f32.mxu0 0.0
  %3834 = vmatmul.mubr.f32.gmra.mrb[0].mxu0 %v3630
  %v3835 = vpop.f32.mrb[0].mxu0
  %v3836 = vadd.f32 0.0, %v3835
  %v3837 = vpop.f32.mrb[0].mxu0
  %3838 = vmatprep.mubr.f32.mxu0 0.0
  %3839 = vmatmul.mubr.f32.gmra.mrb[0].mxu0 %v3633
  %v3840 = vpop.f32.mrb[0].mxu0
  %v3841 = vadd.f32 0.0, %v3840
  %v3842 = vpop.f32.mrb[0].mxu0
  %3843 = vmatprep.mubr.f32.mxu0 0.0
  %3844 = vmatmul.mubr.f32.gmra.mrb[0].mxu0 %v3636
  %v3845 = vpop.f32.mrb[0].mxu0
  %v3846 = vadd.f32 0.0, %v3845
  %v3847 = vpop.f32.mrb[0].mxu0
  %3848 = vmatprep.mubr.f32.mxu0 0.0
  %3849 = vmatmul.mubr.f32.gmra.mrb[0].mxu0 %v3639
  %v3850 = vpop.f32.mrb[0].mxu0
  %v3851 = vadd.f32 0.0, %v3850
  %v3852 = vpop.f32.mrb[0].mxu0
  %3853 = vmatprep.mubr.f32.mxu0 0.0
  %3854 = vmatmul.mubr.f32.gmra.mrb[0].mxu0 %v3642
  %v3855 = vpop.f32.mrb[0].mxu0
  %v3856 = vadd.f32 0.0, %v3855
  %v3857 = vpop.f32.mrb[0].mxu0
  %3858 = vmatprep.mubr.f32.mxu0 0.0
  %3859 = vmatmul.mubr.f32.gmra.mrb[0].mxu0 %v3645
  %v3860 = vpop.f32.mrb[0].mxu0
  %v3861 = vadd.f32 0.0, %v3860
  %v3862 = vpop.f32.mrb[0].mxu0
  %3863 = vmatprep.mubr.f32.mxu0 0.0
  %3864 = vmatmul.mubr.f32.gmra.mrb[0].mxu0 %v3648
  %v3865 = vpop.f32.mrb[0].mxu0
  %v3866 = vadd.f32 0.0, %v3865
  %v3867 = vpop.f32.mrb[0].mxu0
  %3868 = vmatprep.mubr.f32.mxu0 0.0
  %3869 = vmatmul.mubr.f32.gmra.mrb[0].mxu0 %v3651
  %v3870 = vpop.f32.mrb[0].mxu0
  %v3871 = vadd.f32 0.0, %v3870
  %v3872 = vpop.f32.mrb[0].mxu0
  %3873 = vmatprep.mubr.f32.mxu0 0.0
  %3874 = vmatmul.mubr.f32.gmra.mrb[0].mxu0 %v3654
  %v3875 = vpop.f32.mrb[0].mxu0
  %v3876 = vadd.f32 0.0, %v3875
  %v3877 = vpop.f32.mrb[0].mxu0
  %3878 = vmatprep.mubr.f32.mxu0 0.0
  %3879 = vmatmul.mubr.f32.gmra.mrb[0].mxu0 %v3657
  %v3880 = vpop.f32.mrb[0].mxu0
  %v3881 = vadd.f32 0.0, %v3880
  %v3882 = vpop.f32.mrb[0].mxu0
  %3883 = vdwg.mxu0
  %3884 = vmatprep.subr.mxu0 0.0
  %3885 = vmatpush1.msra.mxu0 %v3558
  %3886 = vmatprep.subr.mxu0 0.0
  %3887 = vmatpush1.msra.mxu0 %v3559
  %3888 = vmatprep.subr.mxu0 0.0
  %3889 = vmatpush1.msra.mxu0 0.0
  %3890 = vmatprep.subr.mxu0 0.0
  %3891 = vmatpush1.msra.mxu0 0.0
  %3892 = vmatprep.subr.mxu0 0.0
  %3893 = vmatpush1.msra.mxu0 0.0
  %3894 = vmatprep.subr.mxu0 0.0
  %3895 = vmatpush1.msra.mxu0 0.0
  %3896 = vmatprep.subr.mxu0 0.0
  %3897 = vmatpush1.msra.mxu0 0.0
  %3898 = vmatprep.subr.mxu0 0.0
  %3899 = vmatpush1.msra.mxu0 0.0
  %3900 = vmatprep.subr.mxu0 0.0
  %3901 = vmatpush1.msra.mxu0 0.0
  %3902 = vmatprep.subr.mxu0 0.0
  %3903 = vmatpush1.msra.mxu0 0.0
  %3904 = vmatprep.subr.mxu0 0.0
  %3905 = vmatpush1.msra.mxu0 0.0
  %3906 = vmatprep.subr.mxu0 0.0
  %3907 = vmatpush1.msra.mxu0 0.0
  %3908 = vmatprep.subr.mxu0 0.0
  %3909 = vmatpush1.msra.mxu0 0.0
  %3910 = vmatprep.subr.mxu0 0.0
  %3911 = vmatpush1.msra.mxu0 0.0
  %3912 = vmatprep.subr.mxu0 0.0
  %3913 = vmatpush1.msra.mxu0 0.0
  %3914 = vmatprep.subr.mxu0 0.0
  %3915 = vmatpush1.msra.mxu0 0.0
  %3916 = vmatprep.subr.mxu0 0.0
  %3917 = vmatpush1.msra.mxu0 0.0
  %3918 = vmatprep.subr.mxu0 0.0
  %3919 = vmatpush1.msra.mxu0 0.0
  %3920 = vmatprep.subr.mxu0 0.0
  %3921 = vmatpush1.msra.mxu0 0.0
  %3922 = vmatprep.subr.mxu0 0.0
  %3923 = vmatpush1.msra.mxu0 0.0
  %3924 = vmatprep.subr.mxu0 0.0
  %3925 = vmatpush1.msra.mxu0 0.0
  %3926 = vmatprep.subr.mxu0 0.0
  %3927 = vmatpush1.msra.mxu0 0.0
  %3928 = vmatprep.subr.mxu0 0.0
  %3929 = vmatpush1.msra.mxu0 0.0
  %3930 = vmatprep.subr.mxu0 0.0
  %3931 = vmatpush1.msra.mxu0 0.0
  %3932 = vmatprep.subr.mxu0 0.0
  %3933 = vmatpush1.msra.mxu0 0.0
  %3934 = vmatprep.subr.mxu0 0.0
  %3935 = vmatpush1.msra.mxu0 0.0
  %3936 = vmatprep.subr.mxu0 0.0
  %3937 = vmatpush1.msra.mxu0 0.0
  %3938 = vmatprep.subr.mxu0 0.0
  %3939 = vmatpush1.msra.mxu0 0.0
  %3940 = vmatprep.subr.mxu0 0.0
  %3941 = vmatpush1.msra.mxu0 0.0
  %3942 = vmatprep.subr.mxu0 0.0
  %3943 = vmatpush1.msra.mxu0 0.0
  %3944 = vmatprep.subr.mxu0 0.0
  %3945 = vmatpush1.msra.mxu0 0.0
  %3946 = vmatprep.subr.mxu0 0.0
  %3947 = vmatpush1.msra.mxu0 0.0
  %3948 = vmatprep.mubr.f32.mxu0 0.0
  %3949 = vmatmul.mubr.f32.gmra.mrb[0].mxu0 %v1266
  %v3950 = vpop.f32.mrb[0].mxu0
  %v3951 = vadd.f32 %v3726, %v3950
  %v3952 = vpop.f32.mrb[0].mxu0
  %3953 = vmatprep.mubr.f32.mxu0 0.0
  %3954 = vmatmul.mubr.f32.gmra.mrb[0].mxu0 %v1266
  %v3955 = vpop.f32.mrb[0].mxu0
  %v3956 = vadd.f32 %v3731, %v3955
  %v3957 = vpop.f32.mrb[0].mxu0
  %3958 = vmatprep.mubr.f32.mxu0 0.0
  %3959 = vmatmul.mubr.f32.gmra.mrb[0].mxu0 %v1266
  %v3960 = vpop.f32.mrb[0].mxu0
  %v3961 = vadd.f32 %v3736, %v3960
  %v3962 = vpop.f32.mrb[0].mxu0
  %3963 = vmatprep.mubr.f32.mxu0 0.0
  %3964 = vmatmul.mubr.f32.gmra.mrb[0].mxu0 %v1266
  %v3965 = vpop.f32.mrb[0].mxu0
  %v3966 = vadd.f32 %v3741, %v3965
  %v3967 = vpop.f32.mrb[0].mxu0
  %3968 = vmatprep.mubr.f32.mxu0 0.0
  %3969 = vmatmul.mubr.f32.gmra.mrb[0].mxu0 %v3564
  %v3970 = vpop.f32.mrb[0].mxu0
  %v3971 = vadd.f32 %v3746, %v3970
  %v3972 = vpop.f32.mrb[0].mxu0
  %3973 = vmatprep.mubr.f32.mxu0 0.0
  %3974 = vmatmul.mubr.f32.gmra.mrb[0].mxu0 %v3567
  %v3975 = vpop.f32.mrb[0].mxu0
  %v3976 = vadd.f32 %v3751, %v3975
  %v3977 = vpop.f32.mrb[0].mxu0
  %3978 = vmatprep.mubr.f32.mxu0 0.0
  %3979 = vmatmul.mubr.f32.gmra.mrb[0].mxu0 %v3570
  %v3980 = vpop.f32.mrb[0].mxu0
  %v3981 = vadd.f32 %v3756, %v3980
  %v3982 = vpop.f32.mrb[0].mxu0
  %3983 = vmatprep.mubr.f32.mxu0 0.0
  %3984 = vmatmul.mubr.f32.gmra.mrb[0].mxu0 %v3573
  %v3985 = vpop.f32.mrb[0].mxu0
  %v3986 = vadd.f32 %v3761, %v3985
  %v3987 = vpop.f32.mrb[0].mxu0
  %3988 = vmatprep.mubr.f32.mxu0 0.0
  %3989 = vmatmul.mubr.f32.gmra.mrb[0].mxu0 %v3576
  %v3990 = vpop.f32.mrb[0].mxu0
  %v3991 = vadd.f32 %v3766, %v3990
  %v3992 = vpop.f32.mrb[0].mxu0
  %3993 = vmatprep.mubr.f32.mxu0 0.0
  %3994 = vmatmul.mubr.f32.gmra.mrb[0].mxu0 %v3579
  %v3995 = vpop.f32.mrb[0].mxu0
  %v3996 = vadd.f32 %v3771, %v3995
  %v3997 = vpop.f32.mrb[0].mxu0
  %3998 = vmatprep.mubr.f32.mxu0 0.0
  %3999 = vmatmul.mubr.f32.gmra.mrb[0].mxu0 %v3582
  %v4000 = vpop.f32.mrb[0].mxu0
  %v4001 = vadd.f32 %v3776, %v4000
  %v4002 = vpop.f32.mrb[0].mxu0
  %4003 = vmatprep.mubr.f32.mxu0 0.0
  %4004 = vmatmul.mubr.f32.gmra.mrb[0].mxu0 %v3585
  %v4005 = vpop.f32.mrb[0].mxu0
  %v4006 = vadd.f32 %v3781, %v4005
  %v4007 = vpop.f32.mrb[0].mxu0
  %4008 = vmatprep.mubr.f32.mxu0 0.0
  %4009 = vmatmul.mubr.f32.gmra.mrb[0].mxu0 %v3588
  %v4010 = vpop.f32.mrb[0].mxu0
  %v4011 = vadd.f32 %v3786, %v4010
  %v4012 = vpop.f32.mrb[0].mxu0
  %4013 = vmatprep.mubr.f32.mxu0 0.0
  %4014 = vmatmul.mubr.f32.gmra.mrb[0].mxu0 %v3591
  %v4015 = vpop.f32.mrb[0].mxu0
  %v4016 = vadd.f32 %v3791, %v4015
  %v4017 = vpop.f32.mrb[0].mxu0
  %4018 = vmatprep.mubr.f32.mxu0 0.0
  %4019 = vmatmul.mubr.f32.gmra.mrb[0].mxu0 %v3594
  %v4020 = vpop.f32.mrb[0].mxu0
  %v4021 = vadd.f32 %v3796, %v4020
  %v4022 = vpop.f32.mrb[0].mxu0
  %4023 = vmatprep.mubr.f32.mxu0 0.0
  %4024 = vmatmul.mubr.f32.gmra.mrb[0].mxu0 %v3597
  %v4025 = vpop.f32.mrb[0].mxu0
  %v4026 = vadd.f32 %v3801, %v4025
  %v4027 = vpop.f32.mrb[0].mxu0
  %4028 = vmatprep.mubr.f32.mxu0 0.0
  %4029 = vmatmul.mubr.f32.gmra.mrb[0].mxu0 %v3600
  %v4030 = vpop.f32.mrb[0].mxu0
  %v4031 = vadd.f32 %v3806, %v4030
  %v4032 = vpop.f32.mrb[0].mxu0
  %4033 = vmatprep.mubr.f32.mxu0 0.0
  %4034 = vmatmul.mubr.f32.gmra.mrb[0].mxu0 %v3603
  %v4035 = vpop.f32.mrb[0].mxu0
  %v4036 = vadd.f32 %v3811, %v4035
  %v4037 = vpop.f32.mrb[0].mxu0
  %4038 = vmatprep.mubr.f32.mxu0 0.0
  %4039 = vmatmul.mubr.f32.gmra.mrb[0].mxu0 %v3606
  %v4040 = vpop.f32.mrb[0].mxu0
  %v4041 = vadd.f32 %v3816, %v4040
  %v4042 = vpop.f32.mrb[0].mxu0
  %4043 = vmatprep.mubr.f32.mxu0 0.0
  %4044 = vmatmul.mubr.f32.gmra.mrb[0].mxu0 %v3609
  %v4045 = vpop.f32.mrb[0].mxu0
  %v4046 = vadd.f32 %v3821, %v4045
  %v4047 = vpop.f32.mrb[0].mxu0
  %4048 = vmatprep.mubr.f32.mxu0 0.0
  %4049 = vmatmul.mubr.f32.gmra.mrb[0].mxu0 %v3612
  %v4050 = vpop.f32.mrb[0].mxu0
  %v4051 = vadd.f32 %v3826, %v4050
  %v4052 = vpop.f32.mrb[0].mxu0
  %4053 = vmatprep.mubr.f32.mxu0 0.0
  %4054 = vmatmul.mubr.f32.gmra.mrb[0].mxu0 %v3615
  %v4055 = vpop.f32.mrb[0].mxu0
  %v4056 = vadd.f32 %v3831, %v4055
  %v4057 = vpop.f32.mrb[0].mxu0
  %4058 = vmatprep.mubr.f32.mxu0 0.0
  %4059 = vmatmul.mubr.f32.gmra.mrb[0].mxu0 %v3618
  %v4060 = vpop.f32.mrb[0].mxu0
  %v4061 = vadd.f32 %v3836, %v4060
  %v4062 = vpop.f32.mrb[0].mxu0
  %4063 = vmatprep.mubr.f32.mxu0 0.0
  %4064 = vmatmul.mubr.f32.gmra.mrb[0].mxu0 %v3621
  %v4065 = vpop.f32.mrb[0].mxu0
  %v4066 = vadd.f32 %v3841, %v4065
  %v4067 = vpop.f32.mrb[0].mxu0
  %4068 = vmatprep.mubr.f32.mxu0 0.0
  %4069 = vmatmul.mubr.f32.gmra.mrb[0].mxu0 %v3624
  %v4070 = vpop.f32.mrb[0].mxu0
  %v4071 = vadd.f32 %v3846, %v4070
  %v4072 = vpop.f32.mrb[0].mxu0
  %4073 = vmatprep.mubr.f32.mxu0 0.0
  %4074 = vmatmul.mubr.f32.gmra.mrb[0].mxu0 %v3627
  %v4075 = vpop.f32.mrb[0].mxu0
  %v4076 = vadd.f32 %v3851, %v4075
  %v4077 = vpop.f32.mrb[0].mxu0
  %4078 = vmatprep.mubr.f32.mxu0 0.0
  %4079 = vmatmul.mubr.f32.gmra.mrb[0].mxu0 %v3630
  %v4080 = vpop.f32.mrb[0].mxu0
  %v4081 = vadd.f32 %v3856, %v4080
  %v4082 = vpop.f32.mrb[0].mxu0
  %4083 = vmatprep.mubr.f32.mxu0 0.0
  %4084 = vmatmul.mubr.f32.gmra.mrb[0].mxu0 %v3633
  %v4085 = vpop.f32.mrb[0].mxu0
  %v4086 = vadd.f32 %v3861, %v4085
  %v4087 = vpop.f32.mrb[0].mxu0
  %4088 = vmatprep.mubr.f32.mxu0 0.0
  %4089 = vmatmul.mubr.f32.gmra.mrb[0].mxu0 %v3636
  %v4090 = vpop.f32.mrb[0].mxu0
  %v4091 = vadd.f32 %v3866, %v4090
  %v4092 = vpop.f32.mrb[0].mxu0
  %4093 = vmatprep.mubr.f32.mxu0 0.0
  %4094 = vmatmul.mubr.f32.gmra.mrb[0].mxu0 %v3639
  %v4095 = vpop.f32.mrb[0].mxu0
  %v4096 = vadd.f32 %v3871, %v4095
  %v4097 = vpop.f32.mrb[0].mxu0
  %4098 = vmatprep.mubr.f32.mxu0 0.0
  %4099 = vmatmul.mubr.f32.gmra.mrb[0].mxu0 %v3642
  %v4100 = vpop.f32.mrb[0].mxu0
  %v4101 = vadd.f32 %v3876, %v4100
  %v4102 = vpop.f32.mrb[0].mxu0
  %4103 = vmatprep.mubr.f32.mxu0 0.0
  %4104 = vmatmul.mubr.f32.gmra.mrb[0].mxu0 %v3645
  %v4105 = vpop.f32.mrb[0].mxu0
  %v4106 = vadd.f32 %v3881, %v4105
  %v4107 = vpop.f32.mrb[0].mxu0
  %4108 = vdwg.mxu0
  %v4109 = vld [vmem:[%s14] sm:$0x1]
  %v4111 = vlaneseq
  %v4112 = vshrl.u32 %v4111, 7
  %v4113 = vsub.s32 0, %v4112
  %v4114 = vrot.slane %v4109, %v4113
  %v4116 = vadd.f32 %v3951, %v4114
  %v4117 = vadd.f32 %v3956, %v4114
  %v4118 = vadd.f32 %v3961, %v4114
  %v4119 = vadd.f32 %v3966, %v4114
  %v4120 = vadd.f32 %v3971, %v4114
  %v4121 = vadd.f32 %v3976, %v4114
  %v4122 = vadd.f32 %v3981, %v4114
  %v4123 = vadd.f32 %v3986, %v4114
  %v4124 = vadd.f32 %v3991, %v4114
  %v4125 = vadd.f32 %v3996, %v4114
  %v4126 = vadd.f32 %v4001, %v4114
  %v4127 = vadd.f32 %v4006, %v4114
  %v4128 = vadd.f32 %v4011, %v4114
  %v4129 = vadd.f32 %v4016, %v4114
  %v4130 = vadd.f32 %v4021, %v4114
  %v4131 = vadd.f32 %v4026, %v4114
  %v4132 = vadd.f32 %v4031, %v4114
  %v4133 = vadd.f32 %v4036, %v4114
  %v4134 = vadd.f32 %v4041, %v4114
  %v4135 = vadd.f32 %v4046, %v4114
  %v4136 = vadd.f32 %v4051, %v4114
  %v4137 = vadd.f32 %v4056, %v4114
  %v4138 = vadd.f32 %v4061, %v4114
  %v4139 = vadd.f32 %v4066, %v4114
  %v4140 = vadd.f32 %v4071, %v4114
  %v4141 = vadd.f32 %v4076, %v4114
  %v4142 = vadd.f32 %v4081, %v4114
  %v4143 = vadd.f32 %v4086, %v4114
  %v4144 = vadd.f32 %v4091, %v4114
  %v4145 = vadd.f32 %v4096, %v4114
  %v4146 = vadd.f32 %v4101, %v4114
  %v4147 = vadd.f32 %v4106, %v4114
  %v4148 = vmax.f32 %v4116, 0.0
  %v4149 = vmax.f32 %v4117, 0.0
  %v4150 = vmax.f32 %v4118, 0.0
  %v4151 = vmax.f32 %v4119, 0.0
  %v4152 = vmax.f32 %v4120, 0.0
  %v4153 = vmax.f32 %v4121, 0.0
  %v4154 = vmax.f32 %v4122, 0.0
  %v4155 = vmax.f32 %v4123, 0.0
  %v4156 = vmax.f32 %v4124, 0.0
  %v4157 = vmax.f32 %v4125, 0.0
  %v4158 = vmax.f32 %v4126, 0.0
  %v4159 = vmax.f32 %v4127, 0.0
  %v4160 = vmax.f32 %v4128, 0.0
  %v4161 = vmax.f32 %v4129, 0.0
  %v4162 = vmax.f32 %v4130, 0.0
  %v4163 = vmax.f32 %v4131, 0.0
  %v4164 = vmax.f32 %v4132, 0.0
  %v4165 = vmax.f32 %v4133, 0.0
  %v4166 = vmax.f32 %v4134, 0.0
  %v4167 = vmax.f32 %v4135, 0.0
  %v4168 = vmax.f32 %v4136, 0.0
  %v4169 = vmax.f32 %v4137, 0.0
  %v4170 = vmax.f32 %v4138, 0.0
  %v4171 = vmax.f32 %v4139, 0.0
  %v4172 = vmax.f32 %v4140, 0.0
  %v4173 = vmax.f32 %v4141, 0.0
  %v4174 = vmax.f32 %v4142, 0.0
  %v4175 = vmax.f32 %v4143, 0.0
  %v4176 = vmax.f32 %v4144, 0.0
  %v4177 = vmax.f32 %v4145, 0.0
  %v4178 = vmax.f32 %v4146, 0.0
  %v4179 = vmax.f32 %v4147, 0.0
  %v4180 = vadd.f32 %v4148, %v2904
  %v4181 = vadd.f32 %v4149, %v2905
  %v4182 = vadd.f32 %v4150, %v2906
  %v4183 = vadd.f32 %v4151, %v2907
  %v4184 = vadd.f32 %v4152, %v2908
  %v4185 = vadd.f32 %v4153, %v2909
  %v4186 = vadd.f32 %v4154, %v2910
  %v4187 = vadd.f32 %v4155, %v2911
  %v4188 = vadd.f32 %v4156, %v2912
  %v4189 = vadd.f32 %v4157, %v2913
  %v4190 = vadd.f32 %v4158, %v2914
  %v4191 = vadd.f32 %v4159, %v2915
  %v4192 = vadd.f32 %v4160, %v2916
  %v4193 = vadd.f32 %v4161, %v2917
  %v4194 = vadd.f32 %v4162, %v2918
  %v4195 = vadd.f32 %v4163, %v2919
  %v4196 = vadd.f32 %v4164, %v2920
  %v4197 = vadd.f32 %v4165, %v2921
  %v4198 = vadd.f32 %v4166, %v2922
  %v4199 = vadd.f32 %v4167, %v2923
  %v4200 = vadd.f32 %v4168, %v2924
  %v4201 = vadd.f32 %v4169, %v2925
  %v4202 = vadd.f32 %v4170, %v2926
  %v4203 = vadd.f32 %v4171, %v2927
  %v4204 = vadd.f32 %v4172, %v2928
  %v4205 = vadd.f32 %v4173, %v2929
  %v4206 = vadd.f32 %v4174, %v2930
  %v4207 = vadd.f32 %v4175, %v2931
  %v4208 = vadd.f32 %v4176, %v2932
  %v4209 = vadd.f32 %v4177, %v2933
  %v4210 = vadd.f32 %v4178, %v2934
  %v4211 = vadd.f32 %v4179, %v2935
  %v4212 = vmax.f32 %v4180, 0.0
  %v4213 = vmax.f32 %v4181, 0.0
  %v4214 = vmax.f32 %v4182, 0.0
  %v4215 = vmax.f32 %v4183, 0.0
  %v4216 = vmax.f32 %v4184, 0.0
  %v4217 = vmax.f32 %v4185, 0.0
  %v4218 = vmax.f32 %v4186, 0.0
  %v4219 = vmax.f32 %v4187, 0.0
  %v4220 = vmax.f32 %v4188, 0.0
  %v4221 = vmax.f32 %v4189, 0.0
  %v4222 = vmax.f32 %v4190, 0.0
  %v4223 = vmax.f32 %v4191, 0.0
  %v4224 = vmax.f32 %v4192, 0.0
  %v4225 = vmax.f32 %v4193, 0.0
  %v4226 = vmax.f32 %v4194, 0.0
  %v4227 = vmax.f32 %v4195, 0.0
  %v4228 = vmax.f32 %v4196, 0.0
  %v4229 = vmax.f32 %v4197, 0.0
  %v4230 = vmax.f32 %v4198, 0.0
  %v4231 = vmax.f32 %v4199, 0.0
  %v4232 = vmax.f32 %v4200, 0.0
  %v4233 = vmax.f32 %v4201, 0.0
  %v4234 = vmax.f32 %v4202, 0.0
  %v4235 = vmax.f32 %v4203, 0.0
  %v4236 = vmax.f32 %v4204, 0.0
  %v4237 = vmax.f32 %v4205, 0.0
  %v4238 = vmax.f32 %v4206, 0.0
  %v4239 = vmax.f32 %v4207, 0.0
  %v4240 = vmax.f32 %v4208, 0.0
  %v4241 = vmax.f32 %v4209, 0.0
  %v4242 = vmax.f32 %v4210, 0.0
  %v4243 = vmax.f32 %v4211, 0.0
  %4244 = vst.msk [vmem:[%s15] sm:$0xff] %vm944, %v4212
  %4245 = vst.msk [vmem:[%s15 + $0x8] sm:$0xff] %vm944, %v4213
  %4246 = vst.msk [vmem:[%s15 + $0x10] sm:$0xff] %vm944, %v4214
  %4247 = vst.msk [vmem:[%s15 + $0x18] sm:$0xff] %vm944, %v4215
  %4248 = vst.msk [vmem:[%s15 + $0x20] sm:$0xff] %vm944, %v4216
  %4249 = vst.msk [vmem:[%s15 + $0x28] sm:$0xff] %vm944, %v4217
  %4250 = vst.msk [vmem:[%s15 + $0x30] sm:$0xff] %vm944, %v4218
  %4251 = vst.msk [vmem:[%s15 + $0x38] sm:$0xff] %vm944, %v4219
  %4252 = vst.msk [vmem:[%s15 + $0x40] sm:$0xff] %vm944, %v4220
  %4253 = vst.msk [vmem:[%s15 + $0x48] sm:$0xff] %vm944, %v4221
  %4254 = vst.msk [vmem:[%s15 + $0x50] sm:$0xff] %vm944, %v4222
  %4255 = vst.msk [vmem:[%s15 + $0x58] sm:$0xff] %vm944, %v4223
  %4256 = vst.msk [vmem:[%s15 + $0x60] sm:$0xff] %vm944, %v4224
  %4257 = vst.msk [vmem:[%s15 + $0x68] sm:$0xff] %vm944, %v4225
  %4258 = vst.msk [vmem:[%s15 + $0x70] sm:$0xff] %vm944, %v4226
  %4259 = vst.msk [vmem:[%s15 + $0x78] sm:$0xff] %vm944, %v4227
  %4260 = vst.msk [vmem:[%s15 + $0x80] sm:$0xff] %vm944, %v4228
  %4261 = vst.msk [vmem:[%s15 + $0x88] sm:$0xff] %vm944, %v4229
  %4262 = vst.msk [vmem:[%s15 + $0x90] sm:$0xff] %vm944, %v4230
  %4263 = vst.msk [vmem:[%s15 + $0x98] sm:$0xff] %vm944, %v4231
  %4264 = vst.msk [vmem:[%s15 + $0xa0] sm:$0xff] %vm944, %v4232
  %4265 = vst.msk [vmem:[%s15 + $0xa8] sm:$0xff] %vm944, %v4233
  %4266 = vst.msk [vmem:[%s15 + $0xb0] sm:$0xff] %vm944, %v4234
  %4267 = vst.msk [vmem:[%s15 + $0xb8] sm:$0xff] %vm944, %v4235
  %4268 = vst.msk [vmem:[%s15 + $0xc0] sm:$0xff] %vm944, %v4236
  %4269 = vst.msk [vmem:[%s15 + $0xc8] sm:$0xff] %vm944, %v4237
  %4270 = vst.msk [vmem:[%s15 + $0xd0] sm:$0xff] %vm944, %v4238
  %4271 = vst.msk [vmem:[%s15 + $0xd8] sm:$0xff] %vm944, %v4239
  %4272 = vst.msk [vmem:[%s15 + $0xe0] sm:$0xff] %vm944, %v4240
  %4273 = vst.msk [vmem:[%s15 + $0xe8] sm:$0xff] %vm944, %v4241
  %4274 = vst.msk [vmem:[%s15 + $0xf0] sm:$0xff] %vm944, %v4242
  %4275 = vst.msk [vmem:[%s15 + $0xf8] sm:$0xff] %vm944, %v4243
  // Predicated region
  $region62: #{tpu_custom_call.1} parent=0 // pred_check
    _
  $region63: #{tpu_custom_call.1} parent=0 // pred_check_branch
    %4277 = sbr.rel (0) target = $region65
  $region64: #{tpu_custom_call.1} parent=0 // pred_region
    _
  $region65: #{tpu_custom_call.1} parent=0 // pred_fallthru
    _
  // Predicated region
  $region66: #{tpu_custom_call.1} parent=0 // pred_check
    _
  $region67: #{tpu_custom_call.1} parent=0 // pred_check_branch
    %4279 = sbr.rel (0) target = $region69
  $region68: #{tpu_custom_call.1} parent=0 // pred_region
    _
  $region69: #{tpu_custom_call.1} parent=0 // pred_fallthru
    _

</llo_original>
